<compile_context>
chip_gen: v7x
topology: tpu7x:2x2x1
jax: 0.10.0
libtpu: 0.0.40
codegen_flags: <defaults>
</compile_context>

<pallas_src>
import jax
import jax.numpy as jnp
from jax.experimental import pallas as pl
from jax.experimental.pallas import tpu as pltpu

EPS = 1e-5


def _make_kernel(N, C, H, W):
    """Build the fused kernel with all shape constants closed over (static)."""
    C2 = 2 * C
    WC2 = W * C2
    Hp = H + 2
    Lpad = ((W + 2) * C2 + 127) // 128 * 128      # lane-padded width of the pad scratch
    inv_cnt = 1.0 / float(N * H * W)

    def _write_interior(pad_ref, act):
        # act: (N*H, W*C2).  Two wide stores per conv (one per image), lane offset C2.
        for n in range(N):
            pad_ref[n * Hp + 1:n * Hp + 1 + H, C2:C2 + WC2] = act[n * H:(n + 1) * H, :]

    def _conv(pad_ref, t_ref, bias_l):
        # Row-Toeplitz conv: one lane-dense bf16 matmul per kernel row dh; the result is
        # already in the packed (N*H, W*C2) layout (no relayout, no per-tap accumulation).
        acc = None
        for dh in range(3):
            lhs = jnp.concatenate(
                [pad_ref[n * Hp + dh:n * Hp + dh + H, :] for n in range(N)],
                axis=0).astype(jnp.bfloat16)                       # (N*H, Lpad)
            part = jnp.dot(lhs, t_ref[dh], preferred_element_type=jnp.float32)
            acc = part if acc is None else acc + part
        return acc + bias_l

    def _bn(y, gamma_l, beta_l, fold, spread):
        # Two-pass training-mode BatchNorm per channel over (N,H,W).
        # fold  (W*C2, C2): sums the W lane-groups into per-channel values (tiny matmul).
        # spread (C2, W*C2): tiles per-channel values back onto the lane dim.
        mean_c = jnp.dot(jnp.sum(y, axis=0, keepdims=True), fold,
                         preferred_element_type=jnp.float32) * inv_cnt        # (1, C2)
        mean_l = jnp.dot(mean_c, spread, preferred_element_type=jnp.float32)  # (1, WC2)
        d = y - mean_l
        var_c = jnp.dot(jnp.sum(d * d, axis=0, keepdims=True), fold,
                        preferred_element_type=jnp.float32) * inv_cnt
        inv_std_l = jnp.dot(jax.lax.rsqrt(var_c + EPS), spread,
                            preferred_element_type=jnp.float32)
        return d * (gamma_l * inv_std_l) + beta_l

    def kernel(x_ref, t1_ref, b1_ref, g1_ref, be1_ref,
               t2_ref, b2_ref, g2_ref, be2_ref,
               alpha_ref, fold_ref, spread_ref,
               out_ref, pad_ref):
        alpha_l = alpha_ref[...]
        fold = fold_ref[...]
        spread = spread_ref[...]
        x = x_ref[...]                                    # (N*H, W*C2), lane-dense

        # Zero the shared padded scratch once (full-width unmasked stores); the halo
        # stays zero, the interior is fully overwritten before each conv.
        pad_ref[...] = jnp.zeros(pad_ref.shape, jnp.float32)

        # ---- conv1 -> bn1 -> CPReLU ----
        _write_interior(pad_ref, x)
        o1 = _conv(pad_ref, t1_ref, b1_ref[...])
        o1 = _bn(o1, g1_ref[...], be1_ref[...], fold, spread)
        o1 = jnp.where(o1 >= 0.0, o1, alpha_l * o1)

        # ---- conv2 -> bn2 (reuse the same zero-halo scratch) ----
        _write_interior(pad_ref, o1)
        o2 = _conv(pad_ref, t2_ref, b2_ref[...])
        o2 = _bn(o2, g2_ref[...], be2_ref[...], fold, spread)

        # ---- identity residual (downsample=None, stride=1) + final CPReLU ----
        res = o2 + x
        out_ref[...] = jnp.where(res >= 0.0, res, alpha_l * res)

    return kernel, Lpad


def _pack_complex_weight(w):
    """(2,3,3,C,C) HWIO [Wr, Wi] -> (3,3,2C,2C): per-tap stacked complex block
    [[Wr, Wi], [-Wi, Wr]] so that [xr | xi] @ block = [out_real | out_imag]."""
    wr, wi = w[0], w[1]
    top = jnp.concatenate([wr, wi], axis=-1)     # rows fed by real input channels
    bot = jnp.concatenate([-wi, wr], axis=-1)    # rows fed by imag input channels
    return jnp.concatenate([top, bot], axis=-2)  # (3,3,2C,2C)


def _make_row_toeplitz(wstack, W, Lpad):
    """(3,3,C2,C2) -> (3, Lpad, W*C2) row-direction block-Toeplitz weight.
    T[dh][pw*C2+ci, w*C2+co] = wstack[dh, pw-w, ci, co] for pw-w in {0,1,2}, else 0."""
    C2 = wstack.shape[-1]
    pw = jnp.arange(W + 2)[:, None]
    w = jnp.arange(W)[None, :]
    d = pw - w
    valid = ((d >= 0) & (d <= 2)).astype(wstack.dtype)[..., None, None]
    dcl = jnp.clip(d, 0, 2)
    ts = []
    for dh in range(3):
        blocks = wstack[dh][dcl] * valid                               # (W+2, W, C2, C2)
        ts.append(blocks.transpose(0, 2, 1, 3).reshape((W + 2) * C2, W * C2))
    t = jnp.stack(ts)                                                  # (3, (W+2)*C2, W*C2)
    return jnp.pad(t, ((0, 0), (0, Lpad - (W + 2) * C2), (0, 0)))


def basic_block_forward(x_r_nchw, x_i_nchw, params):
    """Wrapper: NCHW real/imag in -> NCHW real/imag out (PyTorch-style boundary)."""
    N, C, H, W = x_r_nchw.shape
    C2 = 2 * C
    WC2 = W * C2

    kernel, Lpad = _make_kernel(N, C, H, W)

    # Pack NHWC [re | im] on channels, then lane-pack to (N*H, W*2C) (free reshape).
    x = jnp.concatenate([jnp.transpose(x_r_nchw, (0, 2, 3, 1)),
                         jnp.transpose(x_i_nchw, (0, 2, 3, 1))], axis=-1)
    x2d = x.reshape(N * H, WC2)

    # bf16 MXU weights (block-Toeplitz per kernel row), f32 accumulation in-kernel.
    t1 = _make_row_toeplitz(_pack_complex_weight(params["w1"]), W, Lpad).astype(jnp.bfloat16)
    t2 = _make_row_toeplitz(_pack_complex_weight(params["w2"]), W, Lpad).astype(jnp.bfloat16)

    def lane(v_c2):  # per-channel (2C,) -> per-lane (1, W*2C)
        return jnp.tile(v_c2.astype(jnp.float32), (W,))[None, :]

    b1 = lane(jnp.concatenate([params["b1"][0], params["b1"][1]]))
    b2 = lane(jnp.concatenate([params["b2"][0], params["b2"][1]]))
    g1 = lane(jnp.concatenate([params["bn1"][0, 0], params["bn1"][1, 0]]))
    be1 = lane(jnp.concatenate([params["bn1"][0, 1], params["bn1"][1, 1]]))
    g2 = lane(jnp.concatenate([params["bn2"][0, 0], params["bn2"][1, 0]]))
    be2 = lane(jnp.concatenate([params["bn2"][0, 1], params["bn2"][1, 1]]))
    alpha = lane(jnp.concatenate([jnp.full((C,), params["alpha"][0], jnp.float32),
                                  jnp.full((C,), params["alpha"][1], jnp.float32)]))

    # Constant channel-indicator matrices for BN stat fold / spread (tiny matmuls).
    fold = jnp.tile(jnp.eye(C2, dtype=jnp.float32), (W, 1))    # (W*C2, C2)
    spread = jnp.tile(jnp.eye(C2, dtype=jnp.float32), (1, W))  # (C2, W*C2)

    flops = 2 * 3 * 2 * (N * H) * Lpad * WC2                   # two convs, 3 row-matmuls each
    bytes_accessed = 4 * 2 * x2d.size + 2 * (t1.size + t2.size)

    vmem = pl.BlockSpec(memory_space=pltpu.MemorySpace.VMEM)
    out2d = pl.pallas_call(
        kernel,
        out_shape=jax.ShapeDtypeStruct((N * H, WC2), jnp.float32),
        in_specs=[vmem] * 12,
        out_specs=vmem,
        scratch_shapes=[pltpu.VMEM((N * (H + 2), Lpad), jnp.float32)],
        cost_estimate=pl.CostEstimate(flops=flops, transcendentals=0,
                                      bytes_accessed=bytes_accessed),
        compiler_params=pltpu.CompilerParams(vmem_limit_bytes=32 * 1024 * 1024),
    )(x2d, t1, b1, g1, be1, t2, b2, g2, be2, alpha, fold, spread)

    out = out2d.reshape(N, H, W, C2)
    return (jnp.transpose(out[..., :C], (0, 3, 1, 2)),
            jnp.transpose(out[..., C:], (0, 3, 1, 2)))


def _ref_forward(x_r_nchw, x_i_nchw, p):
    """Pure-JAX f32 reference (same semantics) for validation."""
    xr = jnp.transpose(x_r_nchw, (0, 2, 3, 1))
    xi = jnp.transpose(x_i_nchw, (0, 2, 3, 1))
    dn = ('NHWC', 'HWIO', 'NHWC')
    conv = lambda x, w: jax.lax.conv_general_dilated(
        x, w, (1, 1), ((1, 1), (1, 1)), dimension_numbers=dn)

    def cconv(ar, ai, w, b):
        return (conv(ar, w[0]) - conv(ai, w[1]) + b[0],
                conv(ai, w[0]) + conv(ar, w[1]) + b[1])

    def bn(y, g, b):
        m = y.mean((0, 1, 2), keepdims=True)
        v = ((y - m) ** 2).mean((0, 1, 2), keepdims=True)
        return (y - m) / jnp.sqrt(v + EPS) * g + b

    prelu = lambda y, a: jnp.where(y >= 0, y, a * y)

    a_r, a_i = p["alpha"][0], p["alpha"][1]
    or_, oi_ = cconv(xr, xi, p["w1"], p["b1"])
    or_ = prelu(bn(or_, p["bn1"][0, 0], p["bn1"][0, 1]), a_r)
    oi_ = prelu(bn(oi_, p["bn1"][1, 0], p["bn1"][1, 1]), a_i)
    or_, oi_ = cconv(or_, oi_, p["w2"], p["b2"])
    or_ = bn(or_, p["bn2"][0, 0], p["bn2"][0, 1])
    oi_ = bn(oi_, p["bn2"][1, 0], p["bn2"][1, 1])
    or_ = prelu(or_ + xr, a_r)
    oi_ = prelu(oi_ + xi, a_i)
    return (jnp.transpose(or_, (0, 3, 1, 2)), jnp.transpose(oi_, (0, 3, 1, 2)))


if __name__ == "__main__":
    key = jax.random.PRNGKey(0)
    N, C, H, W = 2, 8, 16, 16          # inplanes == planes, stride=1, downsample=None
    k = jax.random.split(key, 6)

    x_r = jax.random.normal(k[0], (N, C, H, W), jnp.float32)
    x_i = jax.random.normal(k[1], (N, C, H, W), jnp.float32)

    bn_default = jnp.stack([jnp.stack([jnp.ones((C,), jnp.float32),
                                       jnp.zeros((C,), jnp.float32)])] * 2)  # (2,2,C)
    params = {
        # weights stored HWIO, stacked as [real-part-weight, imag-part-weight]
        "w1": 0.1 * jax.random.normal(k[2], (2, 3, 3, C, C), jnp.float32),
        "b1": 0.05 * jax.random.normal(k[3], (2, C), jnp.float32),
        "bn1": bn_default,
        "w2": 0.1 * jax.random.normal(k[4], (2, 3, 3, C, C), jnp.float32),
        "b2": 0.05 * jax.random.normal(k[5], (2, C), jnp.float32),
        "bn2": bn_default,
        "alpha": jnp.array([0.25, 0.25], jnp.float32),   # CPReLU slopes (re, im)
    }

    out_r, out_i = basic_block_forward(x_r, x_i, params)
    out_r = jax.block_until_ready(out_r)
    out_i = jax.block_until_ready(out_i)

    ref_r, ref_i = _ref_forward(x_r, x_i, params)
    assert out_r.shape == (N, C, H, W) and out_i.shape == (N, C, H, W)
    # bf16 MXU operands vs. f32 reference -> relaxed tolerance (f32 accumulation keeps
    # the error well inside 5e-2 at these magnitudes).
    assert jnp.allclose(out_r, ref_r, atol=5e-2, rtol=5e-2)
    assert jnp.allclose(out_i, ref_i, atol=5e-2, rtol=5e-2)

    print("KERNEL_OK")
</pallas_src>

<mosaic_0001>
module attributes {stable_mosaic.version = 11 : i64} {
  func.func @kernel(%arg0: memref<32x256xf32, #tpu.memory_space<vmem>>, %arg1: memref<3x384x256xbf16, #tpu.memory_space<vmem>>, %arg2: memref<1x256xf32, #tpu.memory_space<vmem>>, %arg3: memref<1x256xf32, #tpu.memory_space<vmem>>, %arg4: memref<1x256xf32, #tpu.memory_space<vmem>>, %arg5: memref<3x384x256xbf16, #tpu.memory_space<vmem>>, %arg6: memref<1x256xf32, #tpu.memory_space<vmem>>, %arg7: memref<1x256xf32, #tpu.memory_space<vmem>>, %arg8: memref<1x256xf32, #tpu.memory_space<vmem>>, %arg9: memref<1x256xf32, #tpu.memory_space<vmem>>, %arg10: memref<256x16xf32, #tpu.memory_space<vmem>>, %arg11: memref<16x256xf32, #tpu.memory_space<vmem>>, %arg12: memref<32x256xf32, #tpu.memory_space<vmem>>, %arg13: memref<36x384xf32, #tpu.memory_space<vmem>>) attributes {dimension_semantics = [], scalar_prefetch = 0 : i64, scratch_operands = 1 : i64, tpu.core_type = #tpu.core_type<tc>} {
    %c0 = arith.constant 0 : index
    %c0_0 = arith.constant 0 : index
    %0 = vector.load %arg9[%c0, %c0_0] : memref<1x256xf32, #tpu.memory_space<vmem>>, vector<1x256xf32>
    %c0_1 = arith.constant 0 : index
    %c0_2 = arith.constant 0 : index
    %1 = vector.load %arg10[%c0_1, %c0_2] : memref<256x16xf32, #tpu.memory_space<vmem>>, vector<256x16xf32>
    %c0_3 = arith.constant 0 : index
    %c0_4 = arith.constant 0 : index
    %2 = vector.load %arg11[%c0_3, %c0_4] : memref<16x256xf32, #tpu.memory_space<vmem>>, vector<16x256xf32>
    %c0_5 = arith.constant 0 : index
    %c0_6 = arith.constant 0 : index
    %3 = vector.load %arg0[%c0_5, %c0_6] : memref<32x256xf32, #tpu.memory_space<vmem>>, vector<32x256xf32>
    %cst = arith.constant 0.000000e+00 : f32
    %4 = vector.broadcast %cst : f32 to vector<36x384xf32>
    %c0_7 = arith.constant 0 : index
    %c0_8 = arith.constant 0 : index
    %5 = vector.load %arg13[%c0_7, %c0_8] : memref<36x384xf32, #tpu.memory_space<vmem>>, vector<36x384xf32>
    tpu.vector_store %arg13[%c0_7, %c0_8], %4 {strides = array<i32>} : memref<36x384xf32, #tpu.memory_space<vmem>>, vector<36x384xf32>,
    %6 = vector.extract_strided_slice %3 {offsets = [0, 0], sizes = [16, 256], strides = [1, 1]} : vector<32x256xf32> to vector<16x256xf32>
    %c1 = arith.constant 1 : index
    %c16 = arith.constant 16 : index
    %7 = vector.load %arg13[%c1, %c16] : memref<36x384xf32, #tpu.memory_space<vmem>>, vector<16x256xf32>
    tpu.vector_store %arg13[%c1, %c16], %6 {strides = array<i32>} : memref<36x384xf32, #tpu.memory_space<vmem>>, vector<16x256xf32>,
    %8 = vector.extract_strided_slice %3 {offsets = [16, 0], sizes = [16, 256], strides = [1, 1]} : vector<32x256xf32> to vector<16x256xf32>
    %c19 = arith.constant 19 : index
    %c16_9 = arith.constant 16 : index
    %9 = vector.load %arg13[%c19, %c16_9] : memref<36x384xf32, #tpu.memory_space<vmem>>, vector<16x256xf32>
    tpu.vector_store %arg13[%c19, %c16_9], %8 {strides = array<i32>} : memref<36x384xf32, #tpu.memory_space<vmem>>, vector<16x256xf32>,
    %c0_10 = arith.constant 0 : index
    %c0_11 = arith.constant 0 : index
    %10 = vector.load %arg2[%c0_10, %c0_11] : memref<1x256xf32, #tpu.memory_space<vmem>>, vector<1x256xf32>
    %c0_12 = arith.constant 0 : index
    %c0_13 = arith.constant 0 : index
    %11 = vector.load %arg13[%c0_12, %c0_13] : memref<36x384xf32, #tpu.memory_space<vmem>>, vector<16x384xf32>
    %c18 = arith.constant 18 : index
    %c0_14 = arith.constant 0 : index
    %12 = vector.load %arg13[%c18, %c0_14] : memref<36x384xf32, #tpu.memory_space<vmem>>, vector<16x384xf32>
    %13 = tpu.concatenate %11, %12 in 0 : vector<16x384xf32>, vector<16x384xf32> -> vector<32x384xf32>
    %14 = arith.truncf %13 : vector<32x384xf32> to vector<32x384xbf16>
    %c0_15 = arith.constant 0 : index
    %c0_16 = arith.constant 0 : index
    %c0_17 = arith.constant 0 : index
    %15 = vector.load %arg1[%c0_15, %c0_16, %c0_17] : memref<3x384x256xbf16, #tpu.memory_space<vmem>>, vector<1x384x256xbf16>
    %16 = vector.shape_cast %15 : vector<1x384x256xbf16> to vector<384x256xbf16>
    %cst_18 = arith.constant dense<0.000000e+00> : vector<32x256xf32>
    %17 = tpu.matmul %14, %16, %cst_18 {dimension_numbers = #tpu.dot_dimension_numbers<[1], [0], [0], [1], [0, 0, 1, 1], [], []>} : vector<32x384xbf16>, vector<384x256xbf16>, vector<32x256xf32> -> vector<32x256xf32>
    %c1_19 = arith.constant 1 : index
    %c0_20 = arith.constant 0 : index
    %18 = vector.load %arg13[%c1_19, %c0_20] : memref<36x384xf32, #tpu.memory_space<vmem>>, vector<16x384xf32>
    %c19_21 = arith.constant 19 : index
    %c0_22 = arith.constant 0 : index
    %19 = vector.load %arg13[%c19_21, %c0_22] : memref<36x384xf32, #tpu.memory_space<vmem>>, vector<16x384xf32>
    %20 = tpu.concatenate %18, %19 in 0 : vector<16x384xf32>, vector<16x384xf32> -> vector<32x384xf32>
    %21 = arith.truncf %20 : vector<32x384xf32> to vector<32x384xbf16>
    %c1_23 = arith.constant 1 : index
    %c0_24 = arith.constant 0 : index
    %c0_25 = arith.constant 0 : index
    %22 = vector.load %arg1[%c1_23, %c0_24, %c0_25] : memref<3x384x256xbf16, #tpu.memory_space<vmem>>, vector<1x384x256xbf16>
    %23 = vector.shape_cast %22 : vector<1x384x256xbf16> to vector<384x256xbf16>
    %cst_26 = arith.constant dense<0.000000e+00> : vector<32x256xf32>
    %24 = tpu.matmul %21, %23, %cst_26 {dimension_numbers = #tpu.dot_dimension_numbers<[1], [0], [0], [1], [0, 0, 1, 1], [], []>} : vector<32x384xbf16>, vector<384x256xbf16>, vector<32x256xf32> -> vector<32x256xf32>
    %25 = arith.addf %17, %24 : vector<32x256xf32>
    %c2 = arith.constant 2 : index
    %c0_27 = arith.constant 0 : index
    %26 = vector.load %arg13[%c2, %c0_27] : memref<36x384xf32, #tpu.memory_space<vmem>>, vector<16x384xf32>
    %c20 = arith.constant 20 : index
    %c0_28 = arith.constant 0 : index
    %27 = vector.load %arg13[%c20, %c0_28] : memref<36x384xf32, #tpu.memory_space<vmem>>, vector<16x384xf32>
    %28 = tpu.concatenate %26, %27 in 0 : vector<16x384xf32>, vector<16x384xf32> -> vector<32x384xf32>
    %29 = arith.truncf %28 : vector<32x384xf32> to vector<32x384xbf16>
    %c2_29 = arith.constant 2 : index
    %c0_30 = arith.constant 0 : index
    %c0_31 = arith.constant 0 : index
    %30 = vector.load %arg1[%c2_29, %c0_30, %c0_31] : memref<3x384x256xbf16, #tpu.memory_space<vmem>>, vector<1x384x256xbf16>
    %31 = vector.shape_cast %30 : vector<1x384x256xbf16> to vector<384x256xbf16>
    %cst_32 = arith.constant dense<0.000000e+00> : vector<32x256xf32>
    %32 = tpu.matmul %29, %31, %cst_32 {dimension_numbers = #tpu.dot_dimension_numbers<[1], [0], [0], [1], [0, 0, 1, 1], [], []>} : vector<32x384xbf16>, vector<384x256xbf16>, vector<32x256xf32> -> vector<32x256xf32>
    %33 = arith.addf %25, %32 : vector<32x256xf32>
    %34 = vector.broadcast %10 : vector<1x256xf32> to vector<32x256xf32>
    %35 = arith.addf %33, %34 : vector<32x256xf32>
    %c0_33 = arith.constant 0 : index
    %c0_34 = arith.constant 0 : index
    %36 = vector.load %arg3[%c0_33, %c0_34] : memref<1x256xf32, #tpu.memory_space<vmem>>, vector<1x256xf32>
    %c0_35 = arith.constant 0 : index
    %c0_36 = arith.constant 0 : index
    %37 = vector.load %arg4[%c0_35, %c0_36] : memref<1x256xf32, #tpu.memory_space<vmem>>, vector<1x256xf32>
    %cst_37 = arith.constant dense<0.000000e+00> : vector<256xf32>
    %38 = vector.multi_reduction <add>, %35, %cst_37 [0] : vector<32x256xf32> to vector<256xf32>
    %39 = vector.shape_cast %38 : vector<256xf32> to vector<1x256xf32>
    %cst_38 = arith.constant dense<0.000000e+00> : vector<1x16xf32>
    %40 = tpu.matmul %39, %1, %cst_38 {dimension_numbers = #tpu.dot_dimension_numbers<[1], [0], [0], [1], [0, 0, 1, 1], [], []>} : vector<1x256xf32>, vector<256x16xf32>, vector<1x16xf32> -> vector<1x16xf32>
    %cst_39 = arith.constant 0.001953125 : f32
    %41 = vector.broadcast %cst_39 : f32 to vector<1x16xf32>
    %42 = arith.mulf %40, %41 : vector<1x16xf32>
    %cst_40 = arith.constant dense<0.000000e+00> : vector<1x256xf32>
    %43 = tpu.matmul %42, %2, %cst_40 {dimension_numbers = #tpu.dot_dimension_numbers<[1], [0], [0], [1], [0, 0, 1, 1], [], []>} : vector<1x16xf32>, vector<16x256xf32>, vector<1x256xf32> -> vector<1x256xf32>
    %44 = vector.broadcast %43 : vector<1x256xf32> to vector<32x256xf32>
    %45 = arith.subf %35, %44 : vector<32x256xf32>
    %46 = arith.mulf %45, %45 : vector<32x256xf32>
    %cst_41 = arith.constant dense<0.000000e+00> : vector<256xf32>
    %47 = vector.multi_reduction <add>, %46, %cst_41 [0] : vector<32x256xf32> to vector<256xf32>
    %48 = vector.shape_cast %47 : vector<256xf32> to vector<1x256xf32>
    %cst_42 = arith.constant dense<0.000000e+00> : vector<1x16xf32>
    %49 = tpu.matmul %48, %1, %cst_42 {dimension_numbers = #tpu.dot_dimension_numbers<[1], [0], [0], [1], [0, 0, 1, 1], [], []>} : vector<1x256xf32>, vector<256x16xf32>, vector<1x16xf32> -> vector<1x16xf32>
    %cst_43 = arith.constant 0.001953125 : f32
    %50 = vector.broadcast %cst_43 : f32 to vector<1x16xf32>
    %51 = arith.mulf %49, %50 : vector<1x16xf32>
    %cst_44 = arith.constant 9.99999974E-6 : f32
    %52 = vector.broadcast %cst_44 : f32 to vector<1x16xf32>
    %53 = arith.addf %51, %52 : vector<1x16xf32>
    %54 = math.rsqrt %53 : vector<1x16xf32>
    %cst_45 = arith.constant dense<0.000000e+00> : vector<1x256xf32>
    %55 = tpu.matmul %54, %2, %cst_45 {dimension_numbers = #tpu.dot_dimension_numbers<[1], [0], [0], [1], [0, 0, 1, 1], [], []>} : vector<1x16xf32>, vector<16x256xf32>, vector<1x256xf32> -> vector<1x256xf32>
    %56 = arith.mulf %36, %55 : vector<1x256xf32>
    %57 = vector.broadcast %56 : vector<1x256xf32> to vector<32x256xf32>
    %58 = arith.mulf %45, %57 : vector<32x256xf32>
    %59 = vector.broadcast %37 : vector<1x256xf32> to vector<32x256xf32>
    %60 = arith.addf %58, %59 : vector<32x256xf32>
    %cst_46 = arith.constant 0.000000e+00 : f32
    %61 = vector.broadcast %cst_46 : f32 to vector<32x256xf32>
    %62 = arith.cmpf oge, %60, %61 : vector<32x256xf32>
    %63 = vector.broadcast %0 : vector<1x256xf32> to vector<32x256xf32>
    %64 = arith.mulf %63, %60 : vector<32x256xf32>
    %65 = arith.select %62, %60, %64 : vector<32x256xi1>, vector<32x256xf32>
    %66 = vector.extract_strided_slice %65 {offsets = [0, 0], sizes = [16, 256], strides = [1, 1]} : vector<32x256xf32> to vector<16x256xf32>
    %c1_47 = arith.constant 1 : index
    %c16_48 = arith.constant 16 : index
    %67 = vector.load %arg13[%c1_47, %c16_48] : memref<36x384xf32, #tpu.memory_space<vmem>>, vector<16x256xf32>
    tpu.vector_store %arg13[%c1_47, %c16_48], %66 {strides = array<i32>} : memref<36x384xf32, #tpu.memory_space<vmem>>, vector<16x256xf32>,
    %68 = vector.extract_strided_slice %65 {offsets = [16, 0], sizes = [16, 256], strides = [1, 1]} : vector<32x256xf32> to vector<16x256xf32>
    %c19_49 = arith.constant 19 : index
    %c16_50 = arith.constant 16 : index
    %69 = vector.load %arg13[%c19_49, %c16_50] : memref<36x384xf32, #tpu.memory_space<vmem>>, vector<16x256xf32>
    tpu.vector_store %arg13[%c19_49, %c16_50], %68 {strides = array<i32>} : memref<36x384xf32, #tpu.memory_space<vmem>>, vector<16x256xf32>,
    %c0_51 = arith.constant 0 : index
    %c0_52 = arith.constant 0 : index
    %70 = vector.load %arg6[%c0_51, %c0_52] : memref<1x256xf32, #tpu.memory_space<vmem>>, vector<1x256xf32>
    %c0_53 = arith.constant 0 : index
    %c0_54 = arith.constant 0 : index
    %71 = vector.load %arg13[%c0_53, %c0_54] : memref<36x384xf32, #tpu.memory_space<vmem>>, vector<16x384xf32>
    %c18_55 = arith.constant 18 : index
    %c0_56 = arith.constant 0 : index
    %72 = vector.load %arg13[%c18_55, %c0_56] : memref<36x384xf32, #tpu.memory_space<vmem>>, vector<16x384xf32>
    %73 = tpu.concatenate %71, %72 in 0 : vector<16x384xf32>, vector<16x384xf32> -> vector<32x384xf32>
    %74 = arith.truncf %73 : vector<32x384xf32> to vector<32x384xbf16>
    %c0_57 = arith.constant 0 : index
    %c0_58 = arith.constant 0 : index
    %c0_59 = arith.constant 0 : index
    %75 = vector.load %arg5[%c0_57, %c0_58, %c0_59] : memref<3x384x256xbf16, #tpu.memory_space<vmem>>, vector<1x384x256xbf16>
    %76 = vector.shape_cast %75 : vector<1x384x256xbf16> to vector<384x256xbf16>
    %cst_60 = arith.constant dense<0.000000e+00> : vector<32x256xf32>
    %77 = tpu.matmul %74, %76, %cst_60 {dimension_numbers = #tpu.dot_dimension_numbers<[1], [0], [0], [1], [0, 0, 1, 1], [], []>} : vector<32x384xbf16>, vector<384x256xbf16>, vector<32x256xf32> -> vector<32x256xf32>
    %c1_61 = arith.constant 1 : index
    %c0_62 = arith.constant 0 : index
    %78 = vector.load %arg13[%c1_61, %c0_62] : memref<36x384xf32, #tpu.memory_space<vmem>>, vector<16x384xf32>
    %c19_63 = arith.constant 19 : index
    %c0_64 = arith.constant 0 : index
    %79 = vector.load %arg13[%c19_63, %c0_64] : memref<36x384xf32, #tpu.memory_space<vmem>>, vector<16x384xf32>
    %80 = tpu.concatenate %78, %79 in 0 : vector<16x384xf32>, vector<16x384xf32> -> vector<32x384xf32>
    %81 = arith.truncf %80 : vector<32x384xf32> to vector<32x384xbf16>
    %c1_65 = arith.constant 1 : index
    %c0_66 = arith.constant 0 : index
    %c0_67 = arith.constant 0 : index
    %82 = vector.load %arg5[%c1_65, %c0_66, %c0_67] : memref<3x384x256xbf16, #tpu.memory_space<vmem>>, vector<1x384x256xbf16>
    %83 = vector.shape_cast %82 : vector<1x384x256xbf16> to vector<384x256xbf16>
    %cst_68 = arith.constant dense<0.000000e+00> : vector<32x256xf32>
    %84 = tpu.matmul %81, %83, %cst_68 {dimension_numbers = #tpu.dot_dimension_numbers<[1], [0], [0], [1], [0, 0, 1, 1], [], []>} : vector<32x384xbf16>, vector<384x256xbf16>, vector<32x256xf32> -> vector<32x256xf32>
    %85 = arith.addf %77, %84 : vector<32x256xf32>
    %c2_69 = arith.constant 2 : index
    %c0_70 = arith.constant 0 : index
    %86 = vector.load %arg13[%c2_69, %c0_70] : memref<36x384xf32, #tpu.memory_space<vmem>>, vector<16x384xf32>
    %c20_71 = arith.constant 20 : index
    %c0_72 = arith.constant 0 : index
    %87 = vector.load %arg13[%c20_71, %c0_72] : memref<36x384xf32, #tpu.memory_space<vmem>>, vector<16x384xf32>
    %88 = tpu.concatenate %86, %87 in 0 : vector<16x384xf32>, vector<16x384xf32> -> vector<32x384xf32>
    %89 = arith.truncf %88 : vector<32x384xf32> to vector<32x384xbf16>
    %c2_73 = arith.constant 2 : index
    %c0_74 = arith.constant 0 : index
    %c0_75 = arith.constant 0 : index
    %90 = vector.load %arg5[%c2_73, %c0_74, %c0_75] : memref<3x384x256xbf16, #tpu.memory_space<vmem>>, vector<1x384x256xbf16>
    %91 = vector.shape_cast %90 : vector<1x384x256xbf16> to vector<384x256xbf16>
    %cst_76 = arith.constant dense<0.000000e+00> : vector<32x256xf32>
    %92 = tpu.matmul %89, %91, %cst_76 {dimension_numbers = #tpu.dot_dimension_numbers<[1], [0], [0], [1], [0, 0, 1, 1], [], []>} : vector<32x384xbf16>, vector<384x256xbf16>, vector<32x256xf32> -> vector<32x256xf32>
    %93 = arith.addf %85, %92 : vector<32x256xf32>
    %94 = vector.broadcast %70 : vector<1x256xf32> to vector<32x256xf32>
    %95 = arith.addf %93, %94 : vector<32x256xf32>
    %c0_77 = arith.constant 0 : index
    %c0_78 = arith.constant 0 : index
    %96 = vector.load %arg7[%c0_77, %c0_78] : memref<1x256xf32, #tpu.memory_space<vmem>>, vector<1x256xf32>
    %c0_79 = arith.constant 0 : index
    %c0_80 = arith.constant 0 : index
    %97 = vector.load %arg8[%c0_79, %c0_80] : memref<1x256xf32, #tpu.memory_space<vmem>>, vector<1x256xf32>
    %cst_81 = arith.constant dense<0.000000e+00> : vector<256xf32>
    %98 = vector.multi_reduction <add>, %95, %cst_81 [0] : vector<32x256xf32> to vector<256xf32>
    %99 = vector.shape_cast %98 : vector<256xf32> to vector<1x256xf32>
    %cst_82 = arith.constant dense<0.000000e+00> : vector<1x16xf32>
    %100 = tpu.matmul %99, %1, %cst_82 {dimension_numbers = #tpu.dot_dimension_numbers<[1], [0], [0], [1], [0, 0, 1, 1], [], []>} : vector<1x256xf32>, vector<256x16xf32>, vector<1x16xf32> -> vector<1x16xf32>
    %cst_83 = arith.constant 0.001953125 : f32
    %101 = vector.broadcast %cst_83 : f32 to vector<1x16xf32>
    %102 = arith.mulf %100, %101 : vector<1x16xf32>
    %cst_84 = arith.constant dense<0.000000e+00> : vector<1x256xf32>
    %103 = tpu.matmul %102, %2, %cst_84 {dimension_numbers = #tpu.dot_dimension_numbers<[1], [0], [0], [1], [0, 0, 1, 1], [], []>} : vector<1x16xf32>, vector<16x256xf32>, vector<1x256xf32> -> vector<1x256xf32>
    %104 = vector.broadcast %103 : vector<1x256xf32> to vector<32x256xf32>
    %105 = arith.subf %95, %104 : vector<32x256xf32>
    %106 = arith.mulf %105, %105 : vector<32x256xf32>
    %cst_85 = arith.constant dense<0.000000e+00> : vector<256xf32>
    %107 = vector.multi_reduction <add>, %106, %cst_85 [0] : vector<32x256xf32> to vector<256xf32>
    %108 = vector.shape_cast %107 : vector<256xf32> to vector<1x256xf32>
    %cst_86 = arith.constant dense<0.000000e+00> : vector<1x16xf32>
    %109 = tpu.matmul %108, %1, %cst_86 {dimension_numbers = #tpu.dot_dimension_numbers<[1], [0], [0], [1], [0, 0, 1, 1], [], []>} : vector<1x256xf32>, vector<256x16xf32>, vector<1x16xf32> -> vector<1x16xf32>
    %cst_87 = arith.constant 0.001953125 : f32
    %110 = vector.broadcast %cst_87 : f32 to vector<1x16xf32>
    %111 = arith.mulf %109, %110 : vector<1x16xf32>
    %cst_88 = arith.constant 9.99999974E-6 : f32
    %112 = vector.broadcast %cst_88 : f32 to vector<1x16xf32>
    %113 = arith.addf %111, %112 : vector<1x16xf32>
    %114 = math.rsqrt %113 : vector<1x16xf32>
    %cst_89 = arith.constant dense<0.000000e+00> : vector<1x256xf32>
    %115 = tpu.matmul %114, %2, %cst_89 {dimension_numbers = #tpu.dot_dimension_numbers<[1], [0], [0], [1], [0, 0, 1, 1], [], []>} : vector<1x16xf32>, vector<16x256xf32>, vector<1x256xf32> -> vector<1x256xf32>
    %116 = arith.mulf %96, %115 : vector<1x256xf32>
    %117 = vector.broadcast %116 : vector<1x256xf32> to vector<32x256xf32>
    %118 = arith.mulf %105, %117 : vector<32x256xf32>
    %119 = vector.broadcast %97 : vector<1x256xf32> to vector<32x256xf32>
    %120 = arith.addf %118, %119 : vector<32x256xf32>
    %121 = arith.addf %120, %3 : vector<32x256xf32>
    %cst_90 = arith.constant 0.000000e+00 : f32
    %122 = vector.broadcast %cst_90 : f32 to vector<32x256xf32>
    %123 = arith.cmpf oge, %121, %122 : vector<32x256xf32>
    %124 = vector.broadcast %0 : vector<1x256xf32> to vector<32x256xf32>
    %125 = arith.mulf %124, %121 : vector<32x256xf32>
    %126 = arith.select %123, %121, %125 : vector<32x256xi1>, vector<32x256xf32>
    %c0_91 = arith.constant 0 : index
    %c0_92 = arith.constant 0 : index
    %127 = vector.load %arg12[%c0_91, %c0_92] : memref<32x256xf32, #tpu.memory_space<vmem>>, vector<32x256xf32>
    tpu.vector_store %arg12[%c0_91, %c0_92], %126 {strides = array<i32>} : memref<32x256xf32, #tpu.memory_space<vmem>>, vector<32x256xf32>,
    return
  }
}

</mosaic_0001>

<llo_original>
// kernel: tpu_custom_call.1
$region0: #{tpu_custom_call.1}
  #allocation0 [shape = 'u32[]', space=smem, size = 0x4, offset = 0x4, fixed_abs, tag = 'smem constant byte address 0x4 - core index']
  #allocation1 [shape = 'u32[144,128]{1,0:T(1,128)}', space=vmem, size = 0x12000, scoped, tag = 'internal scratch']
  #allocation2 [shape = 'f32[36,384]{1,0:T(8,128)}', space=vmem, size = 0xf000, scoped, tag = 'scratch operand']
  %s0 = inlined_call_operand.vmem [shape: f32[32,256], index: 0, kind: input, shape index: {}]
  %s1 = inlined_call_operand.hbm [shape: bf16[3,384,256], index: 1, kind: input, shape index: {}]
  %s2 = inlined_call_operand.vmem [shape: f32[1,256], index: 2, kind: input, shape index: {}]
  %s3 = inlined_call_operand.vmem [shape: f32[1,256], index: 3, kind: input, shape index: {}]
  %s4 = inlined_call_operand.vmem [shape: f32[1,256], index: 4, kind: input, shape index: {}]
  %s5 = inlined_call_operand.hbm [shape: bf16[3,384,256], index: 5, kind: input, shape index: {}]
  %s6 = inlined_call_operand.vmem [shape: f32[1,256], index: 6, kind: input, shape index: {}]
  %s7 = inlined_call_operand.vmem [shape: f32[1,256], index: 7, kind: input, shape index: {}]
  %s8 = inlined_call_operand.vmem [shape: f32[1,256], index: 8, kind: input, shape index: {}]
  %s9 = inlined_call_operand.vmem [shape: f32[1,256], index: 9, kind: input, shape index: {}]
  %s10 = inlined_call_operand.vmem [shape: f32[256,16], index: 10, kind: input, shape index: {}]
  %s11 = inlined_call_operand.vmem [shape: f32[16,256], index: 11, kind: input, shape index: {}]
  %s12 = inlined_call_operand.hbm [shape: f32[32,256], index: 12, kind: output, shape index: {}]
  %s13 = sld [smem:[#allocation0]]
  $region66: #{tpu_custom_call.1} parent=0
    _
  %s15 = ssub.s32 1, %s13
  %s16 = scalar_select 0, %s15, %s13
  $region1: #{tpu_custom_call.1} parent=0
    #allocation3 [shape = 'u8[589824]{0}', space=vmem, size = 0x90000, scoped, tag = 'input window, operand 1, single buffered']
    #allocation4 [shape = 's32[1]{0}', space=sflag, size = 0x4, scoped, tag = 'scoped memory for tpu_custom_call.1']
    #allocation5 [shape = 's32[1]{0}', space=sflag, size = 0x4, scoped, tag = 'scoped memory for tpu_custom_call.1']
    #allocation6 [shape = 'u8[589824]{0}', space=vmem, size = 0x90000, scoped, tag = 'input window, operand 5, single buffered']
    #allocation7 [shape = 's32[1]{0}', space=sflag, size = 0x4, scoped, tag = 'scoped memory for tpu_custom_call.1']
    #allocation8 [shape = 'u8[32768]{0}', space=vmem, size = 0x8000, scoped, tag = 'output window, operand 0, single buffered']
    %17 = vsyncpa [#allocation4], 0
    %18 = vsyncpa [#allocation7], 0
    %19 = vsyncpa [#allocation5], 0
    // Predicated region
    $region2: #{tpu_custom_call.1} parent=1 // pred_check
      _
    $region3: #{tpu_custom_call.1} parent=1 // pred_check_branch
      %21 = sbr.rel (0) target = $region5
    $region4: #{tpu_custom_call.1} parent=1 // pred_region
      _
    $region5: #{tpu_custom_call.1} parent=1 // pred_fallthru
      _
    // Predicated region
    $region6: #{tpu_custom_call.1} parent=1 // pred_check
      _
    $region7: #{tpu_custom_call.1} parent=1 // pred_check_branch
      %23 = sbr.rel (0) target = $region9
    $region8: #{tpu_custom_call.1} parent=1 // pred_region
      %s25 = ssub.s32 18432, 18432
      %26 = vsyncadd [#allocation4], %s25
      %s27 = sshll.u32 [#allocation3], 4
      %s28 = int_to_ptr.vmem [resolvable:$true] %s27
      %33 = dma.hbm_to_vmem [thread:$0]  %s1, 18432, %s28, [#allocation4], 128, 128, 8
    $region9: #{tpu_custom_call.1} parent=1 // pred_fallthru
      _
    // Predicated region
    $region10: #{tpu_custom_call.1} parent=1 // pred_check
      _
    $region11: #{tpu_custom_call.1} parent=1 // pred_check_branch
      %35 = sbr.rel (0) target = $region13
    $region12: #{tpu_custom_call.1} parent=1 // pred_region
      _
    $region13: #{tpu_custom_call.1} parent=1 // pred_fallthru
      _
    // Predicated region
    $region14: #{tpu_custom_call.1} parent=1 // pred_check
      _
    $region15: #{tpu_custom_call.1} parent=1 // pred_check_branch
      %37 = sbr.rel (0) target = $region17
    $region16: #{tpu_custom_call.1} parent=1 // pred_region
      _
    $region17: #{tpu_custom_call.1} parent=1 // pred_fallthru
      _
    // Predicated region
    $region18: #{tpu_custom_call.1} parent=1 // pred_check
      _
    $region19: #{tpu_custom_call.1} parent=1 // pred_check_branch
      %39 = sbr.rel (0) target = $region21
    $region20: #{tpu_custom_call.1} parent=1 // pred_region
      _
    $region21: #{tpu_custom_call.1} parent=1 // pred_fallthru
      _
    // Predicated region
    $region22: #{tpu_custom_call.1} parent=1 // pred_check
      _
    $region23: #{tpu_custom_call.1} parent=1 // pred_check_branch
      %41 = sbr.rel (0) target = $region25
    $region24: #{tpu_custom_call.1} parent=1 // pred_region
      %s43 = ssub.s32 18432, 18432
      %44 = vsyncadd [#allocation7], %s43
      %s45 = sshll.u32 [#allocation6], 4
      %s46 = int_to_ptr.vmem [resolvable:$true] %s45
      %51 = dma.hbm_to_vmem [thread:$0]  %s5, 18432, %s46, [#allocation7], 128, 128, 8
    $region25: #{tpu_custom_call.1} parent=1 // pred_fallthru
      _
    // Predicated region
    $region26: #{tpu_custom_call.1} parent=1 // pred_check
      _
    $region27: #{tpu_custom_call.1} parent=1 // pred_check_branch
      %53 = sbr.rel (0) target = $region29
    $region28: #{tpu_custom_call.1} parent=1 // pred_region
      _
    $region29: #{tpu_custom_call.1} parent=1 // pred_fallthru
      _
    // Predicated region
    $region30: #{tpu_custom_call.1} parent=1 // pred_check
      _
    $region31: #{tpu_custom_call.1} parent=1 // pred_check_branch
      %55 = sbr.rel (0) target = $region33
    $region32: #{tpu_custom_call.1} parent=1 // pred_region
      _
    $region33: #{tpu_custom_call.1} parent=1 // pred_fallthru
      _
    // Predicated region
    $region34: #{tpu_custom_call.1} parent=1 // pred_check
      _
    $region35: #{tpu_custom_call.1} parent=1 // pred_check_branch
      %57 = sbr.rel (0) target = $region37
    $region36: #{tpu_custom_call.1} parent=1 // pred_region
      _
    $region37: #{tpu_custom_call.1} parent=1 // pred_fallthru
      _
    // Predicated region
    $region38: #{tpu_custom_call.1} parent=1 // pred_check
      _
    $region39: #{tpu_custom_call.1} parent=1 // pred_check_branch
      %59 = sbr.rel (0) target = $region41
    $region40: #{tpu_custom_call.1} parent=1 // pred_region
      _
    $region41: #{tpu_custom_call.1} parent=1 // pred_fallthru
      _
    // Predicated region
    $region42: #{tpu_custom_call.1} parent=1 // pred_check
      _
    $region43: #{tpu_custom_call.1} parent=1 // pred_check_branch
      %61 = sbr.rel (0) target = $region45
    $region44: #{tpu_custom_call.1} parent=1 // pred_region
      _
    $region45: #{tpu_custom_call.1} parent=1 // pred_fallthru
      _
    // Predicated region
    $region46: #{tpu_custom_call.1} parent=1 // pred_check
      _
    $region47: #{tpu_custom_call.1} parent=1 // pred_check_branch
      %63 = sbr.rel (0) target = $region49
    $region48: #{tpu_custom_call.1} parent=1 // pred_region
      _
    $region49: #{tpu_custom_call.1} parent=1 // pred_fallthru
      _
    // Predicated region
    $region50: #{tpu_custom_call.1} parent=1 // pred_check
      _
    $region51: #{tpu_custom_call.1} parent=1 // pred_check_branch
      %65 = sbr.rel (0) target = $region53
    $region52: #{tpu_custom_call.1} parent=1 // pred_region
      %66 = dma.done [#allocation4], 18432
    $region53: #{tpu_custom_call.1} parent=1 // pred_fallthru
      _
    // Predicated region
    $region54: #{tpu_custom_call.1} parent=1 // pred_check
      _
    $region55: #{tpu_custom_call.1} parent=1 // pred_check_branch
      %68 = sbr.rel (0) target = $region57
    $region56: #{tpu_custom_call.1} parent=1 // pred_region
      %69 = dma.done [#allocation7], 18432
    $region57: #{tpu_custom_call.1} parent=1 // pred_fallthru
      _
    %v71 = vld [vmem:[%s9] sm:$0x3]
    %v72 = vld [vmem:[%s10] sm:$0xff]
    %v73 = vld [vmem:[%s10 + $0x8] sm:$0xff]
    %v74 = vld [vmem:[%s10 + $0x10] sm:$0xff]
    %v75 = vld [vmem:[%s10 + $0x18] sm:$0xff]
    %v76 = vld [vmem:[%s10 + $0x20] sm:$0xff]
    %v77 = vld [vmem:[%s10 + $0x28] sm:$0xff]
    %v78 = vld [vmem:[%s10 + $0x30] sm:$0xff]
    %v79 = vld [vmem:[%s10 + $0x38] sm:$0xff]
    %v80 = vld [vmem:[%s10 + $0x40] sm:$0xff]
    %v81 = vld [vmem:[%s10 + $0x48] sm:$0xff]
    %v82 = vld [vmem:[%s10 + $0x50] sm:$0xff]
    %v83 = vld [vmem:[%s10 + $0x58] sm:$0xff]
    %v84 = vld [vmem:[%s10 + $0x60] sm:$0xff]
    %v85 = vld [vmem:[%s10 + $0x68] sm:$0xff]
    %v86 = vld [vmem:[%s10 + $0x70] sm:$0xff]
    %v87 = vld [vmem:[%s10 + $0x78] sm:$0xff]
    %v88 = vld [vmem:[%s10 + $0x80] sm:$0xff]
    %v89 = vld [vmem:[%s10 + $0x88] sm:$0xff]
    %v90 = vld [vmem:[%s10 + $0x90] sm:$0xff]
    %v91 = vld [vmem:[%s10 + $0x98] sm:$0xff]
    %v92 = vld [vmem:[%s10 + $0xa0] sm:$0xff]
    %v93 = vld [vmem:[%s10 + $0xa8] sm:$0xff]
    %v94 = vld [vmem:[%s10 + $0xb0] sm:$0xff]
    %v95 = vld [vmem:[%s10 + $0xb8] sm:$0xff]
    %v96 = vld [vmem:[%s10 + $0xc0] sm:$0xff]
    %v97 = vld [vmem:[%s10 + $0xc8] sm:$0xff]
    %v98 = vld [vmem:[%s10 + $0xd0] sm:$0xff]
    %v99 = vld [vmem:[%s10 + $0xd8] sm:$0xff]
    %v100 = vld [vmem:[%s10 + $0xe0] sm:$0xff]
    %v101 = vld [vmem:[%s10 + $0xe8] sm:$0xff]
    %v102 = vld [vmem:[%s10 + $0xf0] sm:$0xff]
    %v103 = vld [vmem:[%s10 + $0xf8] sm:$0xff]
    %v104 = vld [vmem:[%s11] sm:$0xff]
    %v105 = vld [vmem:[%s11 + $0x8] sm:$0xff]
    %v106 = vld [vmem:[%s11 + $0x10] sm:$0xff]
    %v107 = vld [vmem:[%s11 + $0x18] sm:$0xff]
    %v108 = vld [vmem:[%s0] sm:$0xff]
    %v109 = vld [vmem:[%s0 + $0x8] sm:$0xff]
    %v110 = vld [vmem:[%s0 + $0x10] sm:$0xff]
    %v111 = vld [vmem:[%s0 + $0x18] sm:$0xff]
    %v112 = vld [vmem:[%s0 + $0x20] sm:$0xff]
    %v113 = vld [vmem:[%s0 + $0x28] sm:$0xff]
    %v114 = vld [vmem:[%s0 + $0x30] sm:$0xff]
    %v115 = vld [vmem:[%s0 + $0x38] sm:$0xff]
    %116 = vst [vmem:[#allocation2] sm:$0xff] 0.0
    %117 = vst [vmem:[#allocation2 + $0x8] sm:$0xff] 0.0
    %118 = vst [vmem:[#allocation2 + $0x10] sm:$0xff] 0.0
    %119 = vst [vmem:[#allocation2 + $0x18] sm:$0xff] 0.0
    %120 = vst [vmem:[#allocation2 + $0x20] sm:$0xff] 0.0
    %121 = vst [vmem:[#allocation2 + $0x28] sm:$0xff] 0.0
    %122 = vst [vmem:[#allocation2 + $0x30] sm:$0xff] 0.0
    %123 = vst [vmem:[#allocation2 + $0x38] sm:$0xff] 0.0
    %124 = vst [vmem:[#allocation2 + $0x40] sm:$0xff] 0.0
    %125 = vst [vmem:[#allocation2 + $0x48] sm:$0xff] 0.0
    %126 = vst [vmem:[#allocation2 + $0x50] sm:$0xff] 0.0
    %127 = vst [vmem:[#allocation2 + $0x58] sm:$0xff] 0.0
    %128 = vst [vmem:[#allocation2 + $0x60] sm:$0xf] 0.0
    %129 = vst [vmem:[#allocation2 + $0x68] sm:$0xf] 0.0
    %130 = vst [vmem:[#allocation2 + $0x70] sm:$0xf] 0.0
    %vm135 = vcmask 1040384
    %v136 = vrot.slane %v108, 7
    %v137 = vrot.slane %v109, 7
    %v138 = vrot.slane %v110, 7
    %v139 = vsel %vm135, %v136, %v138
    %v140 = vrot.slane %v111, 7
    %v141 = vsel %vm135, %v137, %v140
    %142 = vrot.lane.b32.xlu0 %v136, 16
    %v143 = vpop.permute.xlu0 %142
    %144 = vrot.lane.b32.xlu0 %v137, 16
    %v145 = vpop.permute.xlu0 %144
    %146 = vrot.lane.b32.xlu0 %v139, 16
    %v147 = vpop.permute.xlu0 %146
    %148 = vrot.lane.b32.xlu0 %v141, 16
    %v149 = vpop.permute.xlu0 %148
    %150 = vrot.lane.b32.xlu0 %v138, 16
    %v151 = vpop.permute.xlu0 %150
    %152 = vrot.lane.b32.xlu0 %v140, 16
    %v153 = vpop.permute.xlu0 %152
    %vm154 = vcmask 130048
    %v155 = vsel %vm154, %v143, %v145
    %v156 = vsel %vm154, %v147, %v149
    %v157 = vsel %vm154, %v151, %v153
    %vm167 = vcmask 1047681
    %168 = vst.msk [vmem:[#allocation2] sm:$0xfe] %vm167, %v143
    %169 = vst [vmem:[#allocation2 + $0x8] sm:$0xfe] %v155
    %vm170 = vcmask 130049
    %171 = vst.msk [vmem:[#allocation2 + $0x10] sm:$0xfe] %vm170, %v145
    %vm172 = vcmask 1047680
    %173 = vst.msk [vmem:[#allocation2 + $0x18] sm:$0xff] %vm172, %v147
    %174 = vst [vmem:[#allocation2 + $0x20] sm:$0xff] %v156
    %175 = vst.msk [vmem:[#allocation2 + $0x28] sm:$0xff] %vm154, %v149
    %vm176 = vcmask 1040512
    %177 = vst.msk [vmem:[#allocation2 + $0x30] sm:$0x1] %vm176, %v151
    %178 = vst [vmem:[#allocation2 + $0x38] sm:$0x1] %v157
    %vm179 = vcmask 122880
    %180 = vst.msk [vmem:[#allocation2 + $0x40] sm:$0x1] %vm179, %v153
    %vm185 = vcmask 1042432
    %v186 = vrot.slane %v112, 5
    %v187 = vrot.slane %v113, 5
    %v188 = vrot.slane %v114, 5
    %v189 = vsel %vm185, %v186, %v188
    %v190 = vrot.slane %v115, 5
    %v191 = vsel %vm185, %v187, %v190
    %192 = vrot.lane.b32.xlu0 %v186, 16
    %v193 = vpop.permute.xlu0 %192
    %194 = vrot.lane.b32.xlu0 %v187, 16
    %v195 = vpop.permute.xlu0 %194
    %196 = vrot.lane.b32.xlu0 %v189, 16
    %v197 = vpop.permute.xlu0 %196
    %198 = vrot.lane.b32.xlu0 %v191, 16
    %v199 = vpop.permute.xlu0 %198
    %200 = vrot.lane.b32.xlu0 %v188, 16
    %v201 = vpop.permute.xlu0 %200
    %202 = vrot.lane.b32.xlu0 %v190, 16
    %v203 = vpop.permute.xlu0 %202
    %v204 = vsel %vm154, %v193, %v195
    %v205 = vsel %vm154, %v197, %v199
    %v206 = vsel %vm154, %v201, %v203
    %vm216 = vcmask 1047683
    %217 = vst.msk [vmem:[#allocation2 + $0x30] sm:$0xf8] %vm216, %v193
    %218 = vst [vmem:[#allocation2 + $0x38] sm:$0xf8] %v204
    %vm219 = vcmask 130051
    %220 = vst.msk [vmem:[#allocation2 + $0x40] sm:$0xf8] %vm219, %v195
    %221 = vst.msk [vmem:[#allocation2 + $0x48] sm:$0xff] %vm172, %v197
    %222 = vst [vmem:[#allocation2 + $0x50] sm:$0xff] %v205
    %223 = vst.msk [vmem:[#allocation2 + $0x58] sm:$0xff] %vm154, %v199
    %vm224 = vcmask 1042560
    %225 = vst.msk [vmem:[#allocation2 + $0x60] sm:$0x7] %vm224, %v201
    %226 = vst [vmem:[#allocation2 + $0x68] sm:$0x7] %v206
    %vm227 = vcmask 124928
    %228 = vst.msk [vmem:[#allocation2 + $0x70] sm:$0x7] %vm227, %v203
    %v229 = vld [vmem:[%s2] sm:$0x3]
    %v230 = vld [vmem:[#allocation2] sm:$0xff]
    %v231 = vld [vmem:[#allocation2 + $0x8] sm:$0xff]
    %v232 = vld [vmem:[#allocation2 + $0x10] sm:$0xff]
    %v233 = vld [vmem:[#allocation2 + $0x18] sm:$0xff]
    %v234 = vld [vmem:[#allocation2 + $0x20] sm:$0xff]
    %v235 = vld [vmem:[#allocation2 + $0x28] sm:$0xff]
    %v236 = vld [vmem:[#allocation2 + $0x30] sm:$0xfc]
    %v237 = vld [vmem:[#allocation2 + $0x38] sm:$0xfc]
    %v238 = vld [vmem:[#allocation2 + $0x40] sm:$0xfc]
    %v239 = vld [vmem:[#allocation2 + $0x48] sm:$0xff]
    %v240 = vld [vmem:[#allocation2 + $0x50] sm:$0xff]
    %v241 = vld [vmem:[#allocation2 + $0x58] sm:$0xff]
    %v242 = vld [vmem:[#allocation2 + $0x60] sm:$0x3]
    %v243 = vld [vmem:[#allocation2 + $0x68] sm:$0x3]
    %v244 = vld [vmem:[#allocation2 + $0x70] sm:$0x3]
    %vm254 = vcmask 1045504
    %v255 = vrot.slane %v236, 2
    %v256 = vrot.slane %v239, 2
    %v257 = vsel %vm254, %v255, %v256
    %v258 = vrot.slane %v237, 2
    %v259 = vrot.slane %v240, 2
    %v260 = vsel %vm254, %v258, %v259
    %v261 = vrot.slane %v238, 2
    %v262 = vrot.slane %v241, 2
    %v263 = vsel %vm254, %v261, %v262
    %v264 = vrot.slane %v242, 2
    %v265 = vsel %vm254, %v256, %v264
    %v266 = vrot.slane %v243, 2
    %v267 = vsel %vm254, %v259, %v266
    %v268 = vrot.slane %v244, 2
    %v269 = vsel %vm254, %v262, %v268
    %v276 = vpack.c.bf16 %v233, %v230
    %v277 = vpack.c.bf16 %v234, %v231
    %v278 = vpack.c.bf16 %v235, %v232
    %v279 = vpack.c.bf16 %v265, %v257
    %v280 = vpack.c.bf16 %v267, %v260
    %v281 = vpack.c.bf16 %v269, %v263
    %v282 = vld [vmem:[#allocation3] sm:$0xff]
    %v283 = vld [vmem:[#allocation3 + $0x8] sm:$0xff]
    %v284 = vld [vmem:[#allocation3 + $0x10] sm:$0xff]
    %v285 = vld [vmem:[#allocation3 + $0x18] sm:$0xff]
    %v286 = vld [vmem:[#allocation3 + $0x20] sm:$0xff]
    %v287 = vld [vmem:[#allocation3 + $0x28] sm:$0xff]
    %v288 = vld [vmem:[#allocation3 + $0x30] sm:$0xff]
    %v289 = vld [vmem:[#allocation3 + $0x38] sm:$0xff]
    %v290 = vld [vmem:[#allocation3 + $0x40] sm:$0xff]
    %v291 = vld [vmem:[#allocation3 + $0x48] sm:$0xff]
    %v292 = vld [vmem:[#allocation3 + $0x50] sm:$0xff]
    %v293 = vld [vmem:[#allocation3 + $0x58] sm:$0xff]
    %v294 = vld [vmem:[#allocation3 + $0x60] sm:$0xff]
    %v295 = vld [vmem:[#allocation3 + $0x68] sm:$0xff]
    %v296 = vld [vmem:[#allocation3 + $0x70] sm:$0xff]
    %v297 = vld [vmem:[#allocation3 + $0x78] sm:$0xff]
    %v298 = vld [vmem:[#allocation3 + $0x80] sm:$0xff]
    %v299 = vld [vmem:[#allocation3 + $0x88] sm:$0xff]
    %v300 = vld [vmem:[#allocation3 + $0x90] sm:$0xff]
    %v301 = vld [vmem:[#allocation3 + $0x98] sm:$0xff]
    %v302 = vld [vmem:[#allocation3 + $0xa0] sm:$0xff]
    %v303 = vld [vmem:[#allocation3 + $0xa8] sm:$0xff]
    %v304 = vld [vmem:[#allocation3 + $0xb0] sm:$0xff]
    %v305 = vld [vmem:[#allocation3 + $0xb8] sm:$0xff]
    %v306 = vld [vmem:[#allocation3 + $0xc0] sm:$0xff]
    %v307 = vld [vmem:[#allocation3 + $0xc8] sm:$0xff]
    %v308 = vld [vmem:[#allocation3 + $0xd0] sm:$0xff]
    %v309 = vld [vmem:[#allocation3 + $0xd8] sm:$0xff]
    %v310 = vld [vmem:[#allocation3 + $0xe0] sm:$0xff]
    %v311 = vld [vmem:[#allocation3 + $0xe8] sm:$0xff]
    %v312 = vld [vmem:[#allocation3 + $0xf0] sm:$0xff]
    %v313 = vld [vmem:[#allocation3 + $0xf8] sm:$0xff]
    %v314 = vld [vmem:[#allocation3 + $0x100] sm:$0xff]
    %v315 = vld [vmem:[#allocation3 + $0x108] sm:$0xff]
    %v316 = vld [vmem:[#allocation3 + $0x110] sm:$0xff]
    %v317 = vld [vmem:[#allocation3 + $0x118] sm:$0xff]
    %v318 = vld [vmem:[#allocation3 + $0x120] sm:$0xff]
    %v319 = vld [vmem:[#allocation3 + $0x128] sm:$0xff]
    %v320 = vld [vmem:[#allocation3 + $0x130] sm:$0xff]
    %v321 = vld [vmem:[#allocation3 + $0x138] sm:$0xff]
    %v322 = vld [vmem:[#allocation3 + $0x140] sm:$0xff]
    %v323 = vld [vmem:[#allocation3 + $0x148] sm:$0xff]
    %v324 = vld [vmem:[#allocation3 + $0x150] sm:$0xff]
    %v325 = vld [vmem:[#allocation3 + $0x158] sm:$0xff]
    %v326 = vld [vmem:[#allocation3 + $0x160] sm:$0xff]
    %v327 = vld [vmem:[#allocation3 + $0x168] sm:$0xff]
    %v328 = vld [vmem:[#allocation3 + $0x170] sm:$0xff]
    %v329 = vld [vmem:[#allocation3 + $0x178] sm:$0xff]
    %v330 = vld [vmem:[#allocation2] sm:$0xfe]
    %v331 = vld [vmem:[#allocation2 + $0x8] sm:$0xfe]
    %v332 = vld [vmem:[#allocation2 + $0x10] sm:$0xfe]
    %v333 = vld [vmem:[#allocation2 + $0x30] sm:$0x1]
    %v334 = vld [vmem:[#allocation2 + $0x38] sm:$0x1]
    %v335 = vld [vmem:[#allocation2 + $0x40] sm:$0x1]
    %v336 = vld [vmem:[#allocation2 + $0x30] sm:$0xf8]
    %v337 = vld [vmem:[#allocation2 + $0x38] sm:$0xf8]
    %v338 = vld [vmem:[#allocation2 + $0x40] sm:$0xf8]
    %v339 = vld [vmem:[#allocation2 + $0x60] sm:$0x7]
    %v340 = vld [vmem:[#allocation2 + $0x68] sm:$0x7]
    %v341 = vld [vmem:[#allocation2 + $0x70] sm:$0x7]
    %vm351 = vcmask 1046528
    %v352 = vrot.slane %v330, 1
    %v353 = vrot.slane %v233, 1
    %v354 = vsel %vm351, %v352, %v353
    %v355 = vrot.slane %v331, 1
    %v356 = vrot.slane %v234, 1
    %v357 = vsel %vm351, %v355, %v356
    %v358 = vrot.slane %v332, 1
    %v359 = vrot.slane %v235, 1
    %v360 = vsel %vm351, %v358, %v359
    %v361 = vrot.slane %v333, 1
    %v362 = vsel %vm351, %v353, %v361
    %v363 = vrot.slane %v334, 1
    %v364 = vsel %vm351, %v356, %v363
    %v365 = vrot.slane %v335, 1
    %v366 = vsel %vm351, %v359, %v365
    %vm379 = vcmask 1044480
    %v380 = vrot.slane %v336, 3
    %v381 = vrot.slane %v239, 3
    %v382 = vsel %vm379, %v380, %v381
    %v383 = vrot.slane %v337, 3
    %v384 = vrot.slane %v240, 3
    %v385 = vsel %vm379, %v383, %v384
    %v386 = vrot.slane %v338, 3
    %v387 = vrot.slane %v241, 3
    %v388 = vsel %vm379, %v386, %v387
    %v389 = vrot.slane %v339, 3
    %v390 = vsel %vm379, %v381, %v389
    %v391 = vrot.slane %v340, 3
    %v392 = vsel %vm379, %v384, %v391
    %v393 = vrot.slane %v341, 3
    %v394 = vsel %vm379, %v387, %v393
    %v401 = vpack.c.bf16 %v362, %v354
    %v402 = vpack.c.bf16 %v364, %v357
    %v403 = vpack.c.bf16 %v366, %v360
    %v404 = vpack.c.bf16 %v390, %v382
    %v405 = vpack.c.bf16 %v392, %v385
    %v406 = vpack.c.bf16 %v394, %v388
    %s407 = scalar_lea.vmem [#allocation3], 384
    %v408 = vld [vmem:[%s407] sm:$0xff]
    %v409 = vld [vmem:[%s407 + $0x8] sm:$0xff]
    %v410 = vld [vmem:[%s407 + $0x10] sm:$0xff]
    %v411 = vld [vmem:[%s407 + $0x18] sm:$0xff]
    %v412 = vld [vmem:[%s407 + $0x20] sm:$0xff]
    %v413 = vld [vmem:[%s407 + $0x28] sm:$0xff]
    %v414 = vld [vmem:[%s407 + $0x30] sm:$0xff]
    %v415 = vld [vmem:[%s407 + $0x38] sm:$0xff]
    %v416 = vld [vmem:[%s407 + $0x40] sm:$0xff]
    %v417 = vld [vmem:[%s407 + $0x48] sm:$0xff]
    %v418 = vld [vmem:[%s407 + $0x50] sm:$0xff]
    %v419 = vld [vmem:[%s407 + $0x58] sm:$0xff]
    %v420 = vld [vmem:[%s407 + $0x60] sm:$0xff]
    %v421 = vld [vmem:[%s407 + $0x68] sm:$0xff]
    %v422 = vld [vmem:[%s407 + $0x70] sm:$0xff]
    %v423 = vld [vmem:[%s407 + $0x78] sm:$0xff]
    %v424 = vld [vmem:[%s407 + $0x80] sm:$0xff]
    %v425 = vld [vmem:[%s407 + $0x88] sm:$0xff]
    %v426 = vld [vmem:[%s407 + $0x90] sm:$0xff]
    %v427 = vld [vmem:[%s407 + $0x98] sm:$0xff]
    %v428 = vld [vmem:[%s407 + $0xa0] sm:$0xff]
    %v429 = vld [vmem:[%s407 + $0xa8] sm:$0xff]
    %v430 = vld [vmem:[%s407 + $0xb0] sm:$0xff]
    %v431 = vld [vmem:[%s407 + $0xb8] sm:$0xff]
    %v432 = vld [vmem:[%s407 + $0xc0] sm:$0xff]
    %v433 = vld [vmem:[%s407 + $0xc8] sm:$0xff]
    %v434 = vld [vmem:[%s407 + $0xd0] sm:$0xff]
    %v435 = vld [vmem:[%s407 + $0xd8] sm:$0xff]
    %v436 = vld [vmem:[%s407 + $0xe0] sm:$0xff]
    %v437 = vld [vmem:[%s407 + $0xe8] sm:$0xff]
    %v438 = vld [vmem:[%s407 + $0xf0] sm:$0xff]
    %v439 = vld [vmem:[%s407 + $0xf8] sm:$0xff]
    %v440 = vld [vmem:[%s407 + $0x100] sm:$0xff]
    %v441 = vld [vmem:[%s407 + $0x108] sm:$0xff]
    %v442 = vld [vmem:[%s407 + $0x110] sm:$0xff]
    %v443 = vld [vmem:[%s407 + $0x118] sm:$0xff]
    %v444 = vld [vmem:[%s407 + $0x120] sm:$0xff]
    %v445 = vld [vmem:[%s407 + $0x128] sm:$0xff]
    %v446 = vld [vmem:[%s407 + $0x130] sm:$0xff]
    %v447 = vld [vmem:[%s407 + $0x138] sm:$0xff]
    %v448 = vld [vmem:[%s407 + $0x140] sm:$0xff]
    %v449 = vld [vmem:[%s407 + $0x148] sm:$0xff]
    %v450 = vld [vmem:[%s407 + $0x150] sm:$0xff]
    %v451 = vld [vmem:[%s407 + $0x158] sm:$0xff]
    %v452 = vld [vmem:[%s407 + $0x160] sm:$0xff]
    %v453 = vld [vmem:[%s407 + $0x168] sm:$0xff]
    %v454 = vld [vmem:[%s407 + $0x170] sm:$0xff]
    %v455 = vld [vmem:[%s407 + $0x178] sm:$0xff]
    %v504 = vunpack.c.l.b16 %v408
    %v505 = vunpack.c.h.b16 %v408
    %v506 = vunpack.c.l.b16 %v409
    %v507 = vunpack.c.h.b16 %v409
    %v508 = vunpack.c.l.b16 %v410
    %v509 = vunpack.c.h.b16 %v410
    %v510 = vunpack.c.l.b16 %v411
    %v511 = vunpack.c.h.b16 %v411
    %v512 = vunpack.c.l.b16 %v412
    %v513 = vunpack.c.h.b16 %v412
    %v514 = vunpack.c.l.b16 %v413
    %v515 = vunpack.c.h.b16 %v413
    %v516 = vunpack.c.l.b16 %v414
    %v517 = vunpack.c.h.b16 %v414
    %v518 = vunpack.c.l.b16 %v415
    %v519 = vunpack.c.h.b16 %v415
    %v520 = vunpack.c.l.b16 %v416
    %v521 = vunpack.c.h.b16 %v416
    %v522 = vunpack.c.l.b16 %v417
    %v523 = vunpack.c.h.b16 %v417
    %v524 = vunpack.c.l.b16 %v418
    %v525 = vunpack.c.h.b16 %v418
    %v526 = vunpack.c.l.b16 %v419
    %v527 = vunpack.c.h.b16 %v419
    %v528 = vunpack.c.l.b16 %v420
    %v529 = vunpack.c.h.b16 %v420
    %v530 = vunpack.c.l.b16 %v421
    %v531 = vunpack.c.h.b16 %v421
    %v532 = vunpack.c.l.b16 %v422
    %v533 = vunpack.c.h.b16 %v422
    %v534 = vunpack.c.l.b16 %v423
    %v535 = vunpack.c.h.b16 %v423
    %v536 = vunpack.c.l.b16 %v424
    %v537 = vunpack.c.h.b16 %v424
    %v538 = vunpack.c.l.b16 %v425
    %v539 = vunpack.c.h.b16 %v425
    %v540 = vunpack.c.l.b16 %v426
    %v541 = vunpack.c.h.b16 %v426
    %v542 = vunpack.c.l.b16 %v427
    %v543 = vunpack.c.h.b16 %v427
    %v544 = vunpack.c.l.b16 %v428
    %v545 = vunpack.c.h.b16 %v428
    %v546 = vunpack.c.l.b16 %v429
    %v547 = vunpack.c.h.b16 %v429
    %v548 = vunpack.c.l.b16 %v430
    %v549 = vunpack.c.h.b16 %v430
    %v550 = vunpack.c.l.b16 %v431
    %v551 = vunpack.c.h.b16 %v431
    %v552 = vunpack.c.l.b16 %v432
    %v553 = vunpack.c.h.b16 %v432
    %v554 = vunpack.c.l.b16 %v433
    %v555 = vunpack.c.h.b16 %v433
    %v556 = vunpack.c.l.b16 %v434
    %v557 = vunpack.c.h.b16 %v434
    %v558 = vunpack.c.l.b16 %v435
    %v559 = vunpack.c.h.b16 %v435
    %v560 = vunpack.c.l.b16 %v436
    %v561 = vunpack.c.h.b16 %v436
    %v562 = vunpack.c.l.b16 %v437
    %v563 = vunpack.c.h.b16 %v437
    %v564 = vunpack.c.l.b16 %v438
    %v565 = vunpack.c.h.b16 %v438
    %v566 = vunpack.c.l.b16 %v439
    %v567 = vunpack.c.h.b16 %v439
    %v568 = vunpack.c.l.b16 %v440
    %v569 = vunpack.c.h.b16 %v440
    %v570 = vunpack.c.l.b16 %v441
    %v571 = vunpack.c.h.b16 %v441
    %v572 = vunpack.c.l.b16 %v442
    %v573 = vunpack.c.h.b16 %v442
    %v574 = vunpack.c.l.b16 %v443
    %v575 = vunpack.c.h.b16 %v443
    %v576 = vunpack.c.l.b16 %v444
    %v577 = vunpack.c.h.b16 %v444
    %v578 = vunpack.c.l.b16 %v445
    %v579 = vunpack.c.h.b16 %v445
    %v580 = vunpack.c.l.b16 %v446
    %v581 = vunpack.c.h.b16 %v446
    %v582 = vunpack.c.l.b16 %v447
    %v583 = vunpack.c.h.b16 %v447
    %v584 = vunpack.c.l.b16 %v448
    %v585 = vunpack.c.h.b16 %v448
    %v586 = vunpack.c.l.b16 %v449
    %v587 = vunpack.c.h.b16 %v449
    %v588 = vunpack.c.l.b16 %v450
    %v589 = vunpack.c.h.b16 %v450
    %v590 = vunpack.c.l.b16 %v451
    %v591 = vunpack.c.h.b16 %v451
    %v592 = vunpack.c.l.b16 %v452
    %v593 = vunpack.c.h.b16 %v452
    %v594 = vunpack.c.l.b16 %v453
    %v595 = vunpack.c.h.b16 %v453
    %v596 = vunpack.c.l.b16 %v454
    %v597 = vunpack.c.h.b16 %v454
    %v598 = vunpack.c.l.b16 %v455
    %v599 = vunpack.c.h.b16 %v455
    %v600 = vpack.c.b16 %v506, %v504
    %v601 = vpack.c.b16 %v507, %v505
    %v602 = vpack.c.b16 %v510, %v508
    %v603 = vpack.c.b16 %v511, %v509
    %v604 = vpack.c.b16 %v514, %v512
    %v605 = vpack.c.b16 %v515, %v513
    %v606 = vpack.c.b16 %v518, %v516
    %v607 = vpack.c.b16 %v519, %v517
    %v608 = vpack.c.b16 %v522, %v520
    %v609 = vpack.c.b16 %v523, %v521
    %v610 = vpack.c.b16 %v526, %v524
    %v611 = vpack.c.b16 %v527, %v525
    %v612 = vpack.c.b16 %v530, %v528
    %v613 = vpack.c.b16 %v531, %v529
    %v614 = vpack.c.b16 %v534, %v532
    %v615 = vpack.c.b16 %v535, %v533
    %v616 = vpack.c.b16 %v538, %v536
    %v617 = vpack.c.b16 %v539, %v537
    %v618 = vpack.c.b16 %v542, %v540
    %v619 = vpack.c.b16 %v543, %v541
    %v620 = vpack.c.b16 %v546, %v544
    %v621 = vpack.c.b16 %v547, %v545
    %v622 = vpack.c.b16 %v550, %v548
    %v623 = vpack.c.b16 %v551, %v549
    %v624 = vpack.c.b16 %v554, %v552
    %v625 = vpack.c.b16 %v555, %v553
    %v626 = vpack.c.b16 %v558, %v556
    %v627 = vpack.c.b16 %v559, %v557
    %v628 = vpack.c.b16 %v562, %v560
    %v629 = vpack.c.b16 %v563, %v561
    %v630 = vpack.c.b16 %v566, %v564
    %v631 = vpack.c.b16 %v567, %v565
    %v632 = vpack.c.b16 %v570, %v568
    %v633 = vpack.c.b16 %v571, %v569
    %v634 = vpack.c.b16 %v574, %v572
    %v635 = vpack.c.b16 %v575, %v573
    %v636 = vpack.c.b16 %v578, %v576
    %v637 = vpack.c.b16 %v579, %v577
    %v638 = vpack.c.b16 %v582, %v580
    %v639 = vpack.c.b16 %v583, %v581
    %v640 = vpack.c.b16 %v586, %v584
    %v641 = vpack.c.b16 %v587, %v585
    %v642 = vpack.c.b16 %v590, %v588
    %v643 = vpack.c.b16 %v591, %v589
    %v644 = vpack.c.b16 %v594, %v592
    %v645 = vpack.c.b16 %v595, %v593
    %v646 = vpack.c.b16 %v598, %v596
    %v647 = vpack.c.b16 %v599, %v597
    %696 = vmatprep.subr.bf16.mxu0 %v601
    %697 = vmatpush1.bf16.msra.mxu0 %v600
    %698 = vmatprep.subr.bf16.mxu0 %v603
    %699 = vmatpush1.bf16.msra.mxu0 %v602
    %700 = vmatprep.subr.bf16.mxu0 %v605
    %701 = vmatpush1.bf16.msra.mxu0 %v604
    %702 = vmatprep.subr.bf16.mxu0 %v607
    %703 = vmatpush1.bf16.msra.mxu0 %v606
    %704 = vmatprep.subr.bf16.mxu0 %v609
    %705 = vmatpush1.bf16.msra.mxu0 %v608
    %706 = vmatprep.subr.bf16.mxu0 %v611
    %707 = vmatpush1.bf16.msra.mxu0 %v610
    %708 = vmatprep.subr.bf16.mxu0 %v613
    %709 = vmatpush1.bf16.msra.mxu0 %v612
    %710 = vmatprep.subr.bf16.mxu0 %v615
    %711 = vmatpush1.bf16.msra.mxu0 %v614
    %712 = vmatprep.subr.bf16.mxu0 %v617
    %713 = vmatpush1.bf16.msra.mxu0 %v616
    %714 = vmatprep.subr.bf16.mxu0 %v619
    %715 = vmatpush1.bf16.msra.mxu0 %v618
    %716 = vmatprep.subr.bf16.mxu0 %v621
    %717 = vmatpush1.bf16.msra.mxu0 %v620
    %718 = vmatprep.subr.bf16.mxu0 %v623
    %719 = vmatpush1.bf16.msra.mxu0 %v622
    %720 = vmatprep.subr.bf16.mxu0 %v625
    %721 = vmatpush1.bf16.msra.mxu0 %v624
    %722 = vmatprep.subr.bf16.mxu0 %v627
    %723 = vmatpush1.bf16.msra.mxu0 %v626
    %724 = vmatprep.subr.bf16.mxu0 %v629
    %725 = vmatpush1.bf16.msra.mxu0 %v628
    %726 = vmatprep.subr.bf16.mxu0 %v631
    %727 = vmatpush1.bf16.msra.mxu0 %v630
    %728 = vmatprep.mubr.bf16.mxu0 %v402
    %729 = vmatmul.mubr.bf16.gmra.mrb[0].mxu0 %v401
    %v730 = vpop.f32.mrb[0].mxu0
    %v731 = vadd.f32 0.0, %v730
    %v732 = vpop.f32.mrb[0].mxu0
    %v733 = vadd.f32 0.0, %v732
    %v734 = vpop.f32.mrb[0].mxu0
    %v735 = vadd.f32 0.0, %v734
    %v736 = vpop.f32.mrb[0].mxu0
    %v737 = vadd.f32 0.0, %v736
    %738 = vmatprep.mubr.bf16.mxu0 %v405
    %739 = vmatmul.mubr.bf16.gmra.mrb[0].mxu0 %v404
    %v740 = vpop.f32.mrb[0].mxu0
    %v741 = vadd.f32 0.0, %v740
    %v742 = vpop.f32.mrb[0].mxu0
    %v743 = vadd.f32 0.0, %v742
    %v744 = vpop.f32.mrb[0].mxu0
    %v745 = vadd.f32 0.0, %v744
    %v746 = vpop.f32.mrb[0].mxu0
    %v747 = vadd.f32 0.0, %v746
    %748 = vdwg.mxu0
    %749 = vmatprep.subr.bf16.mxu0 %v633
    %750 = vmatpush1.bf16.msra.mxu0 %v632
    %751 = vmatprep.subr.bf16.mxu0 %v635
    %752 = vmatpush1.bf16.msra.mxu0 %v634
    %753 = vmatprep.subr.bf16.mxu0 %v637
    %754 = vmatpush1.bf16.msra.mxu0 %v636
    %755 = vmatprep.subr.bf16.mxu0 %v639
    %756 = vmatpush1.bf16.msra.mxu0 %v638
    %757 = vmatprep.subr.bf16.mxu0 %v641
    %758 = vmatpush1.bf16.msra.mxu0 %v640
    %759 = vmatprep.subr.bf16.mxu0 %v643
    %760 = vmatpush1.bf16.msra.mxu0 %v642
    %761 = vmatprep.subr.bf16.mxu0 %v645
    %762 = vmatpush1.bf16.msra.mxu0 %v644
    %763 = vmatprep.subr.bf16.mxu0 %v647
    %764 = vmatpush1.bf16.msra.mxu0 %v646
    %765 = vmatprep.subr.bf16.mxu0 0
    %766 = vmatpush1.bf16.msra.mxu0 0
    %767 = vmatprep.subr.bf16.mxu0 0
    %768 = vmatpush1.bf16.msra.mxu0 0
    %769 = vmatprep.subr.bf16.mxu0 0
    %770 = vmatpush1.bf16.msra.mxu0 0
    %771 = vmatprep.subr.bf16.mxu0 0
    %772 = vmatpush1.bf16.msra.mxu0 0
    %773 = vmatprep.subr.bf16.mxu0 0
    %774 = vmatpush1.bf16.msra.mxu0 0
    %775 = vmatprep.subr.bf16.mxu0 0
    %776 = vmatpush1.bf16.msra.mxu0 0
    %777 = vmatprep.subr.bf16.mxu0 0
    %778 = vmatpush1.bf16.msra.mxu0 0
    %779 = vmatprep.subr.bf16.mxu0 0
    %780 = vmatpush1.bf16.msra.mxu0 0
    %781 = vmatprep.mubr.bf16.mxu0 0
    %782 = vmatmul.mubr.bf16.gmra.mrb[0].mxu0 %v403
    %v783 = vpop.f32.mrb[0].mxu0
    %v784 = vadd.f32 %v731, %v783
    %v785 = vpop.f32.mrb[0].mxu0
    %v786 = vadd.f32 %v733, %v785
    %v787 = vpop.f32.mrb[0].mxu0
    %v788 = vadd.f32 %v735, %v787
    %v789 = vpop.f32.mrb[0].mxu0
    %v790 = vadd.f32 %v737, %v789
    %791 = vmatprep.mubr.bf16.mxu0 0
    %792 = vmatmul.mubr.bf16.gmra.mrb[0].mxu0 %v406
    %v793 = vpop.f32.mrb[0].mxu0
    %v794 = vadd.f32 %v741, %v793
    %v795 = vpop.f32.mrb[0].mxu0
    %v796 = vadd.f32 %v743, %v795
    %v797 = vpop.f32.mrb[0].mxu0
    %v798 = vadd.f32 %v745, %v797
    %v799 = vpop.f32.mrb[0].mxu0
    %v800 = vadd.f32 %v747, %v799
    %801 = vdwg.mxu0
    %v850 = vunpack.c.l.b16 %v282
    %v851 = vunpack.c.h.b16 %v282
    %v852 = vunpack.c.l.b16 %v283
    %v853 = vunpack.c.h.b16 %v283
    %v854 = vunpack.c.l.b16 %v284
    %v855 = vunpack.c.h.b16 %v284
    %v856 = vunpack.c.l.b16 %v285
    %v857 = vunpack.c.h.b16 %v285
    %v858 = vunpack.c.l.b16 %v286
    %v859 = vunpack.c.h.b16 %v286
    %v860 = vunpack.c.l.b16 %v287
    %v861 = vunpack.c.h.b16 %v287
    %v862 = vunpack.c.l.b16 %v288
    %v863 = vunpack.c.h.b16 %v288
    %v864 = vunpack.c.l.b16 %v289
    %v865 = vunpack.c.h.b16 %v289
    %v866 = vunpack.c.l.b16 %v290
    %v867 = vunpack.c.h.b16 %v290
    %v868 = vunpack.c.l.b16 %v291
    %v869 = vunpack.c.h.b16 %v291
    %v870 = vunpack.c.l.b16 %v292
    %v871 = vunpack.c.h.b16 %v292
    %v872 = vunpack.c.l.b16 %v293
    %v873 = vunpack.c.h.b16 %v293
    %v874 = vunpack.c.l.b16 %v294
    %v875 = vunpack.c.h.b16 %v294
    %v876 = vunpack.c.l.b16 %v295
    %v877 = vunpack.c.h.b16 %v295
    %v878 = vunpack.c.l.b16 %v296
    %v879 = vunpack.c.h.b16 %v296
    %v880 = vunpack.c.l.b16 %v297
    %v881 = vunpack.c.h.b16 %v297
    %v882 = vunpack.c.l.b16 %v298
    %v883 = vunpack.c.h.b16 %v298
    %v884 = vunpack.c.l.b16 %v299
    %v885 = vunpack.c.h.b16 %v299
    %v886 = vunpack.c.l.b16 %v300
    %v887 = vunpack.c.h.b16 %v300
    %v888 = vunpack.c.l.b16 %v301
    %v889 = vunpack.c.h.b16 %v301
    %v890 = vunpack.c.l.b16 %v302
    %v891 = vunpack.c.h.b16 %v302
    %v892 = vunpack.c.l.b16 %v303
    %v893 = vunpack.c.h.b16 %v303
    %v894 = vunpack.c.l.b16 %v304
    %v895 = vunpack.c.h.b16 %v304
    %v896 = vunpack.c.l.b16 %v305
    %v897 = vunpack.c.h.b16 %v305
    %v898 = vunpack.c.l.b16 %v306
    %v899 = vunpack.c.h.b16 %v306
    %v900 = vunpack.c.l.b16 %v307
    %v901 = vunpack.c.h.b16 %v307
    %v902 = vunpack.c.l.b16 %v308
    %v903 = vunpack.c.h.b16 %v308
    %v904 = vunpack.c.l.b16 %v309
    %v905 = vunpack.c.h.b16 %v309
    %v906 = vunpack.c.l.b16 %v310
    %v907 = vunpack.c.h.b16 %v310
    %v908 = vunpack.c.l.b16 %v311
    %v909 = vunpack.c.h.b16 %v311
    %v910 = vunpack.c.l.b16 %v312
    %v911 = vunpack.c.h.b16 %v312
    %v912 = vunpack.c.l.b16 %v313
    %v913 = vunpack.c.h.b16 %v313
    %v914 = vunpack.c.l.b16 %v314
    %v915 = vunpack.c.h.b16 %v314
    %v916 = vunpack.c.l.b16 %v315
    %v917 = vunpack.c.h.b16 %v315
    %v918 = vunpack.c.l.b16 %v316
    %v919 = vunpack.c.h.b16 %v316
    %v920 = vunpack.c.l.b16 %v317
    %v921 = vunpack.c.h.b16 %v317
    %v922 = vunpack.c.l.b16 %v318
    %v923 = vunpack.c.h.b16 %v318
    %v924 = vunpack.c.l.b16 %v319
    %v925 = vunpack.c.h.b16 %v319
    %v926 = vunpack.c.l.b16 %v320
    %v927 = vunpack.c.h.b16 %v320
    %v928 = vunpack.c.l.b16 %v321
    %v929 = vunpack.c.h.b16 %v321
    %v930 = vunpack.c.l.b16 %v322
    %v931 = vunpack.c.h.b16 %v322
    %v932 = vunpack.c.l.b16 %v323
    %v933 = vunpack.c.h.b16 %v323
    %v934 = vunpack.c.l.b16 %v324
    %v935 = vunpack.c.h.b16 %v324
    %v936 = vunpack.c.l.b16 %v325
    %v937 = vunpack.c.h.b16 %v325
    %v938 = vunpack.c.l.b16 %v326
    %v939 = vunpack.c.h.b16 %v326
    %v940 = vunpack.c.l.b16 %v327
    %v941 = vunpack.c.h.b16 %v327
    %v942 = vunpack.c.l.b16 %v328
    %v943 = vunpack.c.h.b16 %v328
    %v944 = vunpack.c.l.b16 %v329
    %v945 = vunpack.c.h.b16 %v329
    %v946 = vpack.c.b16 %v852, %v850
    %v947 = vpack.c.b16 %v853, %v851
    %v948 = vpack.c.b16 %v856, %v854
    %v949 = vpack.c.b16 %v857, %v855
    %v950 = vpack.c.b16 %v860, %v858
    %v951 = vpack.c.b16 %v861, %v859
    %v952 = vpack.c.b16 %v864, %v862
    %v953 = vpack.c.b16 %v865, %v863
    %v954 = vpack.c.b16 %v868, %v866
    %v955 = vpack.c.b16 %v869, %v867
    %v956 = vpack.c.b16 %v872, %v870
    %v957 = vpack.c.b16 %v873, %v871
    %v958 = vpack.c.b16 %v876, %v874
    %v959 = vpack.c.b16 %v877, %v875
    %v960 = vpack.c.b16 %v880, %v878
    %v961 = vpack.c.b16 %v881, %v879
    %v962 = vpack.c.b16 %v884, %v882
    %v963 = vpack.c.b16 %v885, %v883
    %v964 = vpack.c.b16 %v888, %v886
    %v965 = vpack.c.b16 %v889, %v887
    %v966 = vpack.c.b16 %v892, %v890
    %v967 = vpack.c.b16 %v893, %v891
    %v968 = vpack.c.b16 %v896, %v894
    %v969 = vpack.c.b16 %v897, %v895
    %v970 = vpack.c.b16 %v900, %v898
    %v971 = vpack.c.b16 %v901, %v899
    %v972 = vpack.c.b16 %v904, %v902
    %v973 = vpack.c.b16 %v905, %v903
    %v974 = vpack.c.b16 %v908, %v906
    %v975 = vpack.c.b16 %v909, %v907
    %v976 = vpack.c.b16 %v912, %v910
    %v977 = vpack.c.b16 %v913, %v911
    %v978 = vpack.c.b16 %v916, %v914
    %v979 = vpack.c.b16 %v917, %v915
    %v980 = vpack.c.b16 %v920, %v918
    %v981 = vpack.c.b16 %v921, %v919
    %v982 = vpack.c.b16 %v924, %v922
    %v983 = vpack.c.b16 %v925, %v923
    %v984 = vpack.c.b16 %v928, %v926
    %v985 = vpack.c.b16 %v929, %v927
    %v986 = vpack.c.b16 %v932, %v930
    %v987 = vpack.c.b16 %v933, %v931
    %v988 = vpack.c.b16 %v936, %v934
    %v989 = vpack.c.b16 %v937, %v935
    %v990 = vpack.c.b16 %v940, %v938
    %v991 = vpack.c.b16 %v941, %v939
    %v992 = vpack.c.b16 %v944, %v942
    %v993 = vpack.c.b16 %v945, %v943
    %1042 = vmatprep.subr.bf16.mxu0 %v947
    %1043 = vmatpush1.bf16.msra.mxu0 %v946
    %1044 = vmatprep.subr.bf16.mxu0 %v949
    %1045 = vmatpush1.bf16.msra.mxu0 %v948
    %1046 = vmatprep.subr.bf16.mxu0 %v951
    %1047 = vmatpush1.bf16.msra.mxu0 %v950
    %1048 = vmatprep.subr.bf16.mxu0 %v953
    %1049 = vmatpush1.bf16.msra.mxu0 %v952
    %1050 = vmatprep.subr.bf16.mxu0 %v955
    %1051 = vmatpush1.bf16.msra.mxu0 %v954
    %1052 = vmatprep.subr.bf16.mxu0 %v957
    %1053 = vmatpush1.bf16.msra.mxu0 %v956
    %1054 = vmatprep.subr.bf16.mxu0 %v959
    %1055 = vmatpush1.bf16.msra.mxu0 %v958
    %1056 = vmatprep.subr.bf16.mxu0 %v961
    %1057 = vmatpush1.bf16.msra.mxu0 %v960
    %1058 = vmatprep.subr.bf16.mxu0 %v963
    %1059 = vmatpush1.bf16.msra.mxu0 %v962
    %1060 = vmatprep.subr.bf16.mxu0 %v965
    %1061 = vmatpush1.bf16.msra.mxu0 %v964
    %1062 = vmatprep.subr.bf16.mxu0 %v967
    %1063 = vmatpush1.bf16.msra.mxu0 %v966
    %1064 = vmatprep.subr.bf16.mxu0 %v969
    %1065 = vmatpush1.bf16.msra.mxu0 %v968
    %1066 = vmatprep.subr.bf16.mxu0 %v971
    %1067 = vmatpush1.bf16.msra.mxu0 %v970
    %1068 = vmatprep.subr.bf16.mxu0 %v973
    %1069 = vmatpush1.bf16.msra.mxu0 %v972
    %1070 = vmatprep.subr.bf16.mxu0 %v975
    %1071 = vmatpush1.bf16.msra.mxu0 %v974
    %1072 = vmatprep.subr.bf16.mxu0 %v977
    %1073 = vmatpush1.bf16.msra.mxu0 %v976
    %1074 = vmatprep.mubr.bf16.mxu0 %v277
    %1075 = vmatmul.mubr.bf16.gmra.mrb[0].mxu0 %v276
    %v1076 = vpop.f32.mrb[0].mxu0
    %v1077 = vadd.f32 %v784, %v1076
    %v1078 = vpop.f32.mrb[0].mxu0
    %v1079 = vadd.f32 %v786, %v1078
    %v1080 = vpop.f32.mrb[0].mxu0
    %v1081 = vadd.f32 %v788, %v1080
    %v1082 = vpop.f32.mrb[0].mxu0
    %v1083 = vadd.f32 %v790, %v1082
    %1084 = vmatprep.mubr.bf16.mxu0 %v280
    %1085 = vmatmul.mubr.bf16.gmra.mrb[0].mxu0 %v279
    %v1086 = vpop.f32.mrb[0].mxu0
    %v1087 = vadd.f32 %v794, %v1086
    %v1088 = vpop.f32.mrb[0].mxu0
    %v1089 = vadd.f32 %v796, %v1088
    %v1090 = vpop.f32.mrb[0].mxu0
    %v1091 = vadd.f32 %v798, %v1090
    %v1092 = vpop.f32.mrb[0].mxu0
    %v1093 = vadd.f32 %v800, %v1092
    %1094 = vdwg.mxu0
    %1095 = vmatprep.subr.bf16.mxu0 %v979
    %1096 = vmatpush1.bf16.msra.mxu0 %v978
    %1097 = vmatprep.subr.bf16.mxu0 %v981
    %1098 = vmatpush1.bf16.msra.mxu0 %v980
    %1099 = vmatprep.subr.bf16.mxu0 %v983
    %1100 = vmatpush1.bf16.msra.mxu0 %v982
    %1101 = vmatprep.subr.bf16.mxu0 %v985
    %1102 = vmatpush1.bf16.msra.mxu0 %v984
    %1103 = vmatprep.subr.bf16.mxu0 %v987
    %1104 = vmatpush1.bf16.msra.mxu0 %v986
    %1105 = vmatprep.subr.bf16.mxu0 %v989
    %1106 = vmatpush1.bf16.msra.mxu0 %v988
    %1107 = vmatprep.subr.bf16.mxu0 %v991
    %1108 = vmatpush1.bf16.msra.mxu0 %v990
    %1109 = vmatprep.subr.bf16.mxu0 %v993
    %1110 = vmatpush1.bf16.msra.mxu0 %v992
    %1111 = vmatprep.subr.bf16.mxu0 0
    %1112 = vmatpush1.bf16.msra.mxu0 0
    %1113 = vmatprep.subr.bf16.mxu0 0
    %1114 = vmatpush1.bf16.msra.mxu0 0
    %1115 = vmatprep.subr.bf16.mxu0 0
    %1116 = vmatpush1.bf16.msra.mxu0 0
    %1117 = vmatprep.subr.bf16.mxu0 0
    %1118 = vmatpush1.bf16.msra.mxu0 0
    %1119 = vmatprep.subr.bf16.mxu0 0
    %1120 = vmatpush1.bf16.msra.mxu0 0
    %1121 = vmatprep.subr.bf16.mxu0 0
    %1122 = vmatpush1.bf16.msra.mxu0 0
    %1123 = vmatprep.subr.bf16.mxu0 0
    %1124 = vmatpush1.bf16.msra.mxu0 0
    %1125 = vmatprep.subr.bf16.mxu0 0
    %1126 = vmatpush1.bf16.msra.mxu0 0
    %1127 = vmatprep.mubr.bf16.mxu0 0
    %1128 = vmatmul.mubr.bf16.gmra.mrb[0].mxu0 %v278
    %v1129 = vpop.f32.mrb[0].mxu0
    %v1130 = vadd.f32 %v1077, %v1129
    %v1131 = vpop.f32.mrb[0].mxu0
    %v1132 = vadd.f32 %v1079, %v1131
    %v1133 = vpop.f32.mrb[0].mxu0
    %v1134 = vadd.f32 %v1081, %v1133
    %v1135 = vpop.f32.mrb[0].mxu0
    %v1136 = vadd.f32 %v1083, %v1135
    %1137 = vmatprep.mubr.bf16.mxu0 0
    %1138 = vmatmul.mubr.bf16.gmra.mrb[0].mxu0 %v281
    %v1139 = vpop.f32.mrb[0].mxu0
    %v1140 = vadd.f32 %v1087, %v1139
    %v1141 = vpop.f32.mrb[0].mxu0
    %v1142 = vadd.f32 %v1089, %v1141
    %v1143 = vpop.f32.mrb[0].mxu0
    %v1144 = vadd.f32 %v1091, %v1143
    %v1145 = vpop.f32.mrb[0].mxu0
    %v1146 = vadd.f32 %v1093, %v1145
    %1147 = vdwg.mxu0
    %v1148 = vld [vmem:[#allocation2] sm:$0xfc]
    %v1149 = vld [vmem:[#allocation2 + $0x8] sm:$0xfc]
    %v1150 = vld [vmem:[#allocation2 + $0x10] sm:$0xfc]
    %v1151 = vld [vmem:[#allocation2 + $0x30] sm:$0x3]
    %v1152 = vld [vmem:[#allocation2 + $0x38] sm:$0x3]
    %v1153 = vld [vmem:[#allocation2 + $0x40] sm:$0x3]
    %v1154 = vld [vmem:[#allocation2 + $0x30] sm:$0xf0]
    %v1155 = vld [vmem:[#allocation2 + $0x38] sm:$0xf0]
    %v1156 = vld [vmem:[#allocation2 + $0x40] sm:$0xf0]
    %v1157 = vld [vmem:[#allocation2 + $0x60] sm:$0xf]
    %v1158 = vld [vmem:[#allocation2 + $0x68] sm:$0xf]
    %v1159 = vld [vmem:[#allocation2 + $0x70] sm:$0xf]
    %v1166 = vrot.slane %v1148, 2
    %v1167 = vrot.slane %v233, 2
    %v1168 = vsel %vm254, %v1166, %v1167
    %v1169 = vrot.slane %v1149, 2
    %v1170 = vrot.slane %v234, 2
    %v1171 = vsel %vm254, %v1169, %v1170
    %v1172 = vrot.slane %v1150, 2
    %v1173 = vrot.slane %v235, 2
    %v1174 = vsel %vm254, %v1172, %v1173
    %v1175 = vrot.slane %v1151, 2
    %v1176 = vsel %vm254, %v1167, %v1175
    %v1177 = vrot.slane %v1152, 2
    %v1178 = vsel %vm254, %v1170, %v1177
    %v1179 = vrot.slane %v1153, 2
    %v1180 = vsel %vm254, %v1173, %v1179
    %vm1193 = vcmask 1043456
    %v1194 = vrot.slane %v1154, 4
    %v1195 = vrot.slane %v239, 4
    %v1196 = vsel %vm1193, %v1194, %v1195
    %v1197 = vrot.slane %v1155, 4
    %v1198 = vrot.slane %v240, 4
    %v1199 = vsel %vm1193, %v1197, %v1198
    %v1200 = vrot.slane %v1156, 4
    %v1201 = vrot.slane %v241, 4
    %v1202 = vsel %vm1193, %v1200, %v1201
    %v1203 = vrot.slane %v1157, 4
    %v1204 = vsel %vm1193, %v1195, %v1203
    %v1205 = vrot.slane %v1158, 4
    %v1206 = vsel %vm1193, %v1198, %v1205
    %v1207 = vrot.slane %v1159, 4
    %v1208 = vsel %vm1193, %v1201, %v1207
    %v1215 = vpack.c.bf16 %v1176, %v1168
    %v1216 = vpack.c.bf16 %v1178, %v1171
    %v1217 = vpack.c.bf16 %v1180, %v1174
    %v1218 = vpack.c.bf16 %v1204, %v1196
    %v1219 = vpack.c.bf16 %v1206, %v1199
    %v1220 = vpack.c.bf16 %v1208, %v1202
    %s1221 = scalar_lea.vmem [#allocation3], 768
    %v1222 = vld [vmem:[%s1221] sm:$0xff]
    %v1223 = vld [vmem:[%s1221 + $0x8] sm:$0xff]
    %v1224 = vld [vmem:[%s1221 + $0x10] sm:$0xff]
    %v1225 = vld [vmem:[%s1221 + $0x18] sm:$0xff]
    %v1226 = vld [vmem:[%s1221 + $0x20] sm:$0xff]
    %v1227 = vld [vmem:[%s1221 + $0x28] sm:$0xff]
    %v1228 = vld [vmem:[%s1221 + $0x30] sm:$0xff]
    %v1229 = vld [vmem:[%s1221 + $0x38] sm:$0xff]
    %v1230 = vld [vmem:[%s1221 + $0x40] sm:$0xff]
    %v1231 = vld [vmem:[%s1221 + $0x48] sm:$0xff]
    %v1232 = vld [vmem:[%s1221 + $0x50] sm:$0xff]
    %v1233 = vld [vmem:[%s1221 + $0x58] sm:$0xff]
    %v1234 = vld [vmem:[%s1221 + $0x60] sm:$0xff]
    %v1235 = vld [vmem:[%s1221 + $0x68] sm:$0xff]
    %v1236 = vld [vmem:[%s1221 + $0x70] sm:$0xff]
    %v1237 = vld [vmem:[%s1221 + $0x78] sm:$0xff]
    %v1238 = vld [vmem:[%s1221 + $0x80] sm:$0xff]
    %v1239 = vld [vmem:[%s1221 + $0x88] sm:$0xff]
    %v1240 = vld [vmem:[%s1221 + $0x90] sm:$0xff]
    %v1241 = vld [vmem:[%s1221 + $0x98] sm:$0xff]
    %v1242 = vld [vmem:[%s1221 + $0xa0] sm:$0xff]
    %v1243 = vld [vmem:[%s1221 + $0xa8] sm:$0xff]
    %v1244 = vld [vmem:[%s1221 + $0xb0] sm:$0xff]
    %v1245 = vld [vmem:[%s1221 + $0xb8] sm:$0xff]
    %v1246 = vld [vmem:[%s1221 + $0xc0] sm:$0xff]
    %v1247 = vld [vmem:[%s1221 + $0xc8] sm:$0xff]
    %v1248 = vld [vmem:[%s1221 + $0xd0] sm:$0xff]
    %v1249 = vld [vmem:[%s1221 + $0xd8] sm:$0xff]
    %v1250 = vld [vmem:[%s1221 + $0xe0] sm:$0xff]
    %v1251 = vld [vmem:[%s1221 + $0xe8] sm:$0xff]
    %v1252 = vld [vmem:[%s1221 + $0xf0] sm:$0xff]
    %v1253 = vld [vmem:[%s1221 + $0xf8] sm:$0xff]
    %v1254 = vld [vmem:[%s1221 + $0x100] sm:$0xff]
    %v1255 = vld [vmem:[%s1221 + $0x108] sm:$0xff]
    %v1256 = vld [vmem:[%s1221 + $0x110] sm:$0xff]
    %v1257 = vld [vmem:[%s1221 + $0x118] sm:$0xff]
    %v1258 = vld [vmem:[%s1221 + $0x120] sm:$0xff]
    %v1259 = vld [vmem:[%s1221 + $0x128] sm:$0xff]
    %v1260 = vld [vmem:[%s1221 + $0x130] sm:$0xff]
    %v1261 = vld [vmem:[%s1221 + $0x138] sm:$0xff]
    %v1262 = vld [vmem:[%s1221 + $0x140] sm:$0xff]
    %v1263 = vld [vmem:[%s1221 + $0x148] sm:$0xff]
    %v1264 = vld [vmem:[%s1221 + $0x150] sm:$0xff]
    %v1265 = vld [vmem:[%s1221 + $0x158] sm:$0xff]
    %v1266 = vld [vmem:[%s1221 + $0x160] sm:$0xff]
    %v1267 = vld [vmem:[%s1221 + $0x168] sm:$0xff]
    %v1268 = vld [vmem:[%s1221 + $0x170] sm:$0xff]
    %v1269 = vld [vmem:[%s1221 + $0x178] sm:$0xff]
    %v1318 = vunpack.c.l.b16 %v1222
    %v1319 = vunpack.c.h.b16 %v1222
    %v1320 = vunpack.c.l.b16 %v1223
    %v1321 = vunpack.c.h.b16 %v1223
    %v1322 = vunpack.c.l.b16 %v1224
    %v1323 = vunpack.c.h.b16 %v1224
    %v1324 = vunpack.c.l.b16 %v1225
    %v1325 = vunpack.c.h.b16 %v1225
    %v1326 = vunpack.c.l.b16 %v1226
    %v1327 = vunpack.c.h.b16 %v1226
    %v1328 = vunpack.c.l.b16 %v1227
    %v1329 = vunpack.c.h.b16 %v1227
    %v1330 = vunpack.c.l.b16 %v1228
    %v1331 = vunpack.c.h.b16 %v1228
    %v1332 = vunpack.c.l.b16 %v1229
    %v1333 = vunpack.c.h.b16 %v1229
    %v1334 = vunpack.c.l.b16 %v1230
    %v1335 = vunpack.c.h.b16 %v1230
    %v1336 = vunpack.c.l.b16 %v1231
    %v1337 = vunpack.c.h.b16 %v1231
    %v1338 = vunpack.c.l.b16 %v1232
    %v1339 = vunpack.c.h.b16 %v1232
    %v1340 = vunpack.c.l.b16 %v1233
    %v1341 = vunpack.c.h.b16 %v1233
    %v1342 = vunpack.c.l.b16 %v1234
    %v1343 = vunpack.c.h.b16 %v1234
    %v1344 = vunpack.c.l.b16 %v1235
    %v1345 = vunpack.c.h.b16 %v1235
    %v1346 = vunpack.c.l.b16 %v1236
    %v1347 = vunpack.c.h.b16 %v1236
    %v1348 = vunpack.c.l.b16 %v1237
    %v1349 = vunpack.c.h.b16 %v1237
    %v1350 = vunpack.c.l.b16 %v1238
    %v1351 = vunpack.c.h.b16 %v1238
    %v1352 = vunpack.c.l.b16 %v1239
    %v1353 = vunpack.c.h.b16 %v1239
    %v1354 = vunpack.c.l.b16 %v1240
    %v1355 = vunpack.c.h.b16 %v1240
    %v1356 = vunpack.c.l.b16 %v1241
    %v1357 = vunpack.c.h.b16 %v1241
    %v1358 = vunpack.c.l.b16 %v1242
    %v1359 = vunpack.c.h.b16 %v1242
    %v1360 = vunpack.c.l.b16 %v1243
    %v1361 = vunpack.c.h.b16 %v1243
    %v1362 = vunpack.c.l.b16 %v1244
    %v1363 = vunpack.c.h.b16 %v1244
    %v1364 = vunpack.c.l.b16 %v1245
    %v1365 = vunpack.c.h.b16 %v1245
    %v1366 = vunpack.c.l.b16 %v1246
    %v1367 = vunpack.c.h.b16 %v1246
    %v1368 = vunpack.c.l.b16 %v1247
    %v1369 = vunpack.c.h.b16 %v1247
    %v1370 = vunpack.c.l.b16 %v1248
    %v1371 = vunpack.c.h.b16 %v1248
    %v1372 = vunpack.c.l.b16 %v1249
    %v1373 = vunpack.c.h.b16 %v1249
    %v1374 = vunpack.c.l.b16 %v1250
    %v1375 = vunpack.c.h.b16 %v1250
    %v1376 = vunpack.c.l.b16 %v1251
    %v1377 = vunpack.c.h.b16 %v1251
    %v1378 = vunpack.c.l.b16 %v1252
    %v1379 = vunpack.c.h.b16 %v1252
    %v1380 = vunpack.c.l.b16 %v1253
    %v1381 = vunpack.c.h.b16 %v1253
    %v1382 = vunpack.c.l.b16 %v1254
    %v1383 = vunpack.c.h.b16 %v1254
    %v1384 = vunpack.c.l.b16 %v1255
    %v1385 = vunpack.c.h.b16 %v1255
    %v1386 = vunpack.c.l.b16 %v1256
    %v1387 = vunpack.c.h.b16 %v1256
    %v1388 = vunpack.c.l.b16 %v1257
    %v1389 = vunpack.c.h.b16 %v1257
    %v1390 = vunpack.c.l.b16 %v1258
    %v1391 = vunpack.c.h.b16 %v1258
    %v1392 = vunpack.c.l.b16 %v1259
    %v1393 = vunpack.c.h.b16 %v1259
    %v1394 = vunpack.c.l.b16 %v1260
    %v1395 = vunpack.c.h.b16 %v1260
    %v1396 = vunpack.c.l.b16 %v1261
    %v1397 = vunpack.c.h.b16 %v1261
    %v1398 = vunpack.c.l.b16 %v1262
    %v1399 = vunpack.c.h.b16 %v1262
    %v1400 = vunpack.c.l.b16 %v1263
    %v1401 = vunpack.c.h.b16 %v1263
    %v1402 = vunpack.c.l.b16 %v1264
    %v1403 = vunpack.c.h.b16 %v1264
    %v1404 = vunpack.c.l.b16 %v1265
    %v1405 = vunpack.c.h.b16 %v1265
    %v1406 = vunpack.c.l.b16 %v1266
    %v1407 = vunpack.c.h.b16 %v1266
    %v1408 = vunpack.c.l.b16 %v1267
    %v1409 = vunpack.c.h.b16 %v1267
    %v1410 = vunpack.c.l.b16 %v1268
    %v1411 = vunpack.c.h.b16 %v1268
    %v1412 = vunpack.c.l.b16 %v1269
    %v1413 = vunpack.c.h.b16 %v1269
    %v1414 = vpack.c.b16 %v1320, %v1318
    %v1415 = vpack.c.b16 %v1321, %v1319
    %v1416 = vpack.c.b16 %v1324, %v1322
    %v1417 = vpack.c.b16 %v1325, %v1323
    %v1418 = vpack.c.b16 %v1328, %v1326
    %v1419 = vpack.c.b16 %v1329, %v1327
    %v1420 = vpack.c.b16 %v1332, %v1330
    %v1421 = vpack.c.b16 %v1333, %v1331
    %v1422 = vpack.c.b16 %v1336, %v1334
    %v1423 = vpack.c.b16 %v1337, %v1335
    %v1424 = vpack.c.b16 %v1340, %v1338
    %v1425 = vpack.c.b16 %v1341, %v1339
    %v1426 = vpack.c.b16 %v1344, %v1342
    %v1427 = vpack.c.b16 %v1345, %v1343
    %v1428 = vpack.c.b16 %v1348, %v1346
    %v1429 = vpack.c.b16 %v1349, %v1347
    %v1430 = vpack.c.b16 %v1352, %v1350
    %v1431 = vpack.c.b16 %v1353, %v1351
    %v1432 = vpack.c.b16 %v1356, %v1354
    %v1433 = vpack.c.b16 %v1357, %v1355
    %v1434 = vpack.c.b16 %v1360, %v1358
    %v1435 = vpack.c.b16 %v1361, %v1359
    %v1436 = vpack.c.b16 %v1364, %v1362
    %v1437 = vpack.c.b16 %v1365, %v1363
    %v1438 = vpack.c.b16 %v1368, %v1366
    %v1439 = vpack.c.b16 %v1369, %v1367
    %v1440 = vpack.c.b16 %v1372, %v1370
    %v1441 = vpack.c.b16 %v1373, %v1371
    %v1442 = vpack.c.b16 %v1376, %v1374
    %v1443 = vpack.c.b16 %v1377, %v1375
    %v1444 = vpack.c.b16 %v1380, %v1378
    %v1445 = vpack.c.b16 %v1381, %v1379
    %v1446 = vpack.c.b16 %v1384, %v1382
    %v1447 = vpack.c.b16 %v1385, %v1383
    %v1448 = vpack.c.b16 %v1388, %v1386
    %v1449 = vpack.c.b16 %v1389, %v1387
    %v1450 = vpack.c.b16 %v1392, %v1390
    %v1451 = vpack.c.b16 %v1393, %v1391
    %v1452 = vpack.c.b16 %v1396, %v1394
    %v1453 = vpack.c.b16 %v1397, %v1395
    %v1454 = vpack.c.b16 %v1400, %v1398
    %v1455 = vpack.c.b16 %v1401, %v1399
    %v1456 = vpack.c.b16 %v1404, %v1402
    %v1457 = vpack.c.b16 %v1405, %v1403
    %v1458 = vpack.c.b16 %v1408, %v1406
    %v1459 = vpack.c.b16 %v1409, %v1407
    %v1460 = vpack.c.b16 %v1412, %v1410
    %v1461 = vpack.c.b16 %v1413, %v1411
    %1510 = vmatprep.subr.bf16.mxu0 %v1415
    %1511 = vmatpush1.bf16.msra.mxu0 %v1414
    %1512 = vmatprep.subr.bf16.mxu0 %v1417
    %1513 = vmatpush1.bf16.msra.mxu0 %v1416
    %1514 = vmatprep.subr.bf16.mxu0 %v1419
    %1515 = vmatpush1.bf16.msra.mxu0 %v1418
    %1516 = vmatprep.subr.bf16.mxu0 %v1421
    %1517 = vmatpush1.bf16.msra.mxu0 %v1420
    %1518 = vmatprep.subr.bf16.mxu0 %v1423
    %1519 = vmatpush1.bf16.msra.mxu0 %v1422
    %1520 = vmatprep.subr.bf16.mxu0 %v1425
    %1521 = vmatpush1.bf16.msra.mxu0 %v1424
    %1522 = vmatprep.subr.bf16.mxu0 %v1427
    %1523 = vmatpush1.bf16.msra.mxu0 %v1426
    %1524 = vmatprep.subr.bf16.mxu0 %v1429
    %1525 = vmatpush1.bf16.msra.mxu0 %v1428
    %1526 = vmatprep.subr.bf16.mxu0 %v1431
    %1527 = vmatpush1.bf16.msra.mxu0 %v1430
    %1528 = vmatprep.subr.bf16.mxu0 %v1433
    %1529 = vmatpush1.bf16.msra.mxu0 %v1432
    %1530 = vmatprep.subr.bf16.mxu0 %v1435
    %1531 = vmatpush1.bf16.msra.mxu0 %v1434
    %1532 = vmatprep.subr.bf16.mxu0 %v1437
    %1533 = vmatpush1.bf16.msra.mxu0 %v1436
    %1534 = vmatprep.subr.bf16.mxu0 %v1439
    %1535 = vmatpush1.bf16.msra.mxu0 %v1438
    %1536 = vmatprep.subr.bf16.mxu0 %v1441
    %1537 = vmatpush1.bf16.msra.mxu0 %v1440
    %1538 = vmatprep.subr.bf16.mxu0 %v1443
    %1539 = vmatpush1.bf16.msra.mxu0 %v1442
    %1540 = vmatprep.subr.bf16.mxu0 %v1445
    %1541 = vmatpush1.bf16.msra.mxu0 %v1444
    %1542 = vmatprep.mubr.bf16.mxu0 %v1216
    %1543 = vmatmul.mubr.bf16.gmra.mrb[0].mxu0 %v1215
    %v1544 = vpop.f32.mrb[0].mxu0
    %v1545 = vadd.f32 0.0, %v1544
    %v1546 = vpop.f32.mrb[0].mxu0
    %v1547 = vadd.f32 0.0, %v1546
    %v1548 = vpop.f32.mrb[0].mxu0
    %v1549 = vadd.f32 0.0, %v1548
    %v1550 = vpop.f32.mrb[0].mxu0
    %v1551 = vadd.f32 0.0, %v1550
    %1552 = vmatprep.mubr.bf16.mxu0 %v1219
    %1553 = vmatmul.mubr.bf16.gmra.mrb[0].mxu0 %v1218
    %v1554 = vpop.f32.mrb[0].mxu0
    %v1555 = vadd.f32 0.0, %v1554
    %v1556 = vpop.f32.mrb[0].mxu0
    %v1557 = vadd.f32 0.0, %v1556
    %v1558 = vpop.f32.mrb[0].mxu0
    %v1559 = vadd.f32 0.0, %v1558
    %v1560 = vpop.f32.mrb[0].mxu0
    %v1561 = vadd.f32 0.0, %v1560
    %1562 = vdwg.mxu0
    %1563 = vmatprep.subr.bf16.mxu0 %v1447
    %1564 = vmatpush1.bf16.msra.mxu0 %v1446
    %1565 = vmatprep.subr.bf16.mxu0 %v1449
    %1566 = vmatpush1.bf16.msra.mxu0 %v1448
    %1567 = vmatprep.subr.bf16.mxu0 %v1451
    %1568 = vmatpush1.bf16.msra.mxu0 %v1450
    %1569 = vmatprep.subr.bf16.mxu0 %v1453
    %1570 = vmatpush1.bf16.msra.mxu0 %v1452
    %1571 = vmatprep.subr.bf16.mxu0 %v1455
    %1572 = vmatpush1.bf16.msra.mxu0 %v1454
    %1573 = vmatprep.subr.bf16.mxu0 %v1457
    %1574 = vmatpush1.bf16.msra.mxu0 %v1456
    %1575 = vmatprep.subr.bf16.mxu0 %v1459
    %1576 = vmatpush1.bf16.msra.mxu0 %v1458
    %1577 = vmatprep.subr.bf16.mxu0 %v1461
    %1578 = vmatpush1.bf16.msra.mxu0 %v1460
    %1579 = vmatprep.subr.bf16.mxu0 0
    %1580 = vmatpush1.bf16.msra.mxu0 0
    %1581 = vmatprep.subr.bf16.mxu0 0
    %1582 = vmatpush1.bf16.msra.mxu0 0
    %1583 = vmatprep.subr.bf16.mxu0 0
    %1584 = vmatpush1.bf16.msra.mxu0 0
    %1585 = vmatprep.subr.bf16.mxu0 0
    %1586 = vmatpush1.bf16.msra.mxu0 0
    %1587 = vmatprep.subr.bf16.mxu0 0
    %1588 = vmatpush1.bf16.msra.mxu0 0
    %1589 = vmatprep.subr.bf16.mxu0 0
    %1590 = vmatpush1.bf16.msra.mxu0 0
    %1591 = vmatprep.subr.bf16.mxu0 0
    %1592 = vmatpush1.bf16.msra.mxu0 0
    %1593 = vmatprep.subr.bf16.mxu0 0
    %1594 = vmatpush1.bf16.msra.mxu0 0
    %1595 = vmatprep.mubr.bf16.mxu0 0
    %1596 = vmatmul.mubr.bf16.gmra.mrb[0].mxu0 %v1217
    %v1597 = vpop.f32.mrb[0].mxu0
    %v1598 = vadd.f32 %v1545, %v1597
    %v1599 = vpop.f32.mrb[0].mxu0
    %v1600 = vadd.f32 %v1547, %v1599
    %v1601 = vpop.f32.mrb[0].mxu0
    %v1602 = vadd.f32 %v1549, %v1601
    %v1603 = vpop.f32.mrb[0].mxu0
    %v1604 = vadd.f32 %v1551, %v1603
    %1605 = vmatprep.mubr.bf16.mxu0 0
    %1606 = vmatmul.mubr.bf16.gmra.mrb[0].mxu0 %v1220
    %v1607 = vpop.f32.mrb[0].mxu0
    %v1608 = vadd.f32 %v1555, %v1607
    %v1609 = vpop.f32.mrb[0].mxu0
    %v1610 = vadd.f32 %v1557, %v1609
    %v1611 = vpop.f32.mrb[0].mxu0
    %v1612 = vadd.f32 %v1559, %v1611
    %v1613 = vpop.f32.mrb[0].mxu0
    %v1614 = vadd.f32 %v1561, %v1613
    %1615 = vdwg.mxu0
    %v1616 = vadd.f32 %v1130, %v1598
    %v1617 = vadd.f32 %v1132, %v1600
    %v1618 = vadd.f32 %v1134, %v1602
    %v1619 = vadd.f32 %v1136, %v1604
    %v1620 = vadd.f32 %v1140, %v1608
    %v1621 = vadd.f32 %v1142, %v1610
    %v1622 = vadd.f32 %v1144, %v1612
    %v1623 = vadd.f32 %v1146, %v1614
    %v1625 = vlaneseq
    %v1626 = vshrl.u32 %v1625, 7
    %v1627 = vsub.s32 0, %v1626
    %v1628 = vrot.slane %v229, %v1627
    %v1629 = vlaneseq
    %v1630 = vshrl.u32 %v1629, 7
    %v1631 = vsub.s32 1, %v1630
    %v1632 = vrot.slane %v229, %v1631
    %v1635 = vadd.f32 %v1616, %v1628
    %v1636 = vadd.f32 %v1617, %v1632
    %v1637 = vadd.f32 %v1618, %v1628
    %v1638 = vadd.f32 %v1619, %v1632
    %v1639 = vadd.f32 %v1620, %v1628
    %v1640 = vadd.f32 %v1621, %v1632
    %v1641 = vadd.f32 %v1622, %v1628
    %v1642 = vadd.f32 %v1623, %v1632
    %v1643 = vld [vmem:[%s3] sm:$0x3]
    %v1644 = vld [vmem:[%s4] sm:$0x3]
    %v1645 = vadd.f32 %v1635, %v1637
    %v1646 = vadd.f32 %v1645, %v1639
    %v1647 = vadd.f32 %v1646, %v1641
    %v1648 = vrot.slane %v1647, 4
    %v1649 = vadd.f32 %v1647, %v1648
    %v1650 = vrot.slane %v1649, 2
    %v1651 = vadd.f32 %v1649, %v1650
    %v1652 = vrot.slane %v1651, 1
    %v1653 = vadd.f32 %v1651, %v1652
    %v1654 = vadd.f32 %v1636, %v1638
    %v1655 = vadd.f32 %v1654, %v1640
    %v1656 = vadd.f32 %v1655, %v1642
    %v1657 = vrot.slane %v1656, 4
    %v1658 = vadd.f32 %v1656, %v1657
    %v1659 = vrot.slane %v1658, 2
    %v1660 = vadd.f32 %v1658, %v1659
    %v1661 = vrot.slane %v1660, 1
    %v1662 = vadd.f32 %v1660, %v1661
    %1663 = vmatprep.subr.mxu0 0.0
    %1664 = vmatpush1.msra.mxu0 %v72
    %1665 = vmatprep.subr.mxu0 0.0
    %1666 = vmatpush1.msra.mxu0 %v73
    %1667 = vmatprep.subr.mxu0 0.0
    %1668 = vmatpush1.msra.mxu0 %v74
    %1669 = vmatprep.subr.mxu0 0.0
    %1670 = vmatpush1.msra.mxu0 %v75
    %1671 = vmatprep.subr.mxu0 0.0
    %1672 = vmatpush1.msra.mxu0 %v76
    %1673 = vmatprep.subr.mxu0 0.0
    %1674 = vmatpush1.msra.mxu0 %v77
    %1675 = vmatprep.subr.mxu0 0.0
    %1676 = vmatpush1.msra.mxu0 %v78
    %1677 = vmatprep.subr.mxu0 0.0
    %1678 = vmatpush1.msra.mxu0 %v79
    %1679 = vmatprep.subr.mxu0 0.0
    %1680 = vmatpush1.msra.mxu0 %v80
    %1681 = vmatprep.subr.mxu0 0.0
    %1682 = vmatpush1.msra.mxu0 %v81
    %1683 = vmatprep.subr.mxu0 0.0
    %1684 = vmatpush1.msra.mxu0 %v82
    %1685 = vmatprep.subr.mxu0 0.0
    %1686 = vmatpush1.msra.mxu0 %v83
    %1687 = vmatprep.subr.mxu0 0.0
    %1688 = vmatpush1.msra.mxu0 %v84
    %1689 = vmatprep.subr.mxu0 0.0
    %1690 = vmatpush1.msra.mxu0 %v85
    %1691 = vmatprep.subr.mxu0 0.0
    %1692 = vmatpush1.msra.mxu0 %v86
    %1693 = vmatprep.subr.mxu0 0.0
    %1694 = vmatpush1.msra.mxu0 %v87
    %1695 = vmatprep.subr.mxu0 0.0
    %1696 = vmatpush1.msra.mxu0 %v88
    %1697 = vmatprep.subr.mxu0 0.0
    %1698 = vmatpush1.msra.mxu0 %v89
    %1699 = vmatprep.subr.mxu0 0.0
    %1700 = vmatpush1.msra.mxu0 %v90
    %1701 = vmatprep.subr.mxu0 0.0
    %1702 = vmatpush1.msra.mxu0 %v91
    %1703 = vmatprep.subr.mxu0 0.0
    %1704 = vmatpush1.msra.mxu0 %v92
    %1705 = vmatprep.subr.mxu0 0.0
    %1706 = vmatpush1.msra.mxu0 %v93
    %1707 = vmatprep.subr.mxu0 0.0
    %1708 = vmatpush1.msra.mxu0 %v94
    %1709 = vmatprep.subr.mxu0 0.0
    %1710 = vmatpush1.msra.mxu0 %v95
    %1711 = vmatprep.subr.mxu0 0.0
    %1712 = vmatpush1.msra.mxu0 %v96
    %1713 = vmatprep.subr.mxu0 0.0
    %1714 = vmatpush1.msra.mxu0 %v97
    %1715 = vmatprep.subr.mxu0 0.0
    %1716 = vmatpush1.msra.mxu0 %v98
    %1717 = vmatprep.subr.mxu0 0.0
    %1718 = vmatpush1.msra.mxu0 %v99
    %1719 = vmatprep.subr.mxu0 0.0
    %1720 = vmatpush1.msra.mxu0 %v100
    %1721 = vmatprep.subr.mxu0 0.0
    %1722 = vmatpush1.msra.mxu0 %v101
    %1723 = vmatprep.subr.mxu0 0.0
    %1724 = vmatpush1.msra.mxu0 %v102
    %1725 = vmatprep.subr.mxu0 0.0
    %1726 = vmatpush1.msra.mxu0 %v103
    %1727 = vmatprep.mubr.f32.mxu0 %v1662
    %1728 = vmatmul.mubr.f32.gmra.mrb[0].mxu0 %v1653
    %v1729 = vpop.f32.mrb[0].mxu0
    %v1730 = vadd.f32 0.0, %v1729
    %v1731 = vpop.f32.mrb[0].mxu0
    %1732 = vdwg.mxu0
    %v1733 = vmul.f32 %v1730, 0.001953125
    %v1735 = vsel %vm154, %v1733, 0
    %1737 = vmatprep.subr.mxu0 %v105
    %1738 = vmatpush1.msra.mxu0 %v104
    %1739 = vmatprep.subr.mxu0 %v107
    %1740 = vmatpush1.msra.mxu0 %v106
    %1741 = vmatprep.subr.mxu0 0.0
    %1742 = vmatpush1.msra.mxu0 0.0
    %1743 = vmatprep.subr.mxu0 0.0
    %1744 = vmatpush1.msra.mxu0 0.0
    %1745 = vmatprep.subr.mxu0 0.0
    %1746 = vmatpush1.msra.mxu0 0.0
    %1747 = vmatprep.subr.mxu0 0.0
    %1748 = vmatpush1.msra.mxu0 0.0
    %1749 = vmatprep.subr.mxu0 0.0
    %1750 = vmatpush1.msra.mxu0 0.0
    %1751 = vmatprep.subr.mxu0 0.0
    %1752 = vmatpush1.msra.mxu0 0.0
    %1753 = vmatprep.subr.mxu0 0.0
    %1754 = vmatpush1.msra.mxu0 0.0
    %1755 = vmatprep.subr.mxu0 0.0
    %1756 = vmatpush1.msra.mxu0 0.0
    %1757 = vmatprep.subr.mxu0 0.0
    %1758 = vmatpush1.msra.mxu0 0.0
    %1759 = vmatprep.subr.mxu0 0.0
    %1760 = vmatpush1.msra.mxu0 0.0
    %1761 = vmatprep.subr.mxu0 0.0
    %1762 = vmatpush1.msra.mxu0 0.0
    %1763 = vmatprep.subr.mxu0 0.0
    %1764 = vmatpush1.msra.mxu0 0.0
    %1765 = vmatprep.subr.mxu0 0.0
    %1766 = vmatpush1.msra.mxu0 0.0
    %1767 = vmatprep.subr.mxu0 0.0
    %1768 = vmatpush1.msra.mxu0 0.0
    %1769 = vmatprep.subr.mxu0 0.0
    %1770 = vmatpush1.msra.mxu0 0.0
    %1771 = vmatprep.subr.mxu0 0.0
    %1772 = vmatpush1.msra.mxu0 0.0
    %1773 = vmatprep.subr.mxu0 0.0
    %1774 = vmatpush1.msra.mxu0 0.0
    %1775 = vmatprep.subr.mxu0 0.0
    %1776 = vmatpush1.msra.mxu0 0.0
    %1777 = vmatprep.subr.mxu0 0.0
    %1778 = vmatpush1.msra.mxu0 0.0
    %1779 = vmatprep.subr.mxu0 0.0
    %1780 = vmatpush1.msra.mxu0 0.0
    %1781 = vmatprep.subr.mxu0 0.0
    %1782 = vmatpush1.msra.mxu0 0.0
    %1783 = vmatprep.subr.mxu0 0.0
    %1784 = vmatpush1.msra.mxu0 0.0
    %1785 = vmatprep.subr.mxu0 0.0
    %1786 = vmatpush1.msra.mxu0 0.0
    %1787 = vmatprep.subr.mxu0 0.0
    %1788 = vmatpush1.msra.mxu0 0.0
    %1789 = vmatprep.subr.mxu0 0.0
    %1790 = vmatpush1.msra.mxu0 0.0
    %1791 = vmatprep.subr.mxu0 0.0
    %1792 = vmatpush1.msra.mxu0 0.0
    %1793 = vmatprep.subr.mxu0 0.0
    %1794 = vmatpush1.msra.mxu0 0.0
    %1795 = vmatprep.subr.mxu0 0.0
    %1796 = vmatpush1.msra.mxu0 0.0
    %1797 = vmatprep.subr.mxu0 0.0
    %1798 = vmatpush1.msra.mxu0 0.0
    %1799 = vmatprep.subr.mxu0 0.0
    %1800 = vmatpush1.msra.mxu0 0.0
    %1801 = vmatprep.mubr.f32.mxu0 0.0
    %1802 = vmatmul.mubr.f32.gmra.mrb[0].mxu0 %v1735
    %v1803 = vpop.f32.mrb[0].mxu0
    %v1804 = vadd.f32 0.0, %v1803
    %v1805 = vpop.f32.mrb[0].mxu0
    %v1806 = vadd.f32 0.0, %v1805
    %1807 = vdwg.mxu0
    %v1808 = vlaneseq
    %v1809 = vshrl.u32 %v1808, 7
    %v1810 = vsub.s32 0, %v1809
    %v1811 = vrot.slane %v1804, %v1810
    %v1812 = vlaneseq
    %v1813 = vshrl.u32 %v1812, 7
    %v1814 = vsub.s32 0, %v1813
    %v1815 = vrot.slane %v1806, %v1814
    %v1816 = vsub.f32 %v1635, %v1811
    %v1817 = vsub.f32 %v1636, %v1815
    %v1818 = vsub.f32 %v1637, %v1811
    %v1819 = vsub.f32 %v1638, %v1815
    %v1820 = vsub.f32 %v1639, %v1811
    %v1821 = vsub.f32 %v1640, %v1815
    %v1822 = vsub.f32 %v1641, %v1811
    %v1823 = vsub.f32 %v1642, %v1815
    %v1824 = vmul.f32 %v1816, %v1816
    %v1825 = vmul.f32 %v1817, %v1817
    %v1826 = vmul.f32 %v1818, %v1818
    %v1827 = vmul.f32 %v1819, %v1819
    %v1828 = vmul.f32 %v1820, %v1820
    %v1829 = vmul.f32 %v1821, %v1821
    %v1830 = vmul.f32 %v1822, %v1822
    %v1831 = vmul.f32 %v1823, %v1823
    %v1832 = vadd.f32 %v1824, %v1826
    %v1833 = vadd.f32 %v1832, %v1828
    %v1834 = vadd.f32 %v1833, %v1830
    %v1835 = vrot.slane %v1834, 4
    %v1836 = vadd.f32 %v1834, %v1835
    %v1837 = vrot.slane %v1836, 2
    %v1838 = vadd.f32 %v1836, %v1837
    %v1839 = vrot.slane %v1838, 1
    %v1840 = vadd.f32 %v1838, %v1839
    %v1841 = vadd.f32 %v1825, %v1827
    %v1842 = vadd.f32 %v1841, %v1829
    %v1843 = vadd.f32 %v1842, %v1831
    %v1844 = vrot.slane %v1843, 4
    %v1845 = vadd.f32 %v1843, %v1844
    %v1846 = vrot.slane %v1845, 2
    %v1847 = vadd.f32 %v1845, %v1846
    %v1848 = vrot.slane %v1847, 1
    %v1849 = vadd.f32 %v1847, %v1848
    %1850 = vmatprep.subr.mxu0 0.0
    %1851 = vmatpush1.msra.mxu0 %v72
    %1852 = vmatprep.subr.mxu0 0.0
    %1853 = vmatpush1.msra.mxu0 %v73
    %1854 = vmatprep.subr.mxu0 0.0
    %1855 = vmatpush1.msra.mxu0 %v74
    %1856 = vmatprep.subr.mxu0 0.0
    %1857 = vmatpush1.msra.mxu0 %v75
    %1858 = vmatprep.subr.mxu0 0.0
    %1859 = vmatpush1.msra.mxu0 %v76
    %1860 = vmatprep.subr.mxu0 0.0
    %1861 = vmatpush1.msra.mxu0 %v77
    %1862 = vmatprep.subr.mxu0 0.0
    %1863 = vmatpush1.msra.mxu0 %v78
    %1864 = vmatprep.subr.mxu0 0.0
    %1865 = vmatpush1.msra.mxu0 %v79
    %1866 = vmatprep.subr.mxu0 0.0
    %1867 = vmatpush1.msra.mxu0 %v80
    %1868 = vmatprep.subr.mxu0 0.0
    %1869 = vmatpush1.msra.mxu0 %v81
    %1870 = vmatprep.subr.mxu0 0.0
    %1871 = vmatpush1.msra.mxu0 %v82
    %1872 = vmatprep.subr.mxu0 0.0
    %1873 = vmatpush1.msra.mxu0 %v83
    %1874 = vmatprep.subr.mxu0 0.0
    %1875 = vmatpush1.msra.mxu0 %v84
    %1876 = vmatprep.subr.mxu0 0.0
    %1877 = vmatpush1.msra.mxu0 %v85
    %1878 = vmatprep.subr.mxu0 0.0
    %1879 = vmatpush1.msra.mxu0 %v86
    %1880 = vmatprep.subr.mxu0 0.0
    %1881 = vmatpush1.msra.mxu0 %v87
    %1882 = vmatprep.subr.mxu0 0.0
    %1883 = vmatpush1.msra.mxu0 %v88
    %1884 = vmatprep.subr.mxu0 0.0
    %1885 = vmatpush1.msra.mxu0 %v89
    %1886 = vmatprep.subr.mxu0 0.0
    %1887 = vmatpush1.msra.mxu0 %v90
    %1888 = vmatprep.subr.mxu0 0.0
    %1889 = vmatpush1.msra.mxu0 %v91
    %1890 = vmatprep.subr.mxu0 0.0
    %1891 = vmatpush1.msra.mxu0 %v92
    %1892 = vmatprep.subr.mxu0 0.0
    %1893 = vmatpush1.msra.mxu0 %v93
    %1894 = vmatprep.subr.mxu0 0.0
    %1895 = vmatpush1.msra.mxu0 %v94
    %1896 = vmatprep.subr.mxu0 0.0
    %1897 = vmatpush1.msra.mxu0 %v95
    %1898 = vmatprep.subr.mxu0 0.0
    %1899 = vmatpush1.msra.mxu0 %v96
    %1900 = vmatprep.subr.mxu0 0.0
    %1901 = vmatpush1.msra.mxu0 %v97
    %1902 = vmatprep.subr.mxu0 0.0
    %1903 = vmatpush1.msra.mxu0 %v98
    %1904 = vmatprep.subr.mxu0 0.0
    %1905 = vmatpush1.msra.mxu0 %v99
    %1906 = vmatprep.subr.mxu0 0.0
    %1907 = vmatpush1.msra.mxu0 %v100
    %1908 = vmatprep.subr.mxu0 0.0
    %1909 = vmatpush1.msra.mxu0 %v101
    %1910 = vmatprep.subr.mxu0 0.0
    %1911 = vmatpush1.msra.mxu0 %v102
    %1912 = vmatprep.subr.mxu0 0.0
    %1913 = vmatpush1.msra.mxu0 %v103
    %1914 = vmatprep.mubr.f32.mxu0 %v1849
    %1915 = vmatmul.mubr.f32.gmra.mrb[0].mxu0 %v1840
    %v1916 = vpop.f32.mrb[0].mxu0
    %v1917 = vadd.f32 0.0, %v1916
    %v1918 = vpop.f32.mrb[0].mxu0
    %1919 = vdwg.mxu0
    %v1920 = vmul.f32 %v1917, 0.001953125
    %v1921 = vadd.f32 %v1920, 1e-05
    %v1922 = vrsqrt.pop %v1921
    %v1924 = vsel %vm154, %v1922, 0
    %1926 = vmatprep.subr.mxu0 %v105
    %1927 = vmatpush1.msra.mxu0 %v104
    %1928 = vmatprep.subr.mxu0 %v107
    %1929 = vmatpush1.msra.mxu0 %v106
    %1930 = vmatprep.subr.mxu0 0.0
    %1931 = vmatpush1.msra.mxu0 0.0
    %1932 = vmatprep.subr.mxu0 0.0
    %1933 = vmatpush1.msra.mxu0 0.0
    %1934 = vmatprep.subr.mxu0 0.0
    %1935 = vmatpush1.msra.mxu0 0.0
    %1936 = vmatprep.subr.mxu0 0.0
    %1937 = vmatpush1.msra.mxu0 0.0
    %1938 = vmatprep.subr.mxu0 0.0
    %1939 = vmatpush1.msra.mxu0 0.0
    %1940 = vmatprep.subr.mxu0 0.0
    %1941 = vmatpush1.msra.mxu0 0.0
    %1942 = vmatprep.subr.mxu0 0.0
    %1943 = vmatpush1.msra.mxu0 0.0
    %1944 = vmatprep.subr.mxu0 0.0
    %1945 = vmatpush1.msra.mxu0 0.0
    %1946 = vmatprep.subr.mxu0 0.0
    %1947 = vmatpush1.msra.mxu0 0.0
    %1948 = vmatprep.subr.mxu0 0.0
    %1949 = vmatpush1.msra.mxu0 0.0
    %1950 = vmatprep.subr.mxu0 0.0
    %1951 = vmatpush1.msra.mxu0 0.0
    %1952 = vmatprep.subr.mxu0 0.0
    %1953 = vmatpush1.msra.mxu0 0.0
    %1954 = vmatprep.subr.mxu0 0.0
    %1955 = vmatpush1.msra.mxu0 0.0
    %1956 = vmatprep.subr.mxu0 0.0
    %1957 = vmatpush1.msra.mxu0 0.0
    %1958 = vmatprep.subr.mxu0 0.0
    %1959 = vmatpush1.msra.mxu0 0.0
    %1960 = vmatprep.subr.mxu0 0.0
    %1961 = vmatpush1.msra.mxu0 0.0
    %1962 = vmatprep.subr.mxu0 0.0
    %1963 = vmatpush1.msra.mxu0 0.0
    %1964 = vmatprep.subr.mxu0 0.0
    %1965 = vmatpush1.msra.mxu0 0.0
    %1966 = vmatprep.subr.mxu0 0.0
    %1967 = vmatpush1.msra.mxu0 0.0
    %1968 = vmatprep.subr.mxu0 0.0
    %1969 = vmatpush1.msra.mxu0 0.0
    %1970 = vmatprep.subr.mxu0 0.0
    %1971 = vmatpush1.msra.mxu0 0.0
    %1972 = vmatprep.subr.mxu0 0.0
    %1973 = vmatpush1.msra.mxu0 0.0
    %1974 = vmatprep.subr.mxu0 0.0
    %1975 = vmatpush1.msra.mxu0 0.0
    %1976 = vmatprep.subr.mxu0 0.0
    %1977 = vmatpush1.msra.mxu0 0.0
    %1978 = vmatprep.subr.mxu0 0.0
    %1979 = vmatpush1.msra.mxu0 0.0
    %1980 = vmatprep.subr.mxu0 0.0
    %1981 = vmatpush1.msra.mxu0 0.0
    %1982 = vmatprep.subr.mxu0 0.0
    %1983 = vmatpush1.msra.mxu0 0.0
    %1984 = vmatprep.subr.mxu0 0.0
    %1985 = vmatpush1.msra.mxu0 0.0
    %1986 = vmatprep.subr.mxu0 0.0
    %1987 = vmatpush1.msra.mxu0 0.0
    %1988 = vmatprep.subr.mxu0 0.0
    %1989 = vmatpush1.msra.mxu0 0.0
    %1990 = vmatprep.mubr.f32.mxu0 0.0
    %1991 = vmatmul.mubr.f32.gmra.mrb[0].mxu0 %v1924
    %v1992 = vpop.f32.mrb[0].mxu0
    %v1993 = vadd.f32 0.0, %v1992
    %v1994 = vpop.f32.mrb[0].mxu0
    %v1995 = vadd.f32 0.0, %v1994
    %1996 = vdwg.mxu0
    %v1999 = vcombine.low %v1993, %v1995
    %v2001 = vunpack.c.l.s4 1966171168
    %v2002 = vunpack.c.0.s8 %v2001
    %v2003 = vlaneseq
    %v2004 = vshrl.u32 %v2003, 7
    %v2005 = vsub.s32 %v2002, %v2004
    %v2006 = vrot.slane %v1999, %v2005
    %v2008 = vunpack.c.l.s4 1966171168
    %v2009 = vunpack.c.0.s8 %v2008
    %v2010 = vlaneseq
    %v2011 = vshrl.u32 %v2010, 7
    %v2012 = vsub.s32 %v2009, %v2011
    %v2013 = vrot.slane %v2006, %v2012
    %v2015 = vmul.f32 %v1643, %v2013
    %v2017 = vlaneseq
    %v2018 = vshrl.u32 %v2017, 7
    %v2019 = vsub.s32 0, %v2018
    %v2020 = vrot.slane %v2015, %v2019
    %v2021 = vlaneseq
    %v2022 = vshrl.u32 %v2021, 7
    %v2023 = vsub.s32 1, %v2022
    %v2024 = vrot.slane %v2015, %v2023
    %v2027 = vmul.f32 %v1816, %v2020
    %v2028 = vmul.f32 %v1817, %v2024
    %v2029 = vmul.f32 %v1818, %v2020
    %v2030 = vmul.f32 %v1819, %v2024
    %v2031 = vmul.f32 %v1820, %v2020
    %v2032 = vmul.f32 %v1821, %v2024
    %v2033 = vmul.f32 %v1822, %v2020
    %v2034 = vmul.f32 %v1823, %v2024
    %v2036 = vlaneseq
    %v2037 = vshrl.u32 %v2036, 7
    %v2038 = vsub.s32 0, %v2037
    %v2039 = vrot.slane %v1644, %v2038
    %v2040 = vlaneseq
    %v2041 = vshrl.u32 %v2040, 7
    %v2042 = vsub.s32 1, %v2041
    %v2043 = vrot.slane %v1644, %v2042
    %v2046 = vadd.f32 %v2027, %v2039
    %v2047 = vadd.f32 %v2028, %v2043
    %v2048 = vadd.f32 %v2029, %v2039
    %v2049 = vadd.f32 %v2030, %v2043
    %v2050 = vadd.f32 %v2031, %v2039
    %v2051 = vadd.f32 %v2032, %v2043
    %v2052 = vadd.f32 %v2033, %v2039
    %v2053 = vadd.f32 %v2034, %v2043
    %vm2054 = vcmp.ge.f32.partialorder %v2046, 0.0
    %vm2055 = vcmp.ge.f32.partialorder %v2047, 0.0
    %vm2056 = vcmp.ge.f32.partialorder %v2048, 0.0
    %vm2057 = vcmp.ge.f32.partialorder %v2049, 0.0
    %vm2058 = vcmp.ge.f32.partialorder %v2050, 0.0
    %vm2059 = vcmp.ge.f32.partialorder %v2051, 0.0
    %vm2060 = vcmp.ge.f32.partialorder %v2052, 0.0
    %vm2061 = vcmp.ge.f32.partialorder %v2053, 0.0
    %v2063 = vlaneseq
    %v2064 = vshrl.u32 %v2063, 7
    %v2065 = vsub.s32 0, %v2064
    %v2066 = vrot.slane %v71, %v2065
    %v2067 = vlaneseq
    %v2068 = vshrl.u32 %v2067, 7
    %v2069 = vsub.s32 1, %v2068
    %v2070 = vrot.slane %v71, %v2069
    %v2073 = vmul.f32 %v2066, %v2046
    %v2074 = vmul.f32 %v2070, %v2047
    %v2075 = vmul.f32 %v2066, %v2048
    %v2076 = vmul.f32 %v2070, %v2049
    %v2077 = vmul.f32 %v2066, %v2050
    %v2078 = vmul.f32 %v2070, %v2051
    %v2079 = vmul.f32 %v2066, %v2052
    %v2080 = vmul.f32 %v2070, %v2053
    %v2081 = vsel %vm2054, %v2046, %v2073
    %v2082 = vsel %vm2055, %v2047, %v2074
    %v2083 = vsel %vm2056, %v2048, %v2075
    %v2084 = vsel %vm2057, %v2049, %v2076
    %v2085 = vsel %vm2058, %v2050, %v2077
    %v2086 = vsel %vm2059, %v2051, %v2078
    %v2087 = vsel %vm2060, %v2052, %v2079
    %v2088 = vsel %vm2061, %v2053, %v2080
    %v2093 = vrot.slane %v2081, 7
    %v2094 = vrot.slane %v2082, 7
    %v2095 = vrot.slane %v2083, 7
    %v2096 = vsel %vm135, %v2093, %v2095
    %v2097 = vrot.slane %v2084, 7
    %v2098 = vsel %vm135, %v2094, %v2097
    %2099 = vrot.lane.b32.xlu0 %v2093, 16
    %v2100 = vpop.permute.xlu0 %2099
    %2101 = vrot.lane.b32.xlu0 %v2094, 16
    %v2102 = vpop.permute.xlu0 %2101
    %2103 = vrot.lane.b32.xlu0 %v2096, 16
    %v2104 = vpop.permute.xlu0 %2103
    %2105 = vrot.lane.b32.xlu0 %v2098, 16
    %v2106 = vpop.permute.xlu0 %2105
    %2107 = vrot.lane.b32.xlu0 %v2095, 16
    %v2108 = vpop.permute.xlu0 %2107
    %2109 = vrot.lane.b32.xlu0 %v2097, 16
    %v2110 = vpop.permute.xlu0 %2109
    %v2111 = vsel %vm154, %v2100, %v2102
    %v2112 = vsel %vm154, %v2104, %v2106
    %v2113 = vsel %vm154, %v2108, %v2110
    %2123 = vst.msk [vmem:[#allocation2] sm:$0xfe] %vm167, %v2100
    %2124 = vst [vmem:[#allocation2 + $0x8] sm:$0xfe] %v2111
    %2125 = vst.msk [vmem:[#allocation2 + $0x10] sm:$0xfe] %vm170, %v2102
    %2126 = vst.msk [vmem:[#allocation2 + $0x18] sm:$0xff] %vm172, %v2104
    %2127 = vst [vmem:[#allocation2 + $0x20] sm:$0xff] %v2112
    %2128 = vst.msk [vmem:[#allocation2 + $0x28] sm:$0xff] %vm154, %v2106
    %2129 = vst.msk [vmem:[#allocation2 + $0x30] sm:$0x1] %vm176, %v2108
    %2130 = vst [vmem:[#allocation2 + $0x38] sm:$0x1] %v2113
    %2131 = vst.msk [vmem:[#allocation2 + $0x40] sm:$0x1] %vm179, %v2110
    %v2136 = vrot.slane %v2085, 5
    %v2137 = vrot.slane %v2086, 5
    %v2138 = vrot.slane %v2087, 5
    %v2139 = vsel %vm185, %v2136, %v2138
    %v2140 = vrot.slane %v2088, 5
    %v2141 = vsel %vm185, %v2137, %v2140
    %2142 = vrot.lane.b32.xlu0 %v2136, 16
    %v2143 = vpop.permute.xlu0 %2142
    %2144 = vrot.lane.b32.xlu0 %v2137, 16
    %v2145 = vpop.permute.xlu0 %2144
    %2146 = vrot.lane.b32.xlu0 %v2139, 16
    %v2147 = vpop.permute.xlu0 %2146
    %2148 = vrot.lane.b32.xlu0 %v2141, 16
    %v2149 = vpop.permute.xlu0 %2148
    %2150 = vrot.lane.b32.xlu0 %v2138, 16
    %v2151 = vpop.permute.xlu0 %2150
    %2152 = vrot.lane.b32.xlu0 %v2140, 16
    %v2153 = vpop.permute.xlu0 %2152
    %v2154 = vsel %vm154, %v2143, %v2145
    %v2155 = vsel %vm154, %v2147, %v2149
    %v2156 = vsel %vm154, %v2151, %v2153
    %2166 = vst.msk [vmem:[#allocation2 + $0x30] sm:$0xf8] %vm216, %v2143
    %2167 = vst [vmem:[#allocation2 + $0x38] sm:$0xf8] %v2154
    %2168 = vst.msk [vmem:[#allocation2 + $0x40] sm:$0xf8] %vm219, %v2145
    %2169 = vst.msk [vmem:[#allocation2 + $0x48] sm:$0xff] %vm172, %v2147
    %2170 = vst [vmem:[#allocation2 + $0x50] sm:$0xff] %v2155
    %2171 = vst.msk [vmem:[#allocation2 + $0x58] sm:$0xff] %vm154, %v2149
    %2172 = vst.msk [vmem:[#allocation2 + $0x60] sm:$0x7] %vm224, %v2151
    %2173 = vst [vmem:[#allocation2 + $0x68] sm:$0x7] %v2156
    %2174 = vst.msk [vmem:[#allocation2 + $0x70] sm:$0x7] %vm227, %v2153
    %v2175 = vld [vmem:[%s6] sm:$0x3]
    %v2176 = vld [vmem:[#allocation2] sm:$0xff]
    %v2177 = vld [vmem:[#allocation2 + $0x8] sm:$0xff]
    %v2178 = vld [vmem:[#allocation2 + $0x10] sm:$0xff]
    %v2179 = vld [vmem:[#allocation2 + $0x18] sm:$0xff]
    %v2180 = vld [vmem:[#allocation2 + $0x20] sm:$0xff]
    %v2181 = vld [vmem:[#allocation2 + $0x28] sm:$0xff]
    %v2182 = vld [vmem:[#allocation2 + $0x30] sm:$0xfc]
    %v2183 = vld [vmem:[#allocation2 + $0x38] sm:$0xfc]
    %v2184 = vld [vmem:[#allocation2 + $0x40] sm:$0xfc]
    %v2185 = vld [vmem:[#allocation2 + $0x48] sm:$0xff]
    %v2186 = vld [vmem:[#allocation2 + $0x50] sm:$0xff]
    %v2187 = vld [vmem:[#allocation2 + $0x58] sm:$0xff]
    %v2188 = vld [vmem:[#allocation2 + $0x60] sm:$0x3]
    %v2189 = vld [vmem:[#allocation2 + $0x68] sm:$0x3]
    %v2190 = vld [vmem:[#allocation2 + $0x70] sm:$0x3]
    %v2200 = vrot.slane %v2182, 2
    %v2201 = vrot.slane %v2185, 2
    %v2202 = vsel %vm254, %v2200, %v2201
    %v2203 = vrot.slane %v2183, 2
    %v2204 = vrot.slane %v2186, 2
    %v2205 = vsel %vm254, %v2203, %v2204
    %v2206 = vrot.slane %v2184, 2
    %v2207 = vrot.slane %v2187, 2
    %v2208 = vsel %vm254, %v2206, %v2207
    %v2209 = vrot.slane %v2188, 2
    %v2210 = vsel %vm254, %v2201, %v2209
    %v2211 = vrot.slane %v2189, 2
    %v2212 = vsel %vm254, %v2204, %v2211
    %v2213 = vrot.slane %v2190, 2
    %v2214 = vsel %vm254, %v2207, %v2213
    %v2221 = vpack.c.bf16 %v2179, %v2176
    %v2222 = vpack.c.bf16 %v2180, %v2177
    %v2223 = vpack.c.bf16 %v2181, %v2178
    %v2224 = vpack.c.bf16 %v2210, %v2202
    %v2225 = vpack.c.bf16 %v2212, %v2205
    %v2226 = vpack.c.bf16 %v2214, %v2208
    %v2227 = vld [vmem:[#allocation6] sm:$0xff]
    %v2228 = vld [vmem:[#allocation6 + $0x8] sm:$0xff]
    %v2229 = vld [vmem:[#allocation6 + $0x10] sm:$0xff]
    %v2230 = vld [vmem:[#allocation6 + $0x18] sm:$0xff]
    %v2231 = vld [vmem:[#allocation6 + $0x20] sm:$0xff]
    %v2232 = vld [vmem:[#allocation6 + $0x28] sm:$0xff]
    %v2233 = vld [vmem:[#allocation6 + $0x30] sm:$0xff]
    %v2234 = vld [vmem:[#allocation6 + $0x38] sm:$0xff]
    %v2235 = vld [vmem:[#allocation6 + $0x40] sm:$0xff]
    %v2236 = vld [vmem:[#allocation6 + $0x48] sm:$0xff]
    %v2237 = vld [vmem:[#allocation6 + $0x50] sm:$0xff]
    %v2238 = vld [vmem:[#allocation6 + $0x58] sm:$0xff]
    %v2239 = vld [vmem:[#allocation6 + $0x60] sm:$0xff]
    %v2240 = vld [vmem:[#allocation6 + $0x68] sm:$0xff]
    %v2241 = vld [vmem:[#allocation6 + $0x70] sm:$0xff]
    %v2242 = vld [vmem:[#allocation6 + $0x78] sm:$0xff]
    %v2243 = vld [vmem:[#allocation6 + $0x80] sm:$0xff]
    %v2244 = vld [vmem:[#allocation6 + $0x88] sm:$0xff]
    %v2245 = vld [vmem:[#allocation6 + $0x90] sm:$0xff]
    %v2246 = vld [vmem:[#allocation6 + $0x98] sm:$0xff]
    %v2247 = vld [vmem:[#allocation6 + $0xa0] sm:$0xff]
    %v2248 = vld [vmem:[#allocation6 + $0xa8] sm:$0xff]
    %v2249 = vld [vmem:[#allocation6 + $0xb0] sm:$0xff]
    %v2250 = vld [vmem:[#allocation6 + $0xb8] sm:$0xff]
    %v2251 = vld [vmem:[#allocation6 + $0xc0] sm:$0xff]
    %v2252 = vld [vmem:[#allocation6 + $0xc8] sm:$0xff]
    %v2253 = vld [vmem:[#allocation6 + $0xd0] sm:$0xff]
    %v2254 = vld [vmem:[#allocation6 + $0xd8] sm:$0xff]
    %v2255 = vld [vmem:[#allocation6 + $0xe0] sm:$0xff]
    %v2256 = vld [vmem:[#allocation6 + $0xe8] sm:$0xff]
    %v2257 = vld [vmem:[#allocation6 + $0xf0] sm:$0xff]
    %v2258 = vld [vmem:[#allocation6 + $0xf8] sm:$0xff]
    %v2259 = vld [vmem:[#allocation6 + $0x100] sm:$0xff]
    %v2260 = vld [vmem:[#allocation6 + $0x108] sm:$0xff]
    %v2261 = vld [vmem:[#allocation6 + $0x110] sm:$0xff]
    %v2262 = vld [vmem:[#allocation6 + $0x118] sm:$0xff]
    %v2263 = vld [vmem:[#allocation6 + $0x120] sm:$0xff]
    %v2264 = vld [vmem:[#allocation6 + $0x128] sm:$0xff]
    %v2265 = vld [vmem:[#allocation6 + $0x130] sm:$0xff]
    %v2266 = vld [vmem:[#allocation6 + $0x138] sm:$0xff]
    %v2267 = vld [vmem:[#allocation6 + $0x140] sm:$0xff]
    %v2268 = vld [vmem:[#allocation6 + $0x148] sm:$0xff]
    %v2269 = vld [vmem:[#allocation6 + $0x150] sm:$0xff]
    %v2270 = vld [vmem:[#allocation6 + $0x158] sm:$0xff]
    %v2271 = vld [vmem:[#allocation6 + $0x160] sm:$0xff]
    %v2272 = vld [vmem:[#allocation6 + $0x168] sm:$0xff]
    %v2273 = vld [vmem:[#allocation6 + $0x170] sm:$0xff]
    %v2274 = vld [vmem:[#allocation6 + $0x178] sm:$0xff]
    %v2275 = vld [vmem:[#allocation2] sm:$0xfe]
    %v2276 = vld [vmem:[#allocation2 + $0x8] sm:$0xfe]
    %v2277 = vld [vmem:[#allocation2 + $0x10] sm:$0xfe]
    %v2278 = vld [vmem:[#allocation2 + $0x30] sm:$0x1]
    %v2279 = vld [vmem:[#allocation2 + $0x38] sm:$0x1]
    %v2280 = vld [vmem:[#allocation2 + $0x40] sm:$0x1]
    %v2281 = vld [vmem:[#allocation2 + $0x30] sm:$0xf8]
    %v2282 = vld [vmem:[#allocation2 + $0x38] sm:$0xf8]
    %v2283 = vld [vmem:[#allocation2 + $0x40] sm:$0xf8]
    %v2284 = vld [vmem:[#allocation2 + $0x60] sm:$0x7]
    %v2285 = vld [vmem:[#allocation2 + $0x68] sm:$0x7]
    %v2286 = vld [vmem:[#allocation2 + $0x70] sm:$0x7]
    %v2296 = vrot.slane %v2275, 1
    %v2297 = vrot.slane %v2179, 1
    %v2298 = vsel %vm351, %v2296, %v2297
    %v2299 = vrot.slane %v2276, 1
    %v2300 = vrot.slane %v2180, 1
    %v2301 = vsel %vm351, %v2299, %v2300
    %v2302 = vrot.slane %v2277, 1
    %v2303 = vrot.slane %v2181, 1
    %v2304 = vsel %vm351, %v2302, %v2303
    %v2305 = vrot.slane %v2278, 1
    %v2306 = vsel %vm351, %v2297, %v2305
    %v2307 = vrot.slane %v2279, 1
    %v2308 = vsel %vm351, %v2300, %v2307
    %v2309 = vrot.slane %v2280, 1
    %v2310 = vsel %vm351, %v2303, %v2309
    %v2323 = vrot.slane %v2281, 3
    %v2324 = vrot.slane %v2185, 3
    %v2325 = vsel %vm379, %v2323, %v2324
    %v2326 = vrot.slane %v2282, 3
    %v2327 = vrot.slane %v2186, 3
    %v2328 = vsel %vm379, %v2326, %v2327
    %v2329 = vrot.slane %v2283, 3
    %v2330 = vrot.slane %v2187, 3
    %v2331 = vsel %vm379, %v2329, %v2330
    %v2332 = vrot.slane %v2284, 3
    %v2333 = vsel %vm379, %v2324, %v2332
    %v2334 = vrot.slane %v2285, 3
    %v2335 = vsel %vm379, %v2327, %v2334
    %v2336 = vrot.slane %v2286, 3
    %v2337 = vsel %vm379, %v2330, %v2336
    %v2344 = vpack.c.bf16 %v2306, %v2298
    %v2345 = vpack.c.bf16 %v2308, %v2301
    %v2346 = vpack.c.bf16 %v2310, %v2304
    %v2347 = vpack.c.bf16 %v2333, %v2325
    %v2348 = vpack.c.bf16 %v2335, %v2328
    %v2349 = vpack.c.bf16 %v2337, %v2331
    %s2350 = scalar_lea.vmem [#allocation6], 384
    %v2351 = vld [vmem:[%s2350] sm:$0xff]
    %v2352 = vld [vmem:[%s2350 + $0x8] sm:$0xff]
    %v2353 = vld [vmem:[%s2350 + $0x10] sm:$0xff]
    %v2354 = vld [vmem:[%s2350 + $0x18] sm:$0xff]
    %v2355 = vld [vmem:[%s2350 + $0x20] sm:$0xff]
    %v2356 = vld [vmem:[%s2350 + $0x28] sm:$0xff]
    %v2357 = vld [vmem:[%s2350 + $0x30] sm:$0xff]
    %v2358 = vld [vmem:[%s2350 + $0x38] sm:$0xff]
    %v2359 = vld [vmem:[%s2350 + $0x40] sm:$0xff]
    %v2360 = vld [vmem:[%s2350 + $0x48] sm:$0xff]
    %v2361 = vld [vmem:[%s2350 + $0x50] sm:$0xff]
    %v2362 = vld [vmem:[%s2350 + $0x58] sm:$0xff]
    %v2363 = vld [vmem:[%s2350 + $0x60] sm:$0xff]
    %v2364 = vld [vmem:[%s2350 + $0x68] sm:$0xff]
    %v2365 = vld [vmem:[%s2350 + $0x70] sm:$0xff]
    %v2366 = vld [vmem:[%s2350 + $0x78] sm:$0xff]
    %v2367 = vld [vmem:[%s2350 + $0x80] sm:$0xff]
    %v2368 = vld [vmem:[%s2350 + $0x88] sm:$0xff]
    %v2369 = vld [vmem:[%s2350 + $0x90] sm:$0xff]
    %v2370 = vld [vmem:[%s2350 + $0x98] sm:$0xff]
    %v2371 = vld [vmem:[%s2350 + $0xa0] sm:$0xff]
    %v2372 = vld [vmem:[%s2350 + $0xa8] sm:$0xff]
    %v2373 = vld [vmem:[%s2350 + $0xb0] sm:$0xff]
    %v2374 = vld [vmem:[%s2350 + $0xb8] sm:$0xff]
    %v2375 = vld [vmem:[%s2350 + $0xc0] sm:$0xff]
    %v2376 = vld [vmem:[%s2350 + $0xc8] sm:$0xff]
    %v2377 = vld [vmem:[%s2350 + $0xd0] sm:$0xff]
    %v2378 = vld [vmem:[%s2350 + $0xd8] sm:$0xff]
    %v2379 = vld [vmem:[%s2350 + $0xe0] sm:$0xff]
    %v2380 = vld [vmem:[%s2350 + $0xe8] sm:$0xff]
    %v2381 = vld [vmem:[%s2350 + $0xf0] sm:$0xff]
    %v2382 = vld [vmem:[%s2350 + $0xf8] sm:$0xff]
    %v2383 = vld [vmem:[%s2350 + $0x100] sm:$0xff]
    %v2384 = vld [vmem:[%s2350 + $0x108] sm:$0xff]
    %v2385 = vld [vmem:[%s2350 + $0x110] sm:$0xff]
    %v2386 = vld [vmem:[%s2350 + $0x118] sm:$0xff]
    %v2387 = vld [vmem:[%s2350 + $0x120] sm:$0xff]
    %v2388 = vld [vmem:[%s2350 + $0x128] sm:$0xff]
    %v2389 = vld [vmem:[%s2350 + $0x130] sm:$0xff]
    %v2390 = vld [vmem:[%s2350 + $0x138] sm:$0xff]
    %v2391 = vld [vmem:[%s2350 + $0x140] sm:$0xff]
    %v2392 = vld [vmem:[%s2350 + $0x148] sm:$0xff]
    %v2393 = vld [vmem:[%s2350 + $0x150] sm:$0xff]
    %v2394 = vld [vmem:[%s2350 + $0x158] sm:$0xff]
    %v2395 = vld [vmem:[%s2350 + $0x160] sm:$0xff]
    %v2396 = vld [vmem:[%s2350 + $0x168] sm:$0xff]
    %v2397 = vld [vmem:[%s2350 + $0x170] sm:$0xff]
    %v2398 = vld [vmem:[%s2350 + $0x178] sm:$0xff]
    %v2447 = vunpack.c.l.b16 %v2351
    %v2448 = vunpack.c.h.b16 %v2351
    %v2449 = vunpack.c.l.b16 %v2352
    %v2450 = vunpack.c.h.b16 %v2352
    %v2451 = vunpack.c.l.b16 %v2353
    %v2452 = vunpack.c.h.b16 %v2353
    %v2453 = vunpack.c.l.b16 %v2354
    %v2454 = vunpack.c.h.b16 %v2354
    %v2455 = vunpack.c.l.b16 %v2355
    %v2456 = vunpack.c.h.b16 %v2355
    %v2457 = vunpack.c.l.b16 %v2356
    %v2458 = vunpack.c.h.b16 %v2356
    %v2459 = vunpack.c.l.b16 %v2357
    %v2460 = vunpack.c.h.b16 %v2357
    %v2461 = vunpack.c.l.b16 %v2358
    %v2462 = vunpack.c.h.b16 %v2358
    %v2463 = vunpack.c.l.b16 %v2359
    %v2464 = vunpack.c.h.b16 %v2359
    %v2465 = vunpack.c.l.b16 %v2360
    %v2466 = vunpack.c.h.b16 %v2360
    %v2467 = vunpack.c.l.b16 %v2361
    %v2468 = vunpack.c.h.b16 %v2361
    %v2469 = vunpack.c.l.b16 %v2362
    %v2470 = vunpack.c.h.b16 %v2362
    %v2471 = vunpack.c.l.b16 %v2363
    %v2472 = vunpack.c.h.b16 %v2363
    %v2473 = vunpack.c.l.b16 %v2364
    %v2474 = vunpack.c.h.b16 %v2364
    %v2475 = vunpack.c.l.b16 %v2365
    %v2476 = vunpack.c.h.b16 %v2365
    %v2477 = vunpack.c.l.b16 %v2366
    %v2478 = vunpack.c.h.b16 %v2366
    %v2479 = vunpack.c.l.b16 %v2367
    %v2480 = vunpack.c.h.b16 %v2367
    %v2481 = vunpack.c.l.b16 %v2368
    %v2482 = vunpack.c.h.b16 %v2368
    %v2483 = vunpack.c.l.b16 %v2369
    %v2484 = vunpack.c.h.b16 %v2369
    %v2485 = vunpack.c.l.b16 %v2370
    %v2486 = vunpack.c.h.b16 %v2370
    %v2487 = vunpack.c.l.b16 %v2371
    %v2488 = vunpack.c.h.b16 %v2371
    %v2489 = vunpack.c.l.b16 %v2372
    %v2490 = vunpack.c.h.b16 %v2372
    %v2491 = vunpack.c.l.b16 %v2373
    %v2492 = vunpack.c.h.b16 %v2373
    %v2493 = vunpack.c.l.b16 %v2374
    %v2494 = vunpack.c.h.b16 %v2374
    %v2495 = vunpack.c.l.b16 %v2375
    %v2496 = vunpack.c.h.b16 %v2375
    %v2497 = vunpack.c.l.b16 %v2376
    %v2498 = vunpack.c.h.b16 %v2376
    %v2499 = vunpack.c.l.b16 %v2377
    %v2500 = vunpack.c.h.b16 %v2377
    %v2501 = vunpack.c.l.b16 %v2378
    %v2502 = vunpack.c.h.b16 %v2378
    %v2503 = vunpack.c.l.b16 %v2379
    %v2504 = vunpack.c.h.b16 %v2379
    %v2505 = vunpack.c.l.b16 %v2380
    %v2506 = vunpack.c.h.b16 %v2380
    %v2507 = vunpack.c.l.b16 %v2381
    %v2508 = vunpack.c.h.b16 %v2381
    %v2509 = vunpack.c.l.b16 %v2382
    %v2510 = vunpack.c.h.b16 %v2382
    %v2511 = vunpack.c.l.b16 %v2383
    %v2512 = vunpack.c.h.b16 %v2383
    %v2513 = vunpack.c.l.b16 %v2384
    %v2514 = vunpack.c.h.b16 %v2384
    %v2515 = vunpack.c.l.b16 %v2385
    %v2516 = vunpack.c.h.b16 %v2385
    %v2517 = vunpack.c.l.b16 %v2386
    %v2518 = vunpack.c.h.b16 %v2386
    %v2519 = vunpack.c.l.b16 %v2387
    %v2520 = vunpack.c.h.b16 %v2387
    %v2521 = vunpack.c.l.b16 %v2388
    %v2522 = vunpack.c.h.b16 %v2388
    %v2523 = vunpack.c.l.b16 %v2389
    %v2524 = vunpack.c.h.b16 %v2389
    %v2525 = vunpack.c.l.b16 %v2390
    %v2526 = vunpack.c.h.b16 %v2390
    %v2527 = vunpack.c.l.b16 %v2391
    %v2528 = vunpack.c.h.b16 %v2391
    %v2529 = vunpack.c.l.b16 %v2392
    %v2530 = vunpack.c.h.b16 %v2392
    %v2531 = vunpack.c.l.b16 %v2393
    %v2532 = vunpack.c.h.b16 %v2393
    %v2533 = vunpack.c.l.b16 %v2394
    %v2534 = vunpack.c.h.b16 %v2394
    %v2535 = vunpack.c.l.b16 %v2395
    %v2536 = vunpack.c.h.b16 %v2395
    %v2537 = vunpack.c.l.b16 %v2396
    %v2538 = vunpack.c.h.b16 %v2396
    %v2539 = vunpack.c.l.b16 %v2397
    %v2540 = vunpack.c.h.b16 %v2397
    %v2541 = vunpack.c.l.b16 %v2398
    %v2542 = vunpack.c.h.b16 %v2398
    %v2543 = vpack.c.b16 %v2449, %v2447
    %v2544 = vpack.c.b16 %v2450, %v2448
    %v2545 = vpack.c.b16 %v2453, %v2451
    %v2546 = vpack.c.b16 %v2454, %v2452
    %v2547 = vpack.c.b16 %v2457, %v2455
    %v2548 = vpack.c.b16 %v2458, %v2456
    %v2549 = vpack.c.b16 %v2461, %v2459
    %v2550 = vpack.c.b16 %v2462, %v2460
    %v2551 = vpack.c.b16 %v2465, %v2463
    %v2552 = vpack.c.b16 %v2466, %v2464
    %v2553 = vpack.c.b16 %v2469, %v2467
    %v2554 = vpack.c.b16 %v2470, %v2468
    %v2555 = vpack.c.b16 %v2473, %v2471
    %v2556 = vpack.c.b16 %v2474, %v2472
    %v2557 = vpack.c.b16 %v2477, %v2475
    %v2558 = vpack.c.b16 %v2478, %v2476
    %v2559 = vpack.c.b16 %v2481, %v2479
    %v2560 = vpack.c.b16 %v2482, %v2480
    %v2561 = vpack.c.b16 %v2485, %v2483
    %v2562 = vpack.c.b16 %v2486, %v2484
    %v2563 = vpack.c.b16 %v2489, %v2487
    %v2564 = vpack.c.b16 %v2490, %v2488
    %v2565 = vpack.c.b16 %v2493, %v2491
    %v2566 = vpack.c.b16 %v2494, %v2492
    %v2567 = vpack.c.b16 %v2497, %v2495
    %v2568 = vpack.c.b16 %v2498, %v2496
    %v2569 = vpack.c.b16 %v2501, %v2499
    %v2570 = vpack.c.b16 %v2502, %v2500
    %v2571 = vpack.c.b16 %v2505, %v2503
    %v2572 = vpack.c.b16 %v2506, %v2504
    %v2573 = vpack.c.b16 %v2509, %v2507
    %v2574 = vpack.c.b16 %v2510, %v2508
    %v2575 = vpack.c.b16 %v2513, %v2511
    %v2576 = vpack.c.b16 %v2514, %v2512
    %v2577 = vpack.c.b16 %v2517, %v2515
    %v2578 = vpack.c.b16 %v2518, %v2516
    %v2579 = vpack.c.b16 %v2521, %v2519
    %v2580 = vpack.c.b16 %v2522, %v2520
    %v2581 = vpack.c.b16 %v2525, %v2523
    %v2582 = vpack.c.b16 %v2526, %v2524
    %v2583 = vpack.c.b16 %v2529, %v2527
    %v2584 = vpack.c.b16 %v2530, %v2528
    %v2585 = vpack.c.b16 %v2533, %v2531
    %v2586 = vpack.c.b16 %v2534, %v2532
    %v2587 = vpack.c.b16 %v2537, %v2535
    %v2588 = vpack.c.b16 %v2538, %v2536
    %v2589 = vpack.c.b16 %v2541, %v2539
    %v2590 = vpack.c.b16 %v2542, %v2540
    %2639 = vmatprep.subr.bf16.mxu0 %v2544
    %2640 = vmatpush1.bf16.msra.mxu0 %v2543
    %2641 = vmatprep.subr.bf16.mxu0 %v2546
    %2642 = vmatpush1.bf16.msra.mxu0 %v2545
    %2643 = vmatprep.subr.bf16.mxu0 %v2548
    %2644 = vmatpush1.bf16.msra.mxu0 %v2547
    %2645 = vmatprep.subr.bf16.mxu0 %v2550
    %2646 = vmatpush1.bf16.msra.mxu0 %v2549
    %2647 = vmatprep.subr.bf16.mxu0 %v2552
    %2648 = vmatpush1.bf16.msra.mxu0 %v2551
    %2649 = vmatprep.subr.bf16.mxu0 %v2554
    %2650 = vmatpush1.bf16.msra.mxu0 %v2553
    %2651 = vmatprep.subr.bf16.mxu0 %v2556
    %2652 = vmatpush1.bf16.msra.mxu0 %v2555
    %2653 = vmatprep.subr.bf16.mxu0 %v2558
    %2654 = vmatpush1.bf16.msra.mxu0 %v2557
    %2655 = vmatprep.subr.bf16.mxu0 %v2560
    %2656 = vmatpush1.bf16.msra.mxu0 %v2559
    %2657 = vmatprep.subr.bf16.mxu0 %v2562
    %2658 = vmatpush1.bf16.msra.mxu0 %v2561
    %2659 = vmatprep.subr.bf16.mxu0 %v2564
    %2660 = vmatpush1.bf16.msra.mxu0 %v2563
    %2661 = vmatprep.subr.bf16.mxu0 %v2566
    %2662 = vmatpush1.bf16.msra.mxu0 %v2565
    %2663 = vmatprep.subr.bf16.mxu0 %v2568
    %2664 = vmatpush1.bf16.msra.mxu0 %v2567
    %2665 = vmatprep.subr.bf16.mxu0 %v2570
    %2666 = vmatpush1.bf16.msra.mxu0 %v2569
    %2667 = vmatprep.subr.bf16.mxu0 %v2572
    %2668 = vmatpush1.bf16.msra.mxu0 %v2571
    %2669 = vmatprep.subr.bf16.mxu0 %v2574
    %2670 = vmatpush1.bf16.msra.mxu0 %v2573
    %2671 = vmatprep.mubr.bf16.mxu0 %v2345
    %2672 = vmatmul.mubr.bf16.gmra.mrb[0].mxu0 %v2344
    %v2673 = vpop.f32.mrb[0].mxu0
    %v2674 = vadd.f32 0.0, %v2673
    %v2675 = vpop.f32.mrb[0].mxu0
    %v2676 = vadd.f32 0.0, %v2675
    %v2677 = vpop.f32.mrb[0].mxu0
    %v2678 = vadd.f32 0.0, %v2677
    %v2679 = vpop.f32.mrb[0].mxu0
    %v2680 = vadd.f32 0.0, %v2679
    %2681 = vmatprep.mubr.bf16.mxu0 %v2348
    %2682 = vmatmul.mubr.bf16.gmra.mrb[0].mxu0 %v2347
    %v2683 = vpop.f32.mrb[0].mxu0
    %v2684 = vadd.f32 0.0, %v2683
    %v2685 = vpop.f32.mrb[0].mxu0
    %v2686 = vadd.f32 0.0, %v2685
    %v2687 = vpop.f32.mrb[0].mxu0
    %v2688 = vadd.f32 0.0, %v2687
    %v2689 = vpop.f32.mrb[0].mxu0
    %v2690 = vadd.f32 0.0, %v2689
    %2691 = vdwg.mxu0
    %2692 = vmatprep.subr.bf16.mxu0 %v2576
    %2693 = vmatpush1.bf16.msra.mxu0 %v2575
    %2694 = vmatprep.subr.bf16.mxu0 %v2578
    %2695 = vmatpush1.bf16.msra.mxu0 %v2577
    %2696 = vmatprep.subr.bf16.mxu0 %v2580
    %2697 = vmatpush1.bf16.msra.mxu0 %v2579
    %2698 = vmatprep.subr.bf16.mxu0 %v2582
    %2699 = vmatpush1.bf16.msra.mxu0 %v2581
    %2700 = vmatprep.subr.bf16.mxu0 %v2584
    %2701 = vmatpush1.bf16.msra.mxu0 %v2583
    %2702 = vmatprep.subr.bf16.mxu0 %v2586
    %2703 = vmatpush1.bf16.msra.mxu0 %v2585
    %2704 = vmatprep.subr.bf16.mxu0 %v2588
    %2705 = vmatpush1.bf16.msra.mxu0 %v2587
    %2706 = vmatprep.subr.bf16.mxu0 %v2590
    %2707 = vmatpush1.bf16.msra.mxu0 %v2589
    %2708 = vmatprep.subr.bf16.mxu0 0
    %2709 = vmatpush1.bf16.msra.mxu0 0
    %2710 = vmatprep.subr.bf16.mxu0 0
    %2711 = vmatpush1.bf16.msra.mxu0 0
    %2712 = vmatprep.subr.bf16.mxu0 0
    %2713 = vmatpush1.bf16.msra.mxu0 0
    %2714 = vmatprep.subr.bf16.mxu0 0
    %2715 = vmatpush1.bf16.msra.mxu0 0
    %2716 = vmatprep.subr.bf16.mxu0 0
    %2717 = vmatpush1.bf16.msra.mxu0 0
    %2718 = vmatprep.subr.bf16.mxu0 0
    %2719 = vmatpush1.bf16.msra.mxu0 0
    %2720 = vmatprep.subr.bf16.mxu0 0
    %2721 = vmatpush1.bf16.msra.mxu0 0
    %2722 = vmatprep.subr.bf16.mxu0 0
    %2723 = vmatpush1.bf16.msra.mxu0 0
    %2724 = vmatprep.mubr.bf16.mxu0 0
    %2725 = vmatmul.mubr.bf16.gmra.mrb[0].mxu0 %v2346
    %v2726 = vpop.f32.mrb[0].mxu0
    %v2727 = vadd.f32 %v2674, %v2726
    %v2728 = vpop.f32.mrb[0].mxu0
    %v2729 = vadd.f32 %v2676, %v2728
    %v2730 = vpop.f32.mrb[0].mxu0
    %v2731 = vadd.f32 %v2678, %v2730
    %v2732 = vpop.f32.mrb[0].mxu0
    %v2733 = vadd.f32 %v2680, %v2732
    %2734 = vmatprep.mubr.bf16.mxu0 0
    %2735 = vmatmul.mubr.bf16.gmra.mrb[0].mxu0 %v2349
    %v2736 = vpop.f32.mrb[0].mxu0
    %v2737 = vadd.f32 %v2684, %v2736
    %v2738 = vpop.f32.mrb[0].mxu0
    %v2739 = vadd.f32 %v2686, %v2738
    %v2740 = vpop.f32.mrb[0].mxu0
    %v2741 = vadd.f32 %v2688, %v2740
    %v2742 = vpop.f32.mrb[0].mxu0
    %v2743 = vadd.f32 %v2690, %v2742
    %2744 = vdwg.mxu0
    %v2793 = vunpack.c.l.b16 %v2227
    %v2794 = vunpack.c.h.b16 %v2227
    %v2795 = vunpack.c.l.b16 %v2228
    %v2796 = vunpack.c.h.b16 %v2228
    %v2797 = vunpack.c.l.b16 %v2229
    %v2798 = vunpack.c.h.b16 %v2229
    %v2799 = vunpack.c.l.b16 %v2230
    %v2800 = vunpack.c.h.b16 %v2230
    %v2801 = vunpack.c.l.b16 %v2231
    %v2802 = vunpack.c.h.b16 %v2231
    %v2803 = vunpack.c.l.b16 %v2232
    %v2804 = vunpack.c.h.b16 %v2232
    %v2805 = vunpack.c.l.b16 %v2233
    %v2806 = vunpack.c.h.b16 %v2233
    %v2807 = vunpack.c.l.b16 %v2234
    %v2808 = vunpack.c.h.b16 %v2234
    %v2809 = vunpack.c.l.b16 %v2235
    %v2810 = vunpack.c.h.b16 %v2235
    %v2811 = vunpack.c.l.b16 %v2236
    %v2812 = vunpack.c.h.b16 %v2236
    %v2813 = vunpack.c.l.b16 %v2237
    %v2814 = vunpack.c.h.b16 %v2237
    %v2815 = vunpack.c.l.b16 %v2238
    %v2816 = vunpack.c.h.b16 %v2238
    %v2817 = vunpack.c.l.b16 %v2239
    %v2818 = vunpack.c.h.b16 %v2239
    %v2819 = vunpack.c.l.b16 %v2240
    %v2820 = vunpack.c.h.b16 %v2240
    %v2821 = vunpack.c.l.b16 %v2241
    %v2822 = vunpack.c.h.b16 %v2241
    %v2823 = vunpack.c.l.b16 %v2242
    %v2824 = vunpack.c.h.b16 %v2242
    %v2825 = vunpack.c.l.b16 %v2243
    %v2826 = vunpack.c.h.b16 %v2243
    %v2827 = vunpack.c.l.b16 %v2244
    %v2828 = vunpack.c.h.b16 %v2244
    %v2829 = vunpack.c.l.b16 %v2245
    %v2830 = vunpack.c.h.b16 %v2245
    %v2831 = vunpack.c.l.b16 %v2246
    %v2832 = vunpack.c.h.b16 %v2246
    %v2833 = vunpack.c.l.b16 %v2247
    %v2834 = vunpack.c.h.b16 %v2247
    %v2835 = vunpack.c.l.b16 %v2248
    %v2836 = vunpack.c.h.b16 %v2248
    %v2837 = vunpack.c.l.b16 %v2249
    %v2838 = vunpack.c.h.b16 %v2249
    %v2839 = vunpack.c.l.b16 %v2250
    %v2840 = vunpack.c.h.b16 %v2250
    %v2841 = vunpack.c.l.b16 %v2251
    %v2842 = vunpack.c.h.b16 %v2251
    %v2843 = vunpack.c.l.b16 %v2252
    %v2844 = vunpack.c.h.b16 %v2252
    %v2845 = vunpack.c.l.b16 %v2253
    %v2846 = vunpack.c.h.b16 %v2253
    %v2847 = vunpack.c.l.b16 %v2254
    %v2848 = vunpack.c.h.b16 %v2254
    %v2849 = vunpack.c.l.b16 %v2255
    %v2850 = vunpack.c.h.b16 %v2255
    %v2851 = vunpack.c.l.b16 %v2256
    %v2852 = vunpack.c.h.b16 %v2256
    %v2853 = vunpack.c.l.b16 %v2257
    %v2854 = vunpack.c.h.b16 %v2257
    %v2855 = vunpack.c.l.b16 %v2258
    %v2856 = vunpack.c.h.b16 %v2258
    %v2857 = vunpack.c.l.b16 %v2259
    %v2858 = vunpack.c.h.b16 %v2259
    %v2859 = vunpack.c.l.b16 %v2260
    %v2860 = vunpack.c.h.b16 %v2260
    %v2861 = vunpack.c.l.b16 %v2261
    %v2862 = vunpack.c.h.b16 %v2261
    %v2863 = vunpack.c.l.b16 %v2262
    %v2864 = vunpack.c.h.b16 %v2262
    %v2865 = vunpack.c.l.b16 %v2263
    %v2866 = vunpack.c.h.b16 %v2263
    %v2867 = vunpack.c.l.b16 %v2264
    %v2868 = vunpack.c.h.b16 %v2264
    %v2869 = vunpack.c.l.b16 %v2265
    %v2870 = vunpack.c.h.b16 %v2265
    %v2871 = vunpack.c.l.b16 %v2266
    %v2872 = vunpack.c.h.b16 %v2266
    %v2873 = vunpack.c.l.b16 %v2267
    %v2874 = vunpack.c.h.b16 %v2267
    %v2875 = vunpack.c.l.b16 %v2268
    %v2876 = vunpack.c.h.b16 %v2268
    %v2877 = vunpack.c.l.b16 %v2269
    %v2878 = vunpack.c.h.b16 %v2269
    %v2879 = vunpack.c.l.b16 %v2270
    %v2880 = vunpack.c.h.b16 %v2270
    %v2881 = vunpack.c.l.b16 %v2271
    %v2882 = vunpack.c.h.b16 %v2271
    %v2883 = vunpack.c.l.b16 %v2272
    %v2884 = vunpack.c.h.b16 %v2272
    %v2885 = vunpack.c.l.b16 %v2273
    %v2886 = vunpack.c.h.b16 %v2273
    %v2887 = vunpack.c.l.b16 %v2274
    %v2888 = vunpack.c.h.b16 %v2274
    %v2889 = vpack.c.b16 %v2795, %v2793
    %v2890 = vpack.c.b16 %v2796, %v2794
    %v2891 = vpack.c.b16 %v2799, %v2797
    %v2892 = vpack.c.b16 %v2800, %v2798
    %v2893 = vpack.c.b16 %v2803, %v2801
    %v2894 = vpack.c.b16 %v2804, %v2802
    %v2895 = vpack.c.b16 %v2807, %v2805
    %v2896 = vpack.c.b16 %v2808, %v2806
    %v2897 = vpack.c.b16 %v2811, %v2809
    %v2898 = vpack.c.b16 %v2812, %v2810
    %v2899 = vpack.c.b16 %v2815, %v2813
    %v2900 = vpack.c.b16 %v2816, %v2814
    %v2901 = vpack.c.b16 %v2819, %v2817
    %v2902 = vpack.c.b16 %v2820, %v2818
    %v2903 = vpack.c.b16 %v2823, %v2821
    %v2904 = vpack.c.b16 %v2824, %v2822
    %v2905 = vpack.c.b16 %v2827, %v2825
    %v2906 = vpack.c.b16 %v2828, %v2826
    %v2907 = vpack.c.b16 %v2831, %v2829
    %v2908 = vpack.c.b16 %v2832, %v2830
    %v2909 = vpack.c.b16 %v2835, %v2833
    %v2910 = vpack.c.b16 %v2836, %v2834
    %v2911 = vpack.c.b16 %v2839, %v2837
    %v2912 = vpack.c.b16 %v2840, %v2838
    %v2913 = vpack.c.b16 %v2843, %v2841
    %v2914 = vpack.c.b16 %v2844, %v2842
    %v2915 = vpack.c.b16 %v2847, %v2845
    %v2916 = vpack.c.b16 %v2848, %v2846
    %v2917 = vpack.c.b16 %v2851, %v2849
    %v2918 = vpack.c.b16 %v2852, %v2850
    %v2919 = vpack.c.b16 %v2855, %v2853
    %v2920 = vpack.c.b16 %v2856, %v2854
    %v2921 = vpack.c.b16 %v2859, %v2857
    %v2922 = vpack.c.b16 %v2860, %v2858
    %v2923 = vpack.c.b16 %v2863, %v2861
    %v2924 = vpack.c.b16 %v2864, %v2862
    %v2925 = vpack.c.b16 %v2867, %v2865
    %v2926 = vpack.c.b16 %v2868, %v2866
    %v2927 = vpack.c.b16 %v2871, %v2869
    %v2928 = vpack.c.b16 %v2872, %v2870
    %v2929 = vpack.c.b16 %v2875, %v2873
    %v2930 = vpack.c.b16 %v2876, %v2874
    %v2931 = vpack.c.b16 %v2879, %v2877
    %v2932 = vpack.c.b16 %v2880, %v2878
    %v2933 = vpack.c.b16 %v2883, %v2881
    %v2934 = vpack.c.b16 %v2884, %v2882
    %v2935 = vpack.c.b16 %v2887, %v2885
    %v2936 = vpack.c.b16 %v2888, %v2886
    %2985 = vmatprep.subr.bf16.mxu0 %v2890
    %2986 = vmatpush1.bf16.msra.mxu0 %v2889
    %2987 = vmatprep.subr.bf16.mxu0 %v2892
    %2988 = vmatpush1.bf16.msra.mxu0 %v2891
    %2989 = vmatprep.subr.bf16.mxu0 %v2894
    %2990 = vmatpush1.bf16.msra.mxu0 %v2893
    %2991 = vmatprep.subr.bf16.mxu0 %v2896
    %2992 = vmatpush1.bf16.msra.mxu0 %v2895
    %2993 = vmatprep.subr.bf16.mxu0 %v2898
    %2994 = vmatpush1.bf16.msra.mxu0 %v2897
    %2995 = vmatprep.subr.bf16.mxu0 %v2900
    %2996 = vmatpush1.bf16.msra.mxu0 %v2899
    %2997 = vmatprep.subr.bf16.mxu0 %v2902
    %2998 = vmatpush1.bf16.msra.mxu0 %v2901
    %2999 = vmatprep.subr.bf16.mxu0 %v2904
    %3000 = vmatpush1.bf16.msra.mxu0 %v2903
    %3001 = vmatprep.subr.bf16.mxu0 %v2906
    %3002 = vmatpush1.bf16.msra.mxu0 %v2905
    %3003 = vmatprep.subr.bf16.mxu0 %v2908
    %3004 = vmatpush1.bf16.msra.mxu0 %v2907
    %3005 = vmatprep.subr.bf16.mxu0 %v2910
    %3006 = vmatpush1.bf16.msra.mxu0 %v2909
    %3007 = vmatprep.subr.bf16.mxu0 %v2912
    %3008 = vmatpush1.bf16.msra.mxu0 %v2911
    %3009 = vmatprep.subr.bf16.mxu0 %v2914
    %3010 = vmatpush1.bf16.msra.mxu0 %v2913
    %3011 = vmatprep.subr.bf16.mxu0 %v2916
    %3012 = vmatpush1.bf16.msra.mxu0 %v2915
    %3013 = vmatprep.subr.bf16.mxu0 %v2918
    %3014 = vmatpush1.bf16.msra.mxu0 %v2917
    %3015 = vmatprep.subr.bf16.mxu0 %v2920
    %3016 = vmatpush1.bf16.msra.mxu0 %v2919
    %3017 = vmatprep.mubr.bf16.mxu0 %v2222
    %3018 = vmatmul.mubr.bf16.gmra.mrb[0].mxu0 %v2221
    %v3019 = vpop.f32.mrb[0].mxu0
    %v3020 = vadd.f32 %v2727, %v3019
    %v3021 = vpop.f32.mrb[0].mxu0
    %v3022 = vadd.f32 %v2729, %v3021
    %v3023 = vpop.f32.mrb[0].mxu0
    %v3024 = vadd.f32 %v2731, %v3023
    %v3025 = vpop.f32.mrb[0].mxu0
    %v3026 = vadd.f32 %v2733, %v3025
    %3027 = vmatprep.mubr.bf16.mxu0 %v2225
    %3028 = vmatmul.mubr.bf16.gmra.mrb[0].mxu0 %v2224
    %v3029 = vpop.f32.mrb[0].mxu0
    %v3030 = vadd.f32 %v2737, %v3029
    %v3031 = vpop.f32.mrb[0].mxu0
    %v3032 = vadd.f32 %v2739, %v3031
    %v3033 = vpop.f32.mrb[0].mxu0
    %v3034 = vadd.f32 %v2741, %v3033
    %v3035 = vpop.f32.mrb[0].mxu0
    %v3036 = vadd.f32 %v2743, %v3035
    %3037 = vdwg.mxu0
    %3038 = vmatprep.subr.bf16.mxu0 %v2922
    %3039 = vmatpush1.bf16.msra.mxu0 %v2921
    %3040 = vmatprep.subr.bf16.mxu0 %v2924
    %3041 = vmatpush1.bf16.msra.mxu0 %v2923
    %3042 = vmatprep.subr.bf16.mxu0 %v2926
    %3043 = vmatpush1.bf16.msra.mxu0 %v2925
    %3044 = vmatprep.subr.bf16.mxu0 %v2928
    %3045 = vmatpush1.bf16.msra.mxu0 %v2927
    %3046 = vmatprep.subr.bf16.mxu0 %v2930
    %3047 = vmatpush1.bf16.msra.mxu0 %v2929
    %3048 = vmatprep.subr.bf16.mxu0 %v2932
    %3049 = vmatpush1.bf16.msra.mxu0 %v2931
    %3050 = vmatprep.subr.bf16.mxu0 %v2934
    %3051 = vmatpush1.bf16.msra.mxu0 %v2933
    %3052 = vmatprep.subr.bf16.mxu0 %v2936
    %3053 = vmatpush1.bf16.msra.mxu0 %v2935
    %3054 = vmatprep.subr.bf16.mxu0 0
    %3055 = vmatpush1.bf16.msra.mxu0 0
    %3056 = vmatprep.subr.bf16.mxu0 0
    %3057 = vmatpush1.bf16.msra.mxu0 0
    %3058 = vmatprep.subr.bf16.mxu0 0
    %3059 = vmatpush1.bf16.msra.mxu0 0
    %3060 = vmatprep.subr.bf16.mxu0 0
    %3061 = vmatpush1.bf16.msra.mxu0 0
    %3062 = vmatprep.subr.bf16.mxu0 0
    %3063 = vmatpush1.bf16.msra.mxu0 0
    %3064 = vmatprep.subr.bf16.mxu0 0
    %3065 = vmatpush1.bf16.msra.mxu0 0
    %3066 = vmatprep.subr.bf16.mxu0 0
    %3067 = vmatpush1.bf16.msra.mxu0 0
    %3068 = vmatprep.subr.bf16.mxu0 0
    %3069 = vmatpush1.bf16.msra.mxu0 0
    %3070 = vmatprep.mubr.bf16.mxu0 0
    %3071 = vmatmul.mubr.bf16.gmra.mrb[0].mxu0 %v2223
    %v3072 = vpop.f32.mrb[0].mxu0
    %v3073 = vadd.f32 %v3020, %v3072
    %v3074 = vpop.f32.mrb[0].mxu0
    %v3075 = vadd.f32 %v3022, %v3074
    %v3076 = vpop.f32.mrb[0].mxu0
    %v3077 = vadd.f32 %v3024, %v3076
    %v3078 = vpop.f32.mrb[0].mxu0
    %v3079 = vadd.f32 %v3026, %v3078
    %3080 = vmatprep.mubr.bf16.mxu0 0
    %3081 = vmatmul.mubr.bf16.gmra.mrb[0].mxu0 %v2226
    %v3082 = vpop.f32.mrb[0].mxu0
    %v3083 = vadd.f32 %v3030, %v3082
    %v3084 = vpop.f32.mrb[0].mxu0
    %v3085 = vadd.f32 %v3032, %v3084
    %v3086 = vpop.f32.mrb[0].mxu0
    %v3087 = vadd.f32 %v3034, %v3086
    %v3088 = vpop.f32.mrb[0].mxu0
    %v3089 = vadd.f32 %v3036, %v3088
    %3090 = vdwg.mxu0
    %v3091 = vld [vmem:[#allocation2] sm:$0xfc]
    %v3092 = vld [vmem:[#allocation2 + $0x8] sm:$0xfc]
    %v3093 = vld [vmem:[#allocation2 + $0x10] sm:$0xfc]
    %v3094 = vld [vmem:[#allocation2 + $0x30] sm:$0x3]
    %v3095 = vld [vmem:[#allocation2 + $0x38] sm:$0x3]
    %v3096 = vld [vmem:[#allocation2 + $0x40] sm:$0x3]
    %v3097 = vld [vmem:[#allocation2 + $0x30] sm:$0xf0]
    %v3098 = vld [vmem:[#allocation2 + $0x38] sm:$0xf0]
    %v3099 = vld [vmem:[#allocation2 + $0x40] sm:$0xf0]
    %v3100 = vld [vmem:[#allocation2 + $0x60] sm:$0xf]
    %v3101 = vld [vmem:[#allocation2 + $0x68] sm:$0xf]
    %v3102 = vld [vmem:[#allocation2 + $0x70] sm:$0xf]
    %v3109 = vrot.slane %v3091, 2
    %v3110 = vrot.slane %v2179, 2
    %v3111 = vsel %vm254, %v3109, %v3110
    %v3112 = vrot.slane %v3092, 2
    %v3113 = vrot.slane %v2180, 2
    %v3114 = vsel %vm254, %v3112, %v3113
    %v3115 = vrot.slane %v3093, 2
    %v3116 = vrot.slane %v2181, 2
    %v3117 = vsel %vm254, %v3115, %v3116
    %v3118 = vrot.slane %v3094, 2
    %v3119 = vsel %vm254, %v3110, %v3118
    %v3120 = vrot.slane %v3095, 2
    %v3121 = vsel %vm254, %v3113, %v3120
    %v3122 = vrot.slane %v3096, 2
    %v3123 = vsel %vm254, %v3116, %v3122
    %v3136 = vrot.slane %v3097, 4
    %v3137 = vrot.slane %v2185, 4
    %v3138 = vsel %vm1193, %v3136, %v3137
    %v3139 = vrot.slane %v3098, 4
    %v3140 = vrot.slane %v2186, 4
    %v3141 = vsel %vm1193, %v3139, %v3140
    %v3142 = vrot.slane %v3099, 4
    %v3143 = vrot.slane %v2187, 4
    %v3144 = vsel %vm1193, %v3142, %v3143
    %v3145 = vrot.slane %v3100, 4
    %v3146 = vsel %vm1193, %v3137, %v3145
    %v3147 = vrot.slane %v3101, 4
    %v3148 = vsel %vm1193, %v3140, %v3147
    %v3149 = vrot.slane %v3102, 4
    %v3150 = vsel %vm1193, %v3143, %v3149
    %v3157 = vpack.c.bf16 %v3119, %v3111
    %v3158 = vpack.c.bf16 %v3121, %v3114
    %v3159 = vpack.c.bf16 %v3123, %v3117
    %v3160 = vpack.c.bf16 %v3146, %v3138
    %v3161 = vpack.c.bf16 %v3148, %v3141
    %v3162 = vpack.c.bf16 %v3150, %v3144
    %s3163 = scalar_lea.vmem [#allocation6], 768
    %v3164 = vld [vmem:[%s3163] sm:$0xff]
    %v3165 = vld [vmem:[%s3163 + $0x8] sm:$0xff]
    %v3166 = vld [vmem:[%s3163 + $0x10] sm:$0xff]
    %v3167 = vld [vmem:[%s3163 + $0x18] sm:$0xff]
    %v3168 = vld [vmem:[%s3163 + $0x20] sm:$0xff]
    %v3169 = vld [vmem:[%s3163 + $0x28] sm:$0xff]
    %v3170 = vld [vmem:[%s3163 + $0x30] sm:$0xff]
    %v3171 = vld [vmem:[%s3163 + $0x38] sm:$0xff]
    %v3172 = vld [vmem:[%s3163 + $0x40] sm:$0xff]
    %v3173 = vld [vmem:[%s3163 + $0x48] sm:$0xff]
    %v3174 = vld [vmem:[%s3163 + $0x50] sm:$0xff]
    %v3175 = vld [vmem:[%s3163 + $0x58] sm:$0xff]
    %v3176 = vld [vmem:[%s3163 + $0x60] sm:$0xff]
    %v3177 = vld [vmem:[%s3163 + $0x68] sm:$0xff]
    %v3178 = vld [vmem:[%s3163 + $0x70] sm:$0xff]
    %v3179 = vld [vmem:[%s3163 + $0x78] sm:$0xff]
    %v3180 = vld [vmem:[%s3163 + $0x80] sm:$0xff]
    %v3181 = vld [vmem:[%s3163 + $0x88] sm:$0xff]
    %v3182 = vld [vmem:[%s3163 + $0x90] sm:$0xff]
    %v3183 = vld [vmem:[%s3163 + $0x98] sm:$0xff]
    %v3184 = vld [vmem:[%s3163 + $0xa0] sm:$0xff]
    %v3185 = vld [vmem:[%s3163 + $0xa8] sm:$0xff]
    %v3186 = vld [vmem:[%s3163 + $0xb0] sm:$0xff]
    %v3187 = vld [vmem:[%s3163 + $0xb8] sm:$0xff]
    %v3188 = vld [vmem:[%s3163 + $0xc0] sm:$0xff]
    %v3189 = vld [vmem:[%s3163 + $0xc8] sm:$0xff]
    %v3190 = vld [vmem:[%s3163 + $0xd0] sm:$0xff]
    %v3191 = vld [vmem:[%s3163 + $0xd8] sm:$0xff]
    %v3192 = vld [vmem:[%s3163 + $0xe0] sm:$0xff]
    %v3193 = vld [vmem:[%s3163 + $0xe8] sm:$0xff]
    %v3194 = vld [vmem:[%s3163 + $0xf0] sm:$0xff]
    %v3195 = vld [vmem:[%s3163 + $0xf8] sm:$0xff]
    %v3196 = vld [vmem:[%s3163 + $0x100] sm:$0xff]
    %v3197 = vld [vmem:[%s3163 + $0x108] sm:$0xff]
    %v3198 = vld [vmem:[%s3163 + $0x110] sm:$0xff]
    %v3199 = vld [vmem:[%s3163 + $0x118] sm:$0xff]
    %v3200 = vld [vmem:[%s3163 + $0x120] sm:$0xff]
    %v3201 = vld [vmem:[%s3163 + $0x128] sm:$0xff]
    %v3202 = vld [vmem:[%s3163 + $0x130] sm:$0xff]
    %v3203 = vld [vmem:[%s3163 + $0x138] sm:$0xff]
    %v3204 = vld [vmem:[%s3163 + $0x140] sm:$0xff]
    %v3205 = vld [vmem:[%s3163 + $0x148] sm:$0xff]
    %v3206 = vld [vmem:[%s3163 + $0x150] sm:$0xff]
    %v3207 = vld [vmem:[%s3163 + $0x158] sm:$0xff]
    %v3208 = vld [vmem:[%s3163 + $0x160] sm:$0xff]
    %v3209 = vld [vmem:[%s3163 + $0x168] sm:$0xff]
    %v3210 = vld [vmem:[%s3163 + $0x170] sm:$0xff]
    %v3211 = vld [vmem:[%s3163 + $0x178] sm:$0xff]
    %v3260 = vunpack.c.l.b16 %v3164
    %v3261 = vunpack.c.h.b16 %v3164
    %v3262 = vunpack.c.l.b16 %v3165
    %v3263 = vunpack.c.h.b16 %v3165
    %v3264 = vunpack.c.l.b16 %v3166
    %v3265 = vunpack.c.h.b16 %v3166
    %v3266 = vunpack.c.l.b16 %v3167
    %v3267 = vunpack.c.h.b16 %v3167
    %v3268 = vunpack.c.l.b16 %v3168
    %v3269 = vunpack.c.h.b16 %v3168
    %v3270 = vunpack.c.l.b16 %v3169
    %v3271 = vunpack.c.h.b16 %v3169
    %v3272 = vunpack.c.l.b16 %v3170
    %v3273 = vunpack.c.h.b16 %v3170
    %v3274 = vunpack.c.l.b16 %v3171
    %v3275 = vunpack.c.h.b16 %v3171
    %v3276 = vunpack.c.l.b16 %v3172
    %v3277 = vunpack.c.h.b16 %v3172
    %v3278 = vunpack.c.l.b16 %v3173
    %v3279 = vunpack.c.h.b16 %v3173
    %v3280 = vunpack.c.l.b16 %v3174
    %v3281 = vunpack.c.h.b16 %v3174
    %v3282 = vunpack.c.l.b16 %v3175
    %v3283 = vunpack.c.h.b16 %v3175
    %v3284 = vunpack.c.l.b16 %v3176
    %v3285 = vunpack.c.h.b16 %v3176
    %v3286 = vunpack.c.l.b16 %v3177
    %v3287 = vunpack.c.h.b16 %v3177
    %v3288 = vunpack.c.l.b16 %v3178
    %v3289 = vunpack.c.h.b16 %v3178
    %v3290 = vunpack.c.l.b16 %v3179
    %v3291 = vunpack.c.h.b16 %v3179
    %v3292 = vunpack.c.l.b16 %v3180
    %v3293 = vunpack.c.h.b16 %v3180
    %v3294 = vunpack.c.l.b16 %v3181
    %v3295 = vunpack.c.h.b16 %v3181
    %v3296 = vunpack.c.l.b16 %v3182
    %v3297 = vunpack.c.h.b16 %v3182
    %v3298 = vunpack.c.l.b16 %v3183
    %v3299 = vunpack.c.h.b16 %v3183
    %v3300 = vunpack.c.l.b16 %v3184
    %v3301 = vunpack.c.h.b16 %v3184
    %v3302 = vunpack.c.l.b16 %v3185
    %v3303 = vunpack.c.h.b16 %v3185
    %v3304 = vunpack.c.l.b16 %v3186
    %v3305 = vunpack.c.h.b16 %v3186
    %v3306 = vunpack.c.l.b16 %v3187
    %v3307 = vunpack.c.h.b16 %v3187
    %v3308 = vunpack.c.l.b16 %v3188
    %v3309 = vunpack.c.h.b16 %v3188
    %v3310 = vunpack.c.l.b16 %v3189
    %v3311 = vunpack.c.h.b16 %v3189
    %v3312 = vunpack.c.l.b16 %v3190
    %v3313 = vunpack.c.h.b16 %v3190
    %v3314 = vunpack.c.l.b16 %v3191
    %v3315 = vunpack.c.h.b16 %v3191
    %v3316 = vunpack.c.l.b16 %v3192
    %v3317 = vunpack.c.h.b16 %v3192
    %v3318 = vunpack.c.l.b16 %v3193
    %v3319 = vunpack.c.h.b16 %v3193
    %v3320 = vunpack.c.l.b16 %v3194
    %v3321 = vunpack.c.h.b16 %v3194
    %v3322 = vunpack.c.l.b16 %v3195
    %v3323 = vunpack.c.h.b16 %v3195
    %v3324 = vunpack.c.l.b16 %v3196
    %v3325 = vunpack.c.h.b16 %v3196
    %v3326 = vunpack.c.l.b16 %v3197
    %v3327 = vunpack.c.h.b16 %v3197
    %v3328 = vunpack.c.l.b16 %v3198
    %v3329 = vunpack.c.h.b16 %v3198
    %v3330 = vunpack.c.l.b16 %v3199
    %v3331 = vunpack.c.h.b16 %v3199
    %v3332 = vunpack.c.l.b16 %v3200
    %v3333 = vunpack.c.h.b16 %v3200
    %v3334 = vunpack.c.l.b16 %v3201
    %v3335 = vunpack.c.h.b16 %v3201
    %v3336 = vunpack.c.l.b16 %v3202
    %v3337 = vunpack.c.h.b16 %v3202
    %v3338 = vunpack.c.l.b16 %v3203
    %v3339 = vunpack.c.h.b16 %v3203
    %v3340 = vunpack.c.l.b16 %v3204
    %v3341 = vunpack.c.h.b16 %v3204
    %v3342 = vunpack.c.l.b16 %v3205
    %v3343 = vunpack.c.h.b16 %v3205
    %v3344 = vunpack.c.l.b16 %v3206
    %v3345 = vunpack.c.h.b16 %v3206
    %v3346 = vunpack.c.l.b16 %v3207
    %v3347 = vunpack.c.h.b16 %v3207
    %v3348 = vunpack.c.l.b16 %v3208
    %v3349 = vunpack.c.h.b16 %v3208
    %v3350 = vunpack.c.l.b16 %v3209
    %v3351 = vunpack.c.h.b16 %v3209
    %v3352 = vunpack.c.l.b16 %v3210
    %v3353 = vunpack.c.h.b16 %v3210
    %v3354 = vunpack.c.l.b16 %v3211
    %v3355 = vunpack.c.h.b16 %v3211
    %v3356 = vpack.c.b16 %v3262, %v3260
    %v3357 = vpack.c.b16 %v3263, %v3261
    %v3358 = vpack.c.b16 %v3266, %v3264
    %v3359 = vpack.c.b16 %v3267, %v3265
    %v3360 = vpack.c.b16 %v3270, %v3268
    %v3361 = vpack.c.b16 %v3271, %v3269
    %v3362 = vpack.c.b16 %v3274, %v3272
    %v3363 = vpack.c.b16 %v3275, %v3273
    %v3364 = vpack.c.b16 %v3278, %v3276
    %v3365 = vpack.c.b16 %v3279, %v3277
    %v3366 = vpack.c.b16 %v3282, %v3280
    %v3367 = vpack.c.b16 %v3283, %v3281
    %v3368 = vpack.c.b16 %v3286, %v3284
    %v3369 = vpack.c.b16 %v3287, %v3285
    %v3370 = vpack.c.b16 %v3290, %v3288
    %v3371 = vpack.c.b16 %v3291, %v3289
    %v3372 = vpack.c.b16 %v3294, %v3292
    %v3373 = vpack.c.b16 %v3295, %v3293
    %v3374 = vpack.c.b16 %v3298, %v3296
    %v3375 = vpack.c.b16 %v3299, %v3297
    %v3376 = vpack.c.b16 %v3302, %v3300
    %v3377 = vpack.c.b16 %v3303, %v3301
    %v3378 = vpack.c.b16 %v3306, %v3304
    %v3379 = vpack.c.b16 %v3307, %v3305
    %v3380 = vpack.c.b16 %v3310, %v3308
    %v3381 = vpack.c.b16 %v3311, %v3309
    %v3382 = vpack.c.b16 %v3314, %v3312
    %v3383 = vpack.c.b16 %v3315, %v3313
    %v3384 = vpack.c.b16 %v3318, %v3316
    %v3385 = vpack.c.b16 %v3319, %v3317
    %v3386 = vpack.c.b16 %v3322, %v3320
    %v3387 = vpack.c.b16 %v3323, %v3321
    %v3388 = vpack.c.b16 %v3326, %v3324
    %v3389 = vpack.c.b16 %v3327, %v3325
    %v3390 = vpack.c.b16 %v3330, %v3328
    %v3391 = vpack.c.b16 %v3331, %v3329
    %v3392 = vpack.c.b16 %v3334, %v3332
    %v3393 = vpack.c.b16 %v3335, %v3333
    %v3394 = vpack.c.b16 %v3338, %v3336
    %v3395 = vpack.c.b16 %v3339, %v3337
    %v3396 = vpack.c.b16 %v3342, %v3340
    %v3397 = vpack.c.b16 %v3343, %v3341
    %v3398 = vpack.c.b16 %v3346, %v3344
    %v3399 = vpack.c.b16 %v3347, %v3345
    %v3400 = vpack.c.b16 %v3350, %v3348
    %v3401 = vpack.c.b16 %v3351, %v3349
    %v3402 = vpack.c.b16 %v3354, %v3352
    %v3403 = vpack.c.b16 %v3355, %v3353
    %3452 = vmatprep.subr.bf16.mxu0 %v3357
    %3453 = vmatpush1.bf16.msra.mxu0 %v3356
    %3454 = vmatprep.subr.bf16.mxu0 %v3359
    %3455 = vmatpush1.bf16.msra.mxu0 %v3358
    %3456 = vmatprep.subr.bf16.mxu0 %v3361
    %3457 = vmatpush1.bf16.msra.mxu0 %v3360
    %3458 = vmatprep.subr.bf16.mxu0 %v3363
    %3459 = vmatpush1.bf16.msra.mxu0 %v3362
    %3460 = vmatprep.subr.bf16.mxu0 %v3365
    %3461 = vmatpush1.bf16.msra.mxu0 %v3364
    %3462 = vmatprep.subr.bf16.mxu0 %v3367
    %3463 = vmatpush1.bf16.msra.mxu0 %v3366
    %3464 = vmatprep.subr.bf16.mxu0 %v3369
    %3465 = vmatpush1.bf16.msra.mxu0 %v3368
    %3466 = vmatprep.subr.bf16.mxu0 %v3371
    %3467 = vmatpush1.bf16.msra.mxu0 %v3370
    %3468 = vmatprep.subr.bf16.mxu0 %v3373
    %3469 = vmatpush1.bf16.msra.mxu0 %v3372
    %3470 = vmatprep.subr.bf16.mxu0 %v3375
    %3471 = vmatpush1.bf16.msra.mxu0 %v3374
    %3472 = vmatprep.subr.bf16.mxu0 %v3377
    %3473 = vmatpush1.bf16.msra.mxu0 %v3376
    %3474 = vmatprep.subr.bf16.mxu0 %v3379
    %3475 = vmatpush1.bf16.msra.mxu0 %v3378
    %3476 = vmatprep.subr.bf16.mxu0 %v3381
    %3477 = vmatpush1.bf16.msra.mxu0 %v3380
    %3478 = vmatprep.subr.bf16.mxu0 %v3383
    %3479 = vmatpush1.bf16.msra.mxu0 %v3382
    %3480 = vmatprep.subr.bf16.mxu0 %v3385
    %3481 = vmatpush1.bf16.msra.mxu0 %v3384
    %3482 = vmatprep.subr.bf16.mxu0 %v3387
    %3483 = vmatpush1.bf16.msra.mxu0 %v3386
    %3484 = vmatprep.mubr.bf16.mxu0 %v3158
    %3485 = vmatmul.mubr.bf16.gmra.mrb[0].mxu0 %v3157
    %v3486 = vpop.f32.mrb[0].mxu0
    %v3487 = vadd.f32 0.0, %v3486
    %v3488 = vpop.f32.mrb[0].mxu0
    %v3489 = vadd.f32 0.0, %v3488
    %v3490 = vpop.f32.mrb[0].mxu0
    %v3491 = vadd.f32 0.0, %v3490
    %v3492 = vpop.f32.mrb[0].mxu0
    %v3493 = vadd.f32 0.0, %v3492
    %3494 = vmatprep.mubr.bf16.mxu0 %v3161
    %3495 = vmatmul.mubr.bf16.gmra.mrb[0].mxu0 %v3160
    %v3496 = vpop.f32.mrb[0].mxu0
    %v3497 = vadd.f32 0.0, %v3496
    %v3498 = vpop.f32.mrb[0].mxu0
    %v3499 = vadd.f32 0.0, %v3498
    %v3500 = vpop.f32.mrb[0].mxu0
    %v3501 = vadd.f32 0.0, %v3500
    %v3502 = vpop.f32.mrb[0].mxu0
    %v3503 = vadd.f32 0.0, %v3502
    %3504 = vdwg.mxu0
    %3505 = vmatprep.subr.bf16.mxu0 %v3389
    %3506 = vmatpush1.bf16.msra.mxu0 %v3388
    %3507 = vmatprep.subr.bf16.mxu0 %v3391
    %3508 = vmatpush1.bf16.msra.mxu0 %v3390
    %3509 = vmatprep.subr.bf16.mxu0 %v3393
    %3510 = vmatpush1.bf16.msra.mxu0 %v3392
    %3511 = vmatprep.subr.bf16.mxu0 %v3395
    %3512 = vmatpush1.bf16.msra.mxu0 %v3394
    %3513 = vmatprep.subr.bf16.mxu0 %v3397
    %3514 = vmatpush1.bf16.msra.mxu0 %v3396
    %3515 = vmatprep.subr.bf16.mxu0 %v3399
    %3516 = vmatpush1.bf16.msra.mxu0 %v3398
    %3517 = vmatprep.subr.bf16.mxu0 %v3401
    %3518 = vmatpush1.bf16.msra.mxu0 %v3400
    %3519 = vmatprep.subr.bf16.mxu0 %v3403
    %3520 = vmatpush1.bf16.msra.mxu0 %v3402
    %3521 = vmatprep.subr.bf16.mxu0 0
    %3522 = vmatpush1.bf16.msra.mxu0 0
    %3523 = vmatprep.subr.bf16.mxu0 0
    %3524 = vmatpush1.bf16.msra.mxu0 0
    %3525 = vmatprep.subr.bf16.mxu0 0
    %3526 = vmatpush1.bf16.msra.mxu0 0
    %3527 = vmatprep.subr.bf16.mxu0 0
    %3528 = vmatpush1.bf16.msra.mxu0 0
    %3529 = vmatprep.subr.bf16.mxu0 0
    %3530 = vmatpush1.bf16.msra.mxu0 0
    %3531 = vmatprep.subr.bf16.mxu0 0
    %3532 = vmatpush1.bf16.msra.mxu0 0
    %3533 = vmatprep.subr.bf16.mxu0 0
    %3534 = vmatpush1.bf16.msra.mxu0 0
    %3535 = vmatprep.subr.bf16.mxu0 0
    %3536 = vmatpush1.bf16.msra.mxu0 0
    %3537 = vmatprep.mubr.bf16.mxu0 0
    %3538 = vmatmul.mubr.bf16.gmra.mrb[0].mxu0 %v3159
    %v3539 = vpop.f32.mrb[0].mxu0
    %v3540 = vadd.f32 %v3487, %v3539
    %v3541 = vpop.f32.mrb[0].mxu0
    %v3542 = vadd.f32 %v3489, %v3541
    %v3543 = vpop.f32.mrb[0].mxu0
    %v3544 = vadd.f32 %v3491, %v3543
    %v3545 = vpop.f32.mrb[0].mxu0
    %v3546 = vadd.f32 %v3493, %v3545
    %3547 = vmatprep.mubr.bf16.mxu0 0
    %3548 = vmatmul.mubr.bf16.gmra.mrb[0].mxu0 %v3162
    %v3549 = vpop.f32.mrb[0].mxu0
    %v3550 = vadd.f32 %v3497, %v3549
    %v3551 = vpop.f32.mrb[0].mxu0
    %v3552 = vadd.f32 %v3499, %v3551
    %v3553 = vpop.f32.mrb[0].mxu0
    %v3554 = vadd.f32 %v3501, %v3553
    %v3555 = vpop.f32.mrb[0].mxu0
    %v3556 = vadd.f32 %v3503, %v3555
    %3557 = vdwg.mxu0
    %v3558 = vadd.f32 %v3073, %v3540
    %v3559 = vadd.f32 %v3075, %v3542
    %v3560 = vadd.f32 %v3077, %v3544
    %v3561 = vadd.f32 %v3079, %v3546
    %v3562 = vadd.f32 %v3083, %v3550
    %v3563 = vadd.f32 %v3085, %v3552
    %v3564 = vadd.f32 %v3087, %v3554
    %v3565 = vadd.f32 %v3089, %v3556
    %v3567 = vlaneseq
    %v3568 = vshrl.u32 %v3567, 7
    %v3569 = vsub.s32 0, %v3568
    %v3570 = vrot.slane %v2175, %v3569
    %v3571 = vlaneseq
    %v3572 = vshrl.u32 %v3571, 7
    %v3573 = vsub.s32 1, %v3572
    %v3574 = vrot.slane %v2175, %v3573
    %v3577 = vadd.f32 %v3558, %v3570
    %v3578 = vadd.f32 %v3559, %v3574
    %v3579 = vadd.f32 %v3560, %v3570
    %v3580 = vadd.f32 %v3561, %v3574
    %v3581 = vadd.f32 %v3562, %v3570
    %v3582 = vadd.f32 %v3563, %v3574
    %v3583 = vadd.f32 %v3564, %v3570
    %v3584 = vadd.f32 %v3565, %v3574
    %v3585 = vld [vmem:[%s7] sm:$0x3]
    %v3586 = vld [vmem:[%s8] sm:$0x3]
    %v3587 = vadd.f32 %v3577, %v3579
    %v3588 = vadd.f32 %v3587, %v3581
    %v3589 = vadd.f32 %v3588, %v3583
    %v3590 = vrot.slane %v3589, 4
    %v3591 = vadd.f32 %v3589, %v3590
    %v3592 = vrot.slane %v3591, 2
    %v3593 = vadd.f32 %v3591, %v3592
    %v3594 = vrot.slane %v3593, 1
    %v3595 = vadd.f32 %v3593, %v3594
    %v3596 = vadd.f32 %v3578, %v3580
    %v3597 = vadd.f32 %v3596, %v3582
    %v3598 = vadd.f32 %v3597, %v3584
    %v3599 = vrot.slane %v3598, 4
    %v3600 = vadd.f32 %v3598, %v3599
    %v3601 = vrot.slane %v3600, 2
    %v3602 = vadd.f32 %v3600, %v3601
    %v3603 = vrot.slane %v3602, 1
    %v3604 = vadd.f32 %v3602, %v3603
    %3605 = vmatprep.subr.mxu0 0.0
    %3606 = vmatpush1.msra.mxu0 %v72
    %3607 = vmatprep.subr.mxu0 0.0
    %3608 = vmatpush1.msra.mxu0 %v73
    %3609 = vmatprep.subr.mxu0 0.0
    %3610 = vmatpush1.msra.mxu0 %v74
    %3611 = vmatprep.subr.mxu0 0.0
    %3612 = vmatpush1.msra.mxu0 %v75
    %3613 = vmatprep.subr.mxu0 0.0
    %3614 = vmatpush1.msra.mxu0 %v76
    %3615 = vmatprep.subr.mxu0 0.0
    %3616 = vmatpush1.msra.mxu0 %v77
    %3617 = vmatprep.subr.mxu0 0.0
    %3618 = vmatpush1.msra.mxu0 %v78
    %3619 = vmatprep.subr.mxu0 0.0
    %3620 = vmatpush1.msra.mxu0 %v79
    %3621 = vmatprep.subr.mxu0 0.0
    %3622 = vmatpush1.msra.mxu0 %v80
    %3623 = vmatprep.subr.mxu0 0.0
    %3624 = vmatpush1.msra.mxu0 %v81
    %3625 = vmatprep.subr.mxu0 0.0
    %3626 = vmatpush1.msra.mxu0 %v82
    %3627 = vmatprep.subr.mxu0 0.0
    %3628 = vmatpush1.msra.mxu0 %v83
    %3629 = vmatprep.subr.mxu0 0.0
    %3630 = vmatpush1.msra.mxu0 %v84
    %3631 = vmatprep.subr.mxu0 0.0
    %3632 = vmatpush1.msra.mxu0 %v85
    %3633 = vmatprep.subr.mxu0 0.0
    %3634 = vmatpush1.msra.mxu0 %v86
    %3635 = vmatprep.subr.mxu0 0.0
    %3636 = vmatpush1.msra.mxu0 %v87
    %3637 = vmatprep.subr.mxu0 0.0
    %3638 = vmatpush1.msra.mxu0 %v88
    %3639 = vmatprep.subr.mxu0 0.0
    %3640 = vmatpush1.msra.mxu0 %v89
    %3641 = vmatprep.subr.mxu0 0.0
    %3642 = vmatpush1.msra.mxu0 %v90
    %3643 = vmatprep.subr.mxu0 0.0
    %3644 = vmatpush1.msra.mxu0 %v91
    %3645 = vmatprep.subr.mxu0 0.0
    %3646 = vmatpush1.msra.mxu0 %v92
    %3647 = vmatprep.subr.mxu0 0.0
    %3648 = vmatpush1.msra.mxu0 %v93
    %3649 = vmatprep.subr.mxu0 0.0
    %3650 = vmatpush1.msra.mxu0 %v94
    %3651 = vmatprep.subr.mxu0 0.0
    %3652 = vmatpush1.msra.mxu0 %v95
    %3653 = vmatprep.subr.mxu0 0.0
    %3654 = vmatpush1.msra.mxu0 %v96
    %3655 = vmatprep.subr.mxu0 0.0
    %3656 = vmatpush1.msra.mxu0 %v97
    %3657 = vmatprep.subr.mxu0 0.0
    %3658 = vmatpush1.msra.mxu0 %v98
    %3659 = vmatprep.subr.mxu0 0.0
    %3660 = vmatpush1.msra.mxu0 %v99
    %3661 = vmatprep.subr.mxu0 0.0
    %3662 = vmatpush1.msra.mxu0 %v100
    %3663 = vmatprep.subr.mxu0 0.0
    %3664 = vmatpush1.msra.mxu0 %v101
    %3665 = vmatprep.subr.mxu0 0.0
    %3666 = vmatpush1.msra.mxu0 %v102
    %3667 = vmatprep.subr.mxu0 0.0
    %3668 = vmatpush1.msra.mxu0 %v103
    %3669 = vmatprep.mubr.f32.mxu0 %v3604
    %3670 = vmatmul.mubr.f32.gmra.mrb[0].mxu0 %v3595
    %v3671 = vpop.f32.mrb[0].mxu0
    %v3672 = vadd.f32 0.0, %v3671
    %v3673 = vpop.f32.mrb[0].mxu0
    %3674 = vdwg.mxu0
    %v3675 = vmul.f32 %v3672, 0.001953125
    %v3677 = vsel %vm154, %v3675, 0
    %3679 = vmatprep.subr.mxu0 %v105
    %3680 = vmatpush1.msra.mxu0 %v104
    %3681 = vmatprep.subr.mxu0 %v107
    %3682 = vmatpush1.msra.mxu0 %v106
    %3683 = vmatprep.subr.mxu0 0.0
    %3684 = vmatpush1.msra.mxu0 0.0
    %3685 = vmatprep.subr.mxu0 0.0
    %3686 = vmatpush1.msra.mxu0 0.0
    %3687 = vmatprep.subr.mxu0 0.0
    %3688 = vmatpush1.msra.mxu0 0.0
    %3689 = vmatprep.subr.mxu0 0.0
    %3690 = vmatpush1.msra.mxu0 0.0
    %3691 = vmatprep.subr.mxu0 0.0
    %3692 = vmatpush1.msra.mxu0 0.0
    %3693 = vmatprep.subr.mxu0 0.0
    %3694 = vmatpush1.msra.mxu0 0.0
    %3695 = vmatprep.subr.mxu0 0.0
    %3696 = vmatpush1.msra.mxu0 0.0
    %3697 = vmatprep.subr.mxu0 0.0
    %3698 = vmatpush1.msra.mxu0 0.0
    %3699 = vmatprep.subr.mxu0 0.0
    %3700 = vmatpush1.msra.mxu0 0.0
    %3701 = vmatprep.subr.mxu0 0.0
    %3702 = vmatpush1.msra.mxu0 0.0
    %3703 = vmatprep.subr.mxu0 0.0
    %3704 = vmatpush1.msra.mxu0 0.0
    %3705 = vmatprep.subr.mxu0 0.0
    %3706 = vmatpush1.msra.mxu0 0.0
    %3707 = vmatprep.subr.mxu0 0.0
    %3708 = vmatpush1.msra.mxu0 0.0
    %3709 = vmatprep.subr.mxu0 0.0
    %3710 = vmatpush1.msra.mxu0 0.0
    %3711 = vmatprep.subr.mxu0 0.0
    %3712 = vmatpush1.msra.mxu0 0.0
    %3713 = vmatprep.subr.mxu0 0.0
    %3714 = vmatpush1.msra.mxu0 0.0
    %3715 = vmatprep.subr.mxu0 0.0
    %3716 = vmatpush1.msra.mxu0 0.0
    %3717 = vmatprep.subr.mxu0 0.0
    %3718 = vmatpush1.msra.mxu0 0.0
    %3719 = vmatprep.subr.mxu0 0.0
    %3720 = vmatpush1.msra.mxu0 0.0
    %3721 = vmatprep.subr.mxu0 0.0
    %3722 = vmatpush1.msra.mxu0 0.0
    %3723 = vmatprep.subr.mxu0 0.0
    %3724 = vmatpush1.msra.mxu0 0.0
    %3725 = vmatprep.subr.mxu0 0.0
    %3726 = vmatpush1.msra.mxu0 0.0
    %3727 = vmatprep.subr.mxu0 0.0
    %3728 = vmatpush1.msra.mxu0 0.0
    %3729 = vmatprep.subr.mxu0 0.0
    %3730 = vmatpush1.msra.mxu0 0.0
    %3731 = vmatprep.subr.mxu0 0.0
    %3732 = vmatpush1.msra.mxu0 0.0
    %3733 = vmatprep.subr.mxu0 0.0
    %3734 = vmatpush1.msra.mxu0 0.0
    %3735 = vmatprep.subr.mxu0 0.0
    %3736 = vmatpush1.msra.mxu0 0.0
    %3737 = vmatprep.subr.mxu0 0.0
    %3738 = vmatpush1.msra.mxu0 0.0
    %3739 = vmatprep.subr.mxu0 0.0
    %3740 = vmatpush1.msra.mxu0 0.0
    %3741 = vmatprep.subr.mxu0 0.0
    %3742 = vmatpush1.msra.mxu0 0.0
    %3743 = vmatprep.mubr.f32.mxu0 0.0
    %3744 = vmatmul.mubr.f32.gmra.mrb[0].mxu0 %v3677
    %v3745 = vpop.f32.mrb[0].mxu0
    %v3746 = vadd.f32 0.0, %v3745
    %v3747 = vpop.f32.mrb[0].mxu0
    %v3748 = vadd.f32 0.0, %v3747
    %3749 = vdwg.mxu0
    %v3750 = vlaneseq
    %v3751 = vshrl.u32 %v3750, 7
    %v3752 = vsub.s32 0, %v3751
    %v3753 = vrot.slane %v3746, %v3752
    %v3754 = vlaneseq
    %v3755 = vshrl.u32 %v3754, 7
    %v3756 = vsub.s32 0, %v3755
    %v3757 = vrot.slane %v3748, %v3756
    %v3758 = vsub.f32 %v3577, %v3753
    %v3759 = vsub.f32 %v3578, %v3757
    %v3760 = vsub.f32 %v3579, %v3753
    %v3761 = vsub.f32 %v3580, %v3757
    %v3762 = vsub.f32 %v3581, %v3753
    %v3763 = vsub.f32 %v3582, %v3757
    %v3764 = vsub.f32 %v3583, %v3753
    %v3765 = vsub.f32 %v3584, %v3757
    %v3766 = vmul.f32 %v3758, %v3758
    %v3767 = vmul.f32 %v3759, %v3759
    %v3768 = vmul.f32 %v3760, %v3760
    %v3769 = vmul.f32 %v3761, %v3761
    %v3770 = vmul.f32 %v3762, %v3762
    %v3771 = vmul.f32 %v3763, %v3763
    %v3772 = vmul.f32 %v3764, %v3764
    %v3773 = vmul.f32 %v3765, %v3765
    %v3774 = vadd.f32 %v3766, %v3768
    %v3775 = vadd.f32 %v3774, %v3770
    %v3776 = vadd.f32 %v3775, %v3772
    %v3777 = vrot.slane %v3776, 4
    %v3778 = vadd.f32 %v3776, %v3777
    %v3779 = vrot.slane %v3778, 2
    %v3780 = vadd.f32 %v3778, %v3779
    %v3781 = vrot.slane %v3780, 1
    %v3782 = vadd.f32 %v3780, %v3781
    %v3783 = vadd.f32 %v3767, %v3769
    %v3784 = vadd.f32 %v3783, %v3771
    %v3785 = vadd.f32 %v3784, %v3773
    %v3786 = vrot.slane %v3785, 4
    %v3787 = vadd.f32 %v3785, %v3786
    %v3788 = vrot.slane %v3787, 2
    %v3789 = vadd.f32 %v3787, %v3788
    %v3790 = vrot.slane %v3789, 1
    %v3791 = vadd.f32 %v3789, %v3790
    %3792 = vmatprep.subr.mxu0 0.0
    %3793 = vmatpush1.msra.mxu0 %v72
    %3794 = vmatprep.subr.mxu0 0.0
    %3795 = vmatpush1.msra.mxu0 %v73
    %3796 = vmatprep.subr.mxu0 0.0
    %3797 = vmatpush1.msra.mxu0 %v74
    %3798 = vmatprep.subr.mxu0 0.0
    %3799 = vmatpush1.msra.mxu0 %v75
    %3800 = vmatprep.subr.mxu0 0.0
    %3801 = vmatpush1.msra.mxu0 %v76
    %3802 = vmatprep.subr.mxu0 0.0
    %3803 = vmatpush1.msra.mxu0 %v77
    %3804 = vmatprep.subr.mxu0 0.0
    %3805 = vmatpush1.msra.mxu0 %v78
    %3806 = vmatprep.subr.mxu0 0.0
    %3807 = vmatpush1.msra.mxu0 %v79
    %3808 = vmatprep.subr.mxu0 0.0
    %3809 = vmatpush1.msra.mxu0 %v80
    %3810 = vmatprep.subr.mxu0 0.0
    %3811 = vmatpush1.msra.mxu0 %v81
    %3812 = vmatprep.subr.mxu0 0.0
    %3813 = vmatpush1.msra.mxu0 %v82
    %3814 = vmatprep.subr.mxu0 0.0
    %3815 = vmatpush1.msra.mxu0 %v83
    %3816 = vmatprep.subr.mxu0 0.0
    %3817 = vmatpush1.msra.mxu0 %v84
    %3818 = vmatprep.subr.mxu0 0.0
    %3819 = vmatpush1.msra.mxu0 %v85
    %3820 = vmatprep.subr.mxu0 0.0
    %3821 = vmatpush1.msra.mxu0 %v86
    %3822 = vmatprep.subr.mxu0 0.0
    %3823 = vmatpush1.msra.mxu0 %v87
    %3824 = vmatprep.subr.mxu0 0.0
    %3825 = vmatpush1.msra.mxu0 %v88
    %3826 = vmatprep.subr.mxu0 0.0
    %3827 = vmatpush1.msra.mxu0 %v89
    %3828 = vmatprep.subr.mxu0 0.0
    %3829 = vmatpush1.msra.mxu0 %v90
    %3830 = vmatprep.subr.mxu0 0.0
    %3831 = vmatpush1.msra.mxu0 %v91
    %3832 = vmatprep.subr.mxu0 0.0
    %3833 = vmatpush1.msra.mxu0 %v92
    %3834 = vmatprep.subr.mxu0 0.0
    %3835 = vmatpush1.msra.mxu0 %v93
    %3836 = vmatprep.subr.mxu0 0.0
    %3837 = vmatpush1.msra.mxu0 %v94
    %3838 = vmatprep.subr.mxu0 0.0
    %3839 = vmatpush1.msra.mxu0 %v95
    %3840 = vmatprep.subr.mxu0 0.0
    %3841 = vmatpush1.msra.mxu0 %v96
    %3842 = vmatprep.subr.mxu0 0.0
    %3843 = vmatpush1.msra.mxu0 %v97
    %3844 = vmatprep.subr.mxu0 0.0
    %3845 = vmatpush1.msra.mxu0 %v98
    %3846 = vmatprep.subr.mxu0 0.0
    %3847 = vmatpush1.msra.mxu0 %v99
    %3848 = vmatprep.subr.mxu0 0.0
    %3849 = vmatpush1.msra.mxu0 %v100
    %3850 = vmatprep.subr.mxu0 0.0
    %3851 = vmatpush1.msra.mxu0 %v101
    %3852 = vmatprep.subr.mxu0 0.0
    %3853 = vmatpush1.msra.mxu0 %v102
    %3854 = vmatprep.subr.mxu0 0.0
    %3855 = vmatpush1.msra.mxu0 %v103
    %3856 = vmatprep.mubr.f32.mxu0 %v3791
    %3857 = vmatmul.mubr.f32.gmra.mrb[0].mxu0 %v3782
    %v3858 = vpop.f32.mrb[0].mxu0
    %v3859 = vadd.f32 0.0, %v3858
    %v3860 = vpop.f32.mrb[0].mxu0
    %3861 = vdwg.mxu0
    %v3862 = vmul.f32 %v3859, 0.001953125
    %v3863 = vadd.f32 %v3862, 1e-05
    %v3864 = vrsqrt.pop %v3863
    %v3866 = vsel %vm154, %v3864, 0
    %3868 = vmatprep.subr.mxu0 %v105
    %3869 = vmatpush1.msra.mxu0 %v104
    %3870 = vmatprep.subr.mxu0 %v107
    %3871 = vmatpush1.msra.mxu0 %v106
    %3872 = vmatprep.subr.mxu0 0.0
    %3873 = vmatpush1.msra.mxu0 0.0
    %3874 = vmatprep.subr.mxu0 0.0
    %3875 = vmatpush1.msra.mxu0 0.0
    %3876 = vmatprep.subr.mxu0 0.0
    %3877 = vmatpush1.msra.mxu0 0.0
    %3878 = vmatprep.subr.mxu0 0.0
    %3879 = vmatpush1.msra.mxu0 0.0
    %3880 = vmatprep.subr.mxu0 0.0
    %3881 = vmatpush1.msra.mxu0 0.0
    %3882 = vmatprep.subr.mxu0 0.0
    %3883 = vmatpush1.msra.mxu0 0.0
    %3884 = vmatprep.subr.mxu0 0.0
    %3885 = vmatpush1.msra.mxu0 0.0
    %3886 = vmatprep.subr.mxu0 0.0
    %3887 = vmatpush1.msra.mxu0 0.0
    %3888 = vmatprep.subr.mxu0 0.0
    %3889 = vmatpush1.msra.mxu0 0.0
    %3890 = vmatprep.subr.mxu0 0.0
    %3891 = vmatpush1.msra.mxu0 0.0
    %3892 = vmatprep.subr.mxu0 0.0
    %3893 = vmatpush1.msra.mxu0 0.0
    %3894 = vmatprep.subr.mxu0 0.0
    %3895 = vmatpush1.msra.mxu0 0.0
    %3896 = vmatprep.subr.mxu0 0.0
    %3897 = vmatpush1.msra.mxu0 0.0
    %3898 = vmatprep.subr.mxu0 0.0
    %3899 = vmatpush1.msra.mxu0 0.0
    %3900 = vmatprep.subr.mxu0 0.0
    %3901 = vmatpush1.msra.mxu0 0.0
    %3902 = vmatprep.subr.mxu0 0.0
    %3903 = vmatpush1.msra.mxu0 0.0
    %3904 = vmatprep.subr.mxu0 0.0
    %3905 = vmatpush1.msra.mxu0 0.0
    %3906 = vmatprep.subr.mxu0 0.0
    %3907 = vmatpush1.msra.mxu0 0.0
    %3908 = vmatprep.subr.mxu0 0.0
    %3909 = vmatpush1.msra.mxu0 0.0
    %3910 = vmatprep.subr.mxu0 0.0
    %3911 = vmatpush1.msra.mxu0 0.0
    %3912 = vmatprep.subr.mxu0 0.0
    %3913 = vmatpush1.msra.mxu0 0.0
    %3914 = vmatprep.subr.mxu0 0.0
    %3915 = vmatpush1.msra.mxu0 0.0
    %3916 = vmatprep.subr.mxu0 0.0
    %3917 = vmatpush1.msra.mxu0 0.0
    %3918 = vmatprep.subr.mxu0 0.0
    %3919 = vmatpush1.msra.mxu0 0.0
    %3920 = vmatprep.subr.mxu0 0.0
    %3921 = vmatpush1.msra.mxu0 0.0
    %3922 = vmatprep.subr.mxu0 0.0
    %3923 = vmatpush1.msra.mxu0 0.0
    %3924 = vmatprep.subr.mxu0 0.0
    %3925 = vmatpush1.msra.mxu0 0.0
    %3926 = vmatprep.subr.mxu0 0.0
    %3927 = vmatpush1.msra.mxu0 0.0
    %3928 = vmatprep.subr.mxu0 0.0
    %3929 = vmatpush1.msra.mxu0 0.0
    %3930 = vmatprep.subr.mxu0 0.0
    %3931 = vmatpush1.msra.mxu0 0.0
    %3932 = vmatprep.mubr.f32.mxu0 0.0
    %3933 = vmatmul.mubr.f32.gmra.mrb[0].mxu0 %v3866
    %v3934 = vpop.f32.mrb[0].mxu0
    %v3935 = vadd.f32 0.0, %v3934
    %v3936 = vpop.f32.mrb[0].mxu0
    %v3937 = vadd.f32 0.0, %v3936
    %3938 = vdwg.mxu0
    %v3941 = vcombine.low %v3935, %v3937
    %v3943 = vunpack.c.l.s4 1966171168
    %v3944 = vunpack.c.0.s8 %v3943
    %v3945 = vlaneseq
    %v3946 = vshrl.u32 %v3945, 7
    %v3947 = vsub.s32 %v3944, %v3946
    %v3948 = vrot.slane %v3941, %v3947
    %v3950 = vunpack.c.l.s4 1966171168
    %v3951 = vunpack.c.0.s8 %v3950
    %v3952 = vlaneseq
    %v3953 = vshrl.u32 %v3952, 7
    %v3954 = vsub.s32 %v3951, %v3953
    %v3955 = vrot.slane %v3948, %v3954
    %v3957 = vmul.f32 %v3585, %v3955
    %v3959 = vlaneseq
    %v3960 = vshrl.u32 %v3959, 7
    %v3961 = vsub.s32 0, %v3960
    %v3962 = vrot.slane %v3957, %v3961
    %v3963 = vlaneseq
    %v3964 = vshrl.u32 %v3963, 7
    %v3965 = vsub.s32 1, %v3964
    %v3966 = vrot.slane %v3957, %v3965
    %v3969 = vmul.f32 %v3758, %v3962
    %v3970 = vmul.f32 %v3759, %v3966
    %v3971 = vmul.f32 %v3760, %v3962
    %v3972 = vmul.f32 %v3761, %v3966
    %v3973 = vmul.f32 %v3762, %v3962
    %v3974 = vmul.f32 %v3763, %v3966
    %v3975 = vmul.f32 %v3764, %v3962
    %v3976 = vmul.f32 %v3765, %v3966
    %v3978 = vlaneseq
    %v3979 = vshrl.u32 %v3978, 7
    %v3980 = vsub.s32 0, %v3979
    %v3981 = vrot.slane %v3586, %v3980
    %v3982 = vlaneseq
    %v3983 = vshrl.u32 %v3982, 7
    %v3984 = vsub.s32 1, %v3983
    %v3985 = vrot.slane %v3586, %v3984
    %v3988 = vadd.f32 %v3969, %v3981
    %v3989 = vadd.f32 %v3970, %v3985
    %v3990 = vadd.f32 %v3971, %v3981
    %v3991 = vadd.f32 %v3972, %v3985
    %v3992 = vadd.f32 %v3973, %v3981
    %v3993 = vadd.f32 %v3974, %v3985
    %v3994 = vadd.f32 %v3975, %v3981
    %v3995 = vadd.f32 %v3976, %v3985
    %v3996 = vadd.f32 %v3988, %v108
    %v3997 = vadd.f32 %v3989, %v109
    %v3998 = vadd.f32 %v3990, %v110
    %v3999 = vadd.f32 %v3991, %v111
    %v4000 = vadd.f32 %v3992, %v112
    %v4001 = vadd.f32 %v3993, %v113
    %v4002 = vadd.f32 %v3994, %v114
    %v4003 = vadd.f32 %v3995, %v115
    %vm4004 = vcmp.ge.f32.partialorder %v3996, 0.0
    %vm4005 = vcmp.ge.f32.partialorder %v3997, 0.0
    %vm4006 = vcmp.ge.f32.partialorder %v3998, 0.0
    %vm4007 = vcmp.ge.f32.partialorder %v3999, 0.0
    %vm4008 = vcmp.ge.f32.partialorder %v4000, 0.0
    %vm4009 = vcmp.ge.f32.partialorder %v4001, 0.0
    %vm4010 = vcmp.ge.f32.partialorder %v4002, 0.0
    %vm4011 = vcmp.ge.f32.partialorder %v4003, 0.0
    %v4012 = vmul.f32 %v2066, %v3996
    %v4013 = vmul.f32 %v2070, %v3997
    %v4014 = vmul.f32 %v2066, %v3998
    %v4015 = vmul.f32 %v2070, %v3999
    %v4016 = vmul.f32 %v2066, %v4000
    %v4017 = vmul.f32 %v2070, %v4001
    %v4018 = vmul.f32 %v2066, %v4002
    %v4019 = vmul.f32 %v2070, %v4003
    %v4020 = vsel %vm4004, %v3996, %v4012
    %v4021 = vsel %vm4005, %v3997, %v4013
    %v4022 = vsel %vm4006, %v3998, %v4014
    %v4023 = vsel %vm4007, %v3999, %v4015
    %v4024 = vsel %vm4008, %v4000, %v4016
    %v4025 = vsel %vm4009, %v4001, %v4017
    %v4026 = vsel %vm4010, %v4002, %v4018
    %v4027 = vsel %vm4011, %v4003, %v4019
    %4028 = vst [vmem:[#allocation8] sm:$0xff] %v4020
    %4029 = vst [vmem:[#allocation8 + $0x8] sm:$0xff] %v4021
    %4030 = vst [vmem:[#allocation8 + $0x10] sm:$0xff] %v4022
    %4031 = vst [vmem:[#allocation8 + $0x18] sm:$0xff] %v4023
    %4032 = vst [vmem:[#allocation8 + $0x20] sm:$0xff] %v4024
    %4033 = vst [vmem:[#allocation8 + $0x28] sm:$0xff] %v4025
    %4034 = vst [vmem:[#allocation8 + $0x30] sm:$0xff] %v4026
    %4035 = vst [vmem:[#allocation8 + $0x38] sm:$0xff] %v4027
    // Predicated region
    $region58: #{tpu_custom_call.1} parent=1 // pred_check
      _
    $region59: #{tpu_custom_call.1} parent=1 // pred_check_branch
      %4037 = sbr.rel (0) target = $region61
    $region60: #{tpu_custom_call.1} parent=1 // pred_region
      %s4039 = ssub.s32 1024, 1024
      %4040 = vsyncadd [#allocation5], %s4039
      %s4041 = sshll.u32 [#allocation8], 4
      %s4042 = int_to_ptr.vmem [resolvable:$true] %s4041
      %4047 = dma.vmem_to_hbm [thread:$0]  %s4042, 1024, %s12, [#allocation5], 256, 256, 16
    $region61: #{tpu_custom_call.1} parent=1 // pred_fallthru
      _
    // Predicated region
    $region62: #{tpu_custom_call.1} parent=1 // pred_check
      _
    $region63: #{tpu_custom_call.1} parent=1 // pred_check_branch
      %4049 = sbr.rel (0) target = $region65
    $region64: #{tpu_custom_call.1} parent=1 // pred_region
      %4050 = dma.done [#allocation5], 1024
    $region65: #{tpu_custom_call.1} parent=1 // pred_fallthru
      _
    %4051 = vsyncpa [#allocation4], 1
    %4052 = vsyncpa [#allocation7], 1
    %4053 = vsyncpa [#allocation5], 1

</llo_original>
